<compile_context>
chip_gen: v5e
topology: v5e:2x2
jax: 0.10.0
libtpu: 0.0.40
codegen_flags: <defaults>
</compile_context>

<pallas_src>
import jax
import jax.numpy as jnp
from jax import lax
from jax.experimental import pallas as pl
from jax.experimental.pallas import tpu as pltpu


# ----------------------------------------------------------------------------
# Grid-layout constants (LeNet5 geometry: 3x32x32 inputs).
# ----------------------------------------------------------------------------
_H = 32                 # image height/width
_S = _H * _H            # 1024 flattened spatial positions per image (lanes)
_PAD = 384              # lane padding so all shifted slices stay in bounds
_SP = _S + _PAD         # 1408 = 11 * 128 (lane-tile aligned)
_K = 5                  # conv kernel size
_CPAD = 8               # channels padded to one sublane tile


# ----------------------------------------------------------------------------
# Fused LeNet5 kernel (one grid step == one image)
# ----------------------------------------------------------------------------
def _lenet5_kernel(x_ref, w1_ref, b1_ref, w2_ref, b2_ref, msel_ref,
                   fw1_ref, fb1_ref, fw2_ref, fb2_ref, fw3_ref, fb3_ref,
                   out_ref,
                   s1_ref, c1_ref, a1_ref, s2_ref, c2_ref, fc_ref):
    f32 = jnp.float32

    # Zero the padded activation scratches so every "garbage" grid position is
    # finite (garbage positions are multiplied by exact 0.0 in the final
    # selection matmul and must not be NaN/Inf).
    c1_ref[...] = jnp.zeros(c1_ref.shape, f32)
    a1_ref[...] = jnp.zeros(a1_ref.shape, f32)
    c2_ref[...] = jnp.zeros(c2_ref.shape, f32)

    # ---- conv1 (3->6, 5x5, valid) + bias + ReLU as one lane-dense matmul ----
    # In-kernel im2col: S1[(dy*5+dx)*8 + c, p] = x[c, p + 32*dy + dx]
    for i in range(_K * _K):
        dy, dx = divmod(i, _K)
        off = dy * _H + dx
        s1_ref[i * _CPAD:(i + 1) * _CPAD, :] = x_ref[0, :, off:off + _S]
    c1 = jnp.dot(w1_ref[...], s1_ref[...], preferred_element_type=f32)
    c1 = jnp.maximum(c1 + b1_ref[...], 0.0)                    # (6, 1024)
    c1_ref[0:6, 0:_S] = c1

    # ---- maxpool1 (2x2, stride 2) fused; result stays on the grid, stride 2
    a1 = jnp.maximum(
        jnp.maximum(c1_ref[0:6, 0:_S], c1_ref[0:6, 1:_S + 1]),
        jnp.maximum(c1_ref[0:6, _H:_S + _H],
                    c1_ref[0:6, _H + 1:_S + _H + 1]))
    a1_ref[0:6, 0:_S] = a1

    # ---- conv2 (6->16, 5x5, valid) on the stride-2 grid ---------------------
    # S2[(dy*5+dx)*8 + c, p] = pool1[c, p + 64*dy + 2*dx]
    for i in range(_K * _K):
        dy, dx = divmod(i, _K)
        off = 2 * dy * _H + 2 * dx
        s2_ref[i * _CPAD:(i + 1) * _CPAD, :] = a1_ref[:, off:off + _S]
    c2 = jnp.dot(w2_ref[...], s2_ref[...], preferred_element_type=f32)
    c2 = jnp.maximum(c2 + b2_ref[...], 0.0)                    # (16, 1024)
    c2_ref[0:16, 0:_S] = c2

    # ---- maxpool2 (2x2 of the stride-2 grid -> stride-4 grid) ---------------
    p2 = jnp.maximum(
        jnp.maximum(c2_ref[0:16, 0:_S], c2_ref[0:16, 2:_S + 2]),
        jnp.maximum(c2_ref[0:16, 2 * _H:_S + 2 * _H],
                    c2_ref[0:16, 2 * _H + 2:_S + 2 * _H + 2]))  # (16, 1024)

    # ---- gather the 16 x 5 x 5 valid values with one 0/1 selection matmul ---
    compact = jnp.dot(p2, msel_ref[...], preferred_element_type=f32)  # (16, 25)

    # PyTorch flatten order (c, h, w): channel o -> lanes [25*o, 25*o + 25).
    for o in range(16):
        fc_ref[0:1, o * 25:(o + 1) * 25] = compact[o:o + 1, :]

    # ---- classifier: fc1 -> ReLU -> fc2 -> ReLU -> fc3 ----------------------
    f = fc_ref[...]                                                  # (1, 400)
    f = jnp.maximum(jnp.dot(f, fw1_ref[...], preferred_element_type=f32)
                    + fb1_ref[...], 0.0)                             # (1, 120)
    f = jnp.maximum(jnp.dot(f, fw2_ref[...], preferred_element_type=f32)
                    + fb2_ref[...], 0.0)                             # (1, 84)
    f = jnp.dot(f, fw3_ref[...], preferred_element_type=f32) + fb3_ref[...]
    out_ref[0, :, :] = f                                             # (1, ncls)


# ----------------------------------------------------------------------------
# One-time weight packing (done OUTSIDE the forward pass)
# ----------------------------------------------------------------------------
def pack_params(params):
    (w1, b1, w2, b2, fw1, fb1, fw2, fb2, fw3, fb3) = params

    def pack_conv(w):  # (O, C, kh, kw) -> (O, 25*8) with (dy, dx, c-pad8) cols
        o = w.shape[0]
        w = jnp.transpose(w, (0, 2, 3, 1))                     # (O, kh, kw, C)
        w = jnp.pad(w, ((0, 0), (0, 0), (0, 0), (0, _CPAD - w.shape[-1])))
        return w.reshape(o, _K * _K * _CPAD)

    w1m = pack_conv(w1)                                        # (6, 200)
    w2m = pack_conv(w2)                                        # (16, 200)

    # Selection matrix: grid position 128*yr + 4*xr -> column 5*yr + xr.
    idx = jnp.arange(25)
    rows = 128 * (idx // 5) + 4 * (idx % 5)
    msel = jnp.zeros((_S, 25), jnp.float32).at[rows, idx].set(1.0)

    return (w1m, b1.reshape(6, 1), w2m, b2.reshape(16, 1), msel,
            fw1.T, fb1.reshape(1, -1), fw2.T, fb2.reshape(1, -1),
            fw3.T, fb3.reshape(1, -1))


# ----------------------------------------------------------------------------
# Forward pass: one fused pallas_call, grid=(batch,), "parallel"
# ----------------------------------------------------------------------------
@jax.jit
def lenet5_forward(x, packed):
    B = x.shape[0]
    num_classes = packed[-1].shape[-1]

    # Input layout plumbing (2 cheap XLA ops on the raw 24 KB input):
    # NCHW -> (B, 8, 1408): channels padded to 8, flattened spatial padded.
    xg = jnp.pad(x.reshape(B, 3, _S), ((0, 0), (0, _CPAD - 3), (0, _PAD)))

    def full_spec(a):
        return pl.BlockSpec(a.shape, lambda b, _nd=a.ndim: (0,) * _nd)

    grid_spec = pltpu.PrefetchScalarGridSpec(
        num_scalar_prefetch=0,
        grid=(B,),
        in_specs=[pl.BlockSpec((1, _CPAD, _SP), lambda b: (b, 0, 0))]
                 + [full_spec(a) for a in packed],
        out_specs=pl.BlockSpec((1, 1, num_classes), lambda b: (b, 0, 0)),
        scratch_shapes=[
            pltpu.VMEM((_K * _K * _CPAD, _S), jnp.float32),   # S1 (im2col 1)
            pltpu.VMEM((_CPAD, _SP), jnp.float32),            # conv1 out (pad)
            pltpu.VMEM((_CPAD, _SP), jnp.float32),            # pool1 out (pad)
            pltpu.VMEM((_K * _K * _CPAD, _S), jnp.float32),   # S2 (im2col 2)
            pltpu.VMEM((16, _SP), jnp.float32),               # conv2 out (pad)
            pltpu.VMEM((1, 400), jnp.float32),                # fc input
        ],
    )
    out = pl.pallas_call(
        _lenet5_kernel,
        out_shape=jax.ShapeDtypeStruct((B, 1, num_classes), jnp.float32),
        grid_spec=grid_spec,
        compiler_params=pltpu.CompilerParams(
            dimension_semantics=("parallel",)),
    )(xg, *packed)
    return out.reshape(B, num_classes)


# ----------------------------------------------------------------------------
# Pure-JAX reference for verification
# ----------------------------------------------------------------------------
def lenet5_reference(x, params):
    (w1, b1, w2, b2, fw1, fb1, fw2, fb2, fw3, fb3) = params

    def conv(x, w, b):
        y = lax.conv_general_dilated(
            x, w, window_strides=(1, 1), padding="VALID",
            dimension_numbers=("NCHW", "OIHW", "NCHW"))
        return jnp.maximum(y + b[None, :, None, None], 0.0)

    def pool(x):
        B, C, H, W = x.shape
        return x.reshape(B, C, H // 2, 2, W // 2, 2).max(axis=(3, 5))

    h = pool(conv(x, w1, b1))
    h = pool(conv(h, w2, b2))
    f = h.reshape(x.shape[0], -1)
    f = jnp.maximum(f @ fw1.T + fb1, 0.0)
    f = jnp.maximum(f @ fw2.T + fb2, 0.0)
    return f @ fw3.T + fb3


# ----------------------------------------------------------------------------
# Deterministic parameter init (PyTorch-like uniform(-1/sqrt(fan_in), ...))
# ----------------------------------------------------------------------------
def init_params(key, num_classes):
    def uni(key, shape, fan_in):
        bound = 1.0 / jnp.sqrt(fan_in)
        return jax.random.uniform(key, shape, jnp.float32, -bound, bound)

    ks = jax.random.split(key, 10)
    w1 = uni(ks[0], (6, 3, 5, 5), 3 * 25)
    b1 = uni(ks[1], (6,), 3 * 25)
    w2 = uni(ks[2], (16, 6, 5, 5), 6 * 25)
    b2 = uni(ks[3], (16,), 6 * 25)
    fw1 = uni(ks[4], (120, 400), 400)
    fb1 = uni(ks[5], (120,), 400)
    fw2 = uni(ks[6], (84, 120), 120)
    fb2 = uni(ks[7], (84,), 120)
    fw3 = uni(ks[8], (num_classes, 84), 84)
    fb3 = uni(ks[9], (num_classes,), 84)
    return (w1, b1, w2, b2, fw1, fb1, fw2, fb2, fw3, fb3)


if __name__ == "__main__":
    num_classes = 10
    key = jax.random.PRNGKey(0)
    k_x, k_p = jax.random.split(key)

    # LeNet5 geometry requires 3x32x32 inputs so features flatten to 400.
    x = jax.random.normal(k_x, (2, 3, 32, 32), jnp.float32)
    params = init_params(k_p, num_classes)
    packed = pack_params(params)          # one-time weight packing

    out = jax.block_until_ready(lenet5_forward(x, packed))
    ref = jax.block_until_ready(lenet5_reference(x, params))

    assert out.shape == (2, num_classes), out.shape
    err = jnp.max(jnp.abs(out - ref))
    assert jnp.allclose(out, ref, rtol=2e-4, atol=2e-4), (
        f"mismatch vs reference: max abs err {err:.3e}")

    print("KERNEL_OK")
</pallas_src>

<mosaic_0001>
module attributes {stable_mosaic.version = 11 : i64} {
  func.func @_lenet5_kernel(%arg0: i32, %arg1: memref<1x8x1408xf32, #tpu.memory_space<vmem>>, %arg2: memref<6x200xf32, #tpu.memory_space<vmem>>, %arg3: memref<6x1xf32, #tpu.memory_space<vmem>>, %arg4: memref<16x200xf32, #tpu.memory_space<vmem>>, %arg5: memref<16x1xf32, #tpu.memory_space<vmem>>, %arg6: memref<1024x25xf32, #tpu.memory_space<vmem>>, %arg7: memref<400x120xf32, #tpu.memory_space<vmem>>, %arg8: memref<1x120xf32, #tpu.memory_space<vmem>>, %arg9: memref<120x84xf32, #tpu.memory_space<vmem>>, %arg10: memref<1x84xf32, #tpu.memory_space<vmem>>, %arg11: memref<84x10xf32, #tpu.memory_space<vmem>>, %arg12: memref<1x10xf32, #tpu.memory_space<vmem>>, %arg13: memref<1x1x10xf32, #tpu.memory_space<vmem>>, %arg14: memref<200x1024xf32, #tpu.memory_space<vmem>>, %arg15: memref<8x1408xf32, #tpu.memory_space<vmem>>, %arg16: memref<8x1408xf32, #tpu.memory_space<vmem>>, %arg17: memref<200x1024xf32, #tpu.memory_space<vmem>>, %arg18: memref<16x1408xf32, #tpu.memory_space<vmem>>, %arg19: memref<1x400xf32, #tpu.memory_space<vmem>>) attributes {dimension_semantics = [#tpu.dimension_semantics<parallel>], iteration_bounds = array<i64: 2>, scalar_prefetch = 0 : i64, scratch_operands = 6 : i64, tpu.core_type = #tpu.core_type<tc>, window_params = [{transform_indices = @transform_0, window_bounds = array<i64: 1, 8, 1408>}, {pipeline_mode = #tpu.pipeline_mode<synchronous>, transform_indices = @transform_1, window_bounds = array<i64: 6, 200>}, {pipeline_mode = #tpu.pipeline_mode<synchronous>, transform_indices = @transform_2, window_bounds = array<i64: 6, 1>}, {pipeline_mode = #tpu.pipeline_mode<synchronous>, transform_indices = @transform_3, window_bounds = array<i64: 16, 200>}, {pipeline_mode = #tpu.pipeline_mode<synchronous>, transform_indices = @transform_4, window_bounds = array<i64: 16, 1>}, {pipeline_mode = #tpu.pipeline_mode<synchronous>, transform_indices = @transform_5, window_bounds = array<i64: 1024, 25>}, {pipeline_mode = #tpu.pipeline_mode<synchronous>, transform_indices = @transform_6, window_bounds = array<i64: 400, 120>}, {pipeline_mode = #tpu.pipeline_mode<synchronous>, transform_indices = @transform_7, window_bounds = array<i64: 1, 120>}, {pipeline_mode = #tpu.pipeline_mode<synchronous>, transform_indices = @transform_8, window_bounds = array<i64: 120, 84>}, {pipeline_mode = #tpu.pipeline_mode<synchronous>, transform_indices = @transform_9, window_bounds = array<i64: 1, 84>}, {pipeline_mode = #tpu.pipeline_mode<synchronous>, transform_indices = @transform_10, window_bounds = array<i64: 84, 10>}, {pipeline_mode = #tpu.pipeline_mode<synchronous>, transform_indices = @transform_11, window_bounds = array<i64: 1, 10>}, {transform_indices = @transform_12, window_bounds = array<i64: 1, 1, 10>}]} {
    %cst = arith.constant 0.000000e+00 : f32
    %0 = vector.broadcast %cst : f32 to vector<8x1408xf32>
    %c0 = arith.constant 0 : index
    %c0_0 = arith.constant 0 : index
    %1 = vector.load %arg15[%c0, %c0_0] : memref<8x1408xf32, #tpu.memory_space<vmem>>, vector<8x1408xf32>
    tpu.vector_store %arg15[%c0, %c0_0], %0 {strides = array<i32>} : memref<8x1408xf32, #tpu.memory_space<vmem>>, vector<8x1408xf32>,
    %cst_1 = arith.constant 0.000000e+00 : f32
    %2 = vector.broadcast %cst_1 : f32 to vector<8x1408xf32>
    %c0_2 = arith.constant 0 : index
    %c0_3 = arith.constant 0 : index
    %3 = vector.load %arg16[%c0_2, %c0_3] : memref<8x1408xf32, #tpu.memory_space<vmem>>, vector<8x1408xf32>
    tpu.vector_store %arg16[%c0_2, %c0_3], %2 {strides = array<i32>} : memref<8x1408xf32, #tpu.memory_space<vmem>>, vector<8x1408xf32>,
    %cst_4 = arith.constant 0.000000e+00 : f32
    %4 = vector.broadcast %cst_4 : f32 to vector<16x1408xf32>
    %c0_5 = arith.constant 0 : index
    %c0_6 = arith.constant 0 : index
    %5 = vector.load %arg18[%c0_5, %c0_6] : memref<16x1408xf32, #tpu.memory_space<vmem>>, vector<16x1408xf32>
    tpu.vector_store %arg18[%c0_5, %c0_6], %4 {strides = array<i32>} : memref<16x1408xf32, #tpu.memory_space<vmem>>, vector<16x1408xf32>,
    %c0_7 = arith.constant 0 : index
    %c0_8 = arith.constant 0 : index
    %c0_9 = arith.constant 0 : index
    %6 = vector.load %arg1[%c0_7, %c0_8, %c0_9] : memref<1x8x1408xf32, #tpu.memory_space<vmem>>, vector<1x8x1024xf32>
    %7 = vector.shape_cast %6 : vector<1x8x1024xf32> to vector<8x1024xf32>
    %c0_10 = arith.constant 0 : index
    %c0_11 = arith.constant 0 : index
    %8 = vector.load %arg14[%c0_10, %c0_11] : memref<200x1024xf32, #tpu.memory_space<vmem>>, vector<8x1024xf32>
    tpu.vector_store %arg14[%c0_10, %c0_11], %7 {strides = array<i32>} : memref<200x1024xf32, #tpu.memory_space<vmem>>, vector<8x1024xf32>,
    %c0_12 = arith.constant 0 : index
    %c0_13 = arith.constant 0 : index
    %c1 = arith.constant 1 : index
    %9 = vector.load %arg1[%c0_12, %c0_13, %c1] : memref<1x8x1408xf32, #tpu.memory_space<vmem>>, vector<1x8x1024xf32>
    %10 = vector.shape_cast %9 : vector<1x8x1024xf32> to vector<8x1024xf32>
    %c8 = arith.constant 8 : index
    %c0_14 = arith.constant 0 : index
    %11 = vector.load %arg14[%c8, %c0_14] : memref<200x1024xf32, #tpu.memory_space<vmem>>, vector<8x1024xf32>
    tpu.vector_store %arg14[%c8, %c0_14], %10 {strides = array<i32>} : memref<200x1024xf32, #tpu.memory_space<vmem>>, vector<8x1024xf32>,
    %c0_15 = arith.constant 0 : index
    %c0_16 = arith.constant 0 : index
    %c2 = arith.constant 2 : index
    %12 = vector.load %arg1[%c0_15, %c0_16, %c2] : memref<1x8x1408xf32, #tpu.memory_space<vmem>>, vector<1x8x1024xf32>
    %13 = vector.shape_cast %12 : vector<1x8x1024xf32> to vector<8x1024xf32>
    %c16 = arith.constant 16 : index
    %c0_17 = arith.constant 0 : index
    %14 = vector.load %arg14[%c16, %c0_17] : memref<200x1024xf32, #tpu.memory_space<vmem>>, vector<8x1024xf32>
    tpu.vector_store %arg14[%c16, %c0_17], %13 {strides = array<i32>} : memref<200x1024xf32, #tpu.memory_space<vmem>>, vector<8x1024xf32>,
    %c0_18 = arith.constant 0 : index
    %c0_19 = arith.constant 0 : index
    %c3 = arith.constant 3 : index
    %15 = vector.load %arg1[%c0_18, %c0_19, %c3] : memref<1x8x1408xf32, #tpu.memory_space<vmem>>, vector<1x8x1024xf32>
    %16 = vector.shape_cast %15 : vector<1x8x1024xf32> to vector<8x1024xf32>
    %c24 = arith.constant 24 : index
    %c0_20 = arith.constant 0 : index
    %17 = vector.load %arg14[%c24, %c0_20] : memref<200x1024xf32, #tpu.memory_space<vmem>>, vector<8x1024xf32>
    tpu.vector_store %arg14[%c24, %c0_20], %16 {strides = array<i32>} : memref<200x1024xf32, #tpu.memory_space<vmem>>, vector<8x1024xf32>,
    %c0_21 = arith.constant 0 : index
    %c0_22 = arith.constant 0 : index
    %c4 = arith.constant 4 : index
    %18 = vector.load %arg1[%c0_21, %c0_22, %c4] : memref<1x8x1408xf32, #tpu.memory_space<vmem>>, vector<1x8x1024xf32>
    %19 = vector.shape_cast %18 : vector<1x8x1024xf32> to vector<8x1024xf32>
    %c32 = arith.constant 32 : index
    %c0_23 = arith.constant 0 : index
    %20 = vector.load %arg14[%c32, %c0_23] : memref<200x1024xf32, #tpu.memory_space<vmem>>, vector<8x1024xf32>
    tpu.vector_store %arg14[%c32, %c0_23], %19 {strides = array<i32>} : memref<200x1024xf32, #tpu.memory_space<vmem>>, vector<8x1024xf32>,
    %c0_24 = arith.constant 0 : index
    %c0_25 = arith.constant 0 : index
    %c32_26 = arith.constant 32 : index
    %21 = vector.load %arg1[%c0_24, %c0_25, %c32_26] : memref<1x8x1408xf32, #tpu.memory_space<vmem>>, vector<1x8x1024xf32>
    %22 = vector.shape_cast %21 : vector<1x8x1024xf32> to vector<8x1024xf32>
    %c40 = arith.constant 40 : index
    %c0_27 = arith.constant 0 : index
    %23 = vector.load %arg14[%c40, %c0_27] : memref<200x1024xf32, #tpu.memory_space<vmem>>, vector<8x1024xf32>
    tpu.vector_store %arg14[%c40, %c0_27], %22 {strides = array<i32>} : memref<200x1024xf32, #tpu.memory_space<vmem>>, vector<8x1024xf32>,
    %c0_28 = arith.constant 0 : index
    %c0_29 = arith.constant 0 : index
    %c33 = arith.constant 33 : index
    %24 = vector.load %arg1[%c0_28, %c0_29, %c33] : memref<1x8x1408xf32, #tpu.memory_space<vmem>>, vector<1x8x1024xf32>
    %25 = vector.shape_cast %24 : vector<1x8x1024xf32> to vector<8x1024xf32>
    %c48 = arith.constant 48 : index
    %c0_30 = arith.constant 0 : index
    %26 = vector.load %arg14[%c48, %c0_30] : memref<200x1024xf32, #tpu.memory_space<vmem>>, vector<8x1024xf32>
    tpu.vector_store %arg14[%c48, %c0_30], %25 {strides = array<i32>} : memref<200x1024xf32, #tpu.memory_space<vmem>>, vector<8x1024xf32>,
    %c0_31 = arith.constant 0 : index
    %c0_32 = arith.constant 0 : index
    %c34 = arith.constant 34 : index
    %27 = vector.load %arg1[%c0_31, %c0_32, %c34] : memref<1x8x1408xf32, #tpu.memory_space<vmem>>, vector<1x8x1024xf32>
    %28 = vector.shape_cast %27 : vector<1x8x1024xf32> to vector<8x1024xf32>
    %c56 = arith.constant 56 : index
    %c0_33 = arith.constant 0 : index
    %29 = vector.load %arg14[%c56, %c0_33] : memref<200x1024xf32, #tpu.memory_space<vmem>>, vector<8x1024xf32>
    tpu.vector_store %arg14[%c56, %c0_33], %28 {strides = array<i32>} : memref<200x1024xf32, #tpu.memory_space<vmem>>, vector<8x1024xf32>,
    %c0_34 = arith.constant 0 : index
    %c0_35 = arith.constant 0 : index
    %c35 = arith.constant 35 : index
    %30 = vector.load %arg1[%c0_34, %c0_35, %c35] : memref<1x8x1408xf32, #tpu.memory_space<vmem>>, vector<1x8x1024xf32>
    %31 = vector.shape_cast %30 : vector<1x8x1024xf32> to vector<8x1024xf32>
    %c64 = arith.constant 64 : index
    %c0_36 = arith.constant 0 : index
    %32 = vector.load %arg14[%c64, %c0_36] : memref<200x1024xf32, #tpu.memory_space<vmem>>, vector<8x1024xf32>
    tpu.vector_store %arg14[%c64, %c0_36], %31 {strides = array<i32>} : memref<200x1024xf32, #tpu.memory_space<vmem>>, vector<8x1024xf32>,
    %c0_37 = arith.constant 0 : index
    %c0_38 = arith.constant 0 : index
    %c36 = arith.constant 36 : index
    %33 = vector.load %arg1[%c0_37, %c0_38, %c36] : memref<1x8x1408xf32, #tpu.memory_space<vmem>>, vector<1x8x1024xf32>
    %34 = vector.shape_cast %33 : vector<1x8x1024xf32> to vector<8x1024xf32>
    %c72 = arith.constant 72 : index
    %c0_39 = arith.constant 0 : index
    %35 = vector.load %arg14[%c72, %c0_39] : memref<200x1024xf32, #tpu.memory_space<vmem>>, vector<8x1024xf32>
    tpu.vector_store %arg14[%c72, %c0_39], %34 {strides = array<i32>} : memref<200x1024xf32, #tpu.memory_space<vmem>>, vector<8x1024xf32>,
    %c0_40 = arith.constant 0 : index
    %c0_41 = arith.constant 0 : index
    %c64_42 = arith.constant 64 : index
    %36 = vector.load %arg1[%c0_40, %c0_41, %c64_42] : memref<1x8x1408xf32, #tpu.memory_space<vmem>>, vector<1x8x1024xf32>
    %37 = vector.shape_cast %36 : vector<1x8x1024xf32> to vector<8x1024xf32>
    %c80 = arith.constant 80 : index
    %c0_43 = arith.constant 0 : index
    %38 = vector.load %arg14[%c80, %c0_43] : memref<200x1024xf32, #tpu.memory_space<vmem>>, vector<8x1024xf32>
    tpu.vector_store %arg14[%c80, %c0_43], %37 {strides = array<i32>} : memref<200x1024xf32, #tpu.memory_space<vmem>>, vector<8x1024xf32>,
    %c0_44 = arith.constant 0 : index
    %c0_45 = arith.constant 0 : index
    %c65 = arith.constant 65 : index
    %39 = vector.load %arg1[%c0_44, %c0_45, %c65] : memref<1x8x1408xf32, #tpu.memory_space<vmem>>, vector<1x8x1024xf32>
    %40 = vector.shape_cast %39 : vector<1x8x1024xf32> to vector<8x1024xf32>
    %c88 = arith.constant 88 : index
    %c0_46 = arith.constant 0 : index
    %41 = vector.load %arg14[%c88, %c0_46] : memref<200x1024xf32, #tpu.memory_space<vmem>>, vector<8x1024xf32>
    tpu.vector_store %arg14[%c88, %c0_46], %40 {strides = array<i32>} : memref<200x1024xf32, #tpu.memory_space<vmem>>, vector<8x1024xf32>,
    %c0_47 = arith.constant 0 : index
    %c0_48 = arith.constant 0 : index
    %c66 = arith.constant 66 : index
    %42 = vector.load %arg1[%c0_47, %c0_48, %c66] : memref<1x8x1408xf32, #tpu.memory_space<vmem>>, vector<1x8x1024xf32>
    %43 = vector.shape_cast %42 : vector<1x8x1024xf32> to vector<8x1024xf32>
    %c96 = arith.constant 96 : index
    %c0_49 = arith.constant 0 : index
    %44 = vector.load %arg14[%c96, %c0_49] : memref<200x1024xf32, #tpu.memory_space<vmem>>, vector<8x1024xf32>
    tpu.vector_store %arg14[%c96, %c0_49], %43 {strides = array<i32>} : memref<200x1024xf32, #tpu.memory_space<vmem>>, vector<8x1024xf32>,
    %c0_50 = arith.constant 0 : index
    %c0_51 = arith.constant 0 : index
    %c67 = arith.constant 67 : index
    %45 = vector.load %arg1[%c0_50, %c0_51, %c67] : memref<1x8x1408xf32, #tpu.memory_space<vmem>>, vector<1x8x1024xf32>
    %46 = vector.shape_cast %45 : vector<1x8x1024xf32> to vector<8x1024xf32>
    %c104 = arith.constant 104 : index
    %c0_52 = arith.constant 0 : index
    %47 = vector.load %arg14[%c104, %c0_52] : memref<200x1024xf32, #tpu.memory_space<vmem>>, vector<8x1024xf32>
    tpu.vector_store %arg14[%c104, %c0_52], %46 {strides = array<i32>} : memref<200x1024xf32, #tpu.memory_space<vmem>>, vector<8x1024xf32>,
    %c0_53 = arith.constant 0 : index
    %c0_54 = arith.constant 0 : index
    %c68 = arith.constant 68 : index
    %48 = vector.load %arg1[%c0_53, %c0_54, %c68] : memref<1x8x1408xf32, #tpu.memory_space<vmem>>, vector<1x8x1024xf32>
    %49 = vector.shape_cast %48 : vector<1x8x1024xf32> to vector<8x1024xf32>
    %c112 = arith.constant 112 : index
    %c0_55 = arith.constant 0 : index
    %50 = vector.load %arg14[%c112, %c0_55] : memref<200x1024xf32, #tpu.memory_space<vmem>>, vector<8x1024xf32>
    tpu.vector_store %arg14[%c112, %c0_55], %49 {strides = array<i32>} : memref<200x1024xf32, #tpu.memory_space<vmem>>, vector<8x1024xf32>,
    %c0_56 = arith.constant 0 : index
    %c0_57 = arith.constant 0 : index
    %c96_58 = arith.constant 96 : index
    %51 = vector.load %arg1[%c0_56, %c0_57, %c96_58] : memref<1x8x1408xf32, #tpu.memory_space<vmem>>, vector<1x8x1024xf32>
    %52 = vector.shape_cast %51 : vector<1x8x1024xf32> to vector<8x1024xf32>
    %c120 = arith.constant 120 : index
    %c0_59 = arith.constant 0 : index
    %53 = vector.load %arg14[%c120, %c0_59] : memref<200x1024xf32, #tpu.memory_space<vmem>>, vector<8x1024xf32>
    tpu.vector_store %arg14[%c120, %c0_59], %52 {strides = array<i32>} : memref<200x1024xf32, #tpu.memory_space<vmem>>, vector<8x1024xf32>,
    %c0_60 = arith.constant 0 : index
    %c0_61 = arith.constant 0 : index
    %c97 = arith.constant 97 : index
    %54 = vector.load %arg1[%c0_60, %c0_61, %c97] : memref<1x8x1408xf32, #tpu.memory_space<vmem>>, vector<1x8x1024xf32>
    %55 = vector.shape_cast %54 : vector<1x8x1024xf32> to vector<8x1024xf32>
    %c128 = arith.constant 128 : index
    %c0_62 = arith.constant 0 : index
    %56 = vector.load %arg14[%c128, %c0_62] : memref<200x1024xf32, #tpu.memory_space<vmem>>, vector<8x1024xf32>
    tpu.vector_store %arg14[%c128, %c0_62], %55 {strides = array<i32>} : memref<200x1024xf32, #tpu.memory_space<vmem>>, vector<8x1024xf32>,
    %c0_63 = arith.constant 0 : index
    %c0_64 = arith.constant 0 : index
    %c98 = arith.constant 98 : index
    %57 = vector.load %arg1[%c0_63, %c0_64, %c98] : memref<1x8x1408xf32, #tpu.memory_space<vmem>>, vector<1x8x1024xf32>
    %58 = vector.shape_cast %57 : vector<1x8x1024xf32> to vector<8x1024xf32>
    %c136 = arith.constant 136 : index
    %c0_65 = arith.constant 0 : index
    %59 = vector.load %arg14[%c136, %c0_65] : memref<200x1024xf32, #tpu.memory_space<vmem>>, vector<8x1024xf32>
    tpu.vector_store %arg14[%c136, %c0_65], %58 {strides = array<i32>} : memref<200x1024xf32, #tpu.memory_space<vmem>>, vector<8x1024xf32>,
    %c0_66 = arith.constant 0 : index
    %c0_67 = arith.constant 0 : index
    %c99 = arith.constant 99 : index
    %60 = vector.load %arg1[%c0_66, %c0_67, %c99] : memref<1x8x1408xf32, #tpu.memory_space<vmem>>, vector<1x8x1024xf32>
    %61 = vector.shape_cast %60 : vector<1x8x1024xf32> to vector<8x1024xf32>
    %c144 = arith.constant 144 : index
    %c0_68 = arith.constant 0 : index
    %62 = vector.load %arg14[%c144, %c0_68] : memref<200x1024xf32, #tpu.memory_space<vmem>>, vector<8x1024xf32>
    tpu.vector_store %arg14[%c144, %c0_68], %61 {strides = array<i32>} : memref<200x1024xf32, #tpu.memory_space<vmem>>, vector<8x1024xf32>,
    %c0_69 = arith.constant 0 : index
    %c0_70 = arith.constant 0 : index
    %c100 = arith.constant 100 : index
    %63 = vector.load %arg1[%c0_69, %c0_70, %c100] : memref<1x8x1408xf32, #tpu.memory_space<vmem>>, vector<1x8x1024xf32>
    %64 = vector.shape_cast %63 : vector<1x8x1024xf32> to vector<8x1024xf32>
    %c152 = arith.constant 152 : index
    %c0_71 = arith.constant 0 : index
    %65 = vector.load %arg14[%c152, %c0_71] : memref<200x1024xf32, #tpu.memory_space<vmem>>, vector<8x1024xf32>
    tpu.vector_store %arg14[%c152, %c0_71], %64 {strides = array<i32>} : memref<200x1024xf32, #tpu.memory_space<vmem>>, vector<8x1024xf32>,
    %c0_72 = arith.constant 0 : index
    %c0_73 = arith.constant 0 : index
    %c128_74 = arith.constant 128 : index
    %66 = vector.load %arg1[%c0_72, %c0_73, %c128_74] : memref<1x8x1408xf32, #tpu.memory_space<vmem>>, vector<1x8x1024xf32>
    %67 = vector.shape_cast %66 : vector<1x8x1024xf32> to vector<8x1024xf32>
    %c160 = arith.constant 160 : index
    %c0_75 = arith.constant 0 : index
    %68 = vector.load %arg14[%c160, %c0_75] : memref<200x1024xf32, #tpu.memory_space<vmem>>, vector<8x1024xf32>
    tpu.vector_store %arg14[%c160, %c0_75], %67 {strides = array<i32>} : memref<200x1024xf32, #tpu.memory_space<vmem>>, vector<8x1024xf32>,
    %c0_76 = arith.constant 0 : index
    %c0_77 = arith.constant 0 : index
    %c129 = arith.constant 129 : index
    %69 = vector.load %arg1[%c0_76, %c0_77, %c129] : memref<1x8x1408xf32, #tpu.memory_space<vmem>>, vector<1x8x1024xf32>
    %70 = vector.shape_cast %69 : vector<1x8x1024xf32> to vector<8x1024xf32>
    %c168 = arith.constant 168 : index
    %c0_78 = arith.constant 0 : index
    %71 = vector.load %arg14[%c168, %c0_78] : memref<200x1024xf32, #tpu.memory_space<vmem>>, vector<8x1024xf32>
    tpu.vector_store %arg14[%c168, %c0_78], %70 {strides = array<i32>} : memref<200x1024xf32, #tpu.memory_space<vmem>>, vector<8x1024xf32>,
    %c0_79 = arith.constant 0 : index
    %c0_80 = arith.constant 0 : index
    %c130 = arith.constant 130 : index
    %72 = vector.load %arg1[%c0_79, %c0_80, %c130] : memref<1x8x1408xf32, #tpu.memory_space<vmem>>, vector<1x8x1024xf32>
    %73 = vector.shape_cast %72 : vector<1x8x1024xf32> to vector<8x1024xf32>
    %c176 = arith.constant 176 : index
    %c0_81 = arith.constant 0 : index
    %74 = vector.load %arg14[%c176, %c0_81] : memref<200x1024xf32, #tpu.memory_space<vmem>>, vector<8x1024xf32>
    tpu.vector_store %arg14[%c176, %c0_81], %73 {strides = array<i32>} : memref<200x1024xf32, #tpu.memory_space<vmem>>, vector<8x1024xf32>,
    %c0_82 = arith.constant 0 : index
    %c0_83 = arith.constant 0 : index
    %c131 = arith.constant 131 : index
    %75 = vector.load %arg1[%c0_82, %c0_83, %c131] : memref<1x8x1408xf32, #tpu.memory_space<vmem>>, vector<1x8x1024xf32>
    %76 = vector.shape_cast %75 : vector<1x8x1024xf32> to vector<8x1024xf32>
    %c184 = arith.constant 184 : index
    %c0_84 = arith.constant 0 : index
    %77 = vector.load %arg14[%c184, %c0_84] : memref<200x1024xf32, #tpu.memory_space<vmem>>, vector<8x1024xf32>
    tpu.vector_store %arg14[%c184, %c0_84], %76 {strides = array<i32>} : memref<200x1024xf32, #tpu.memory_space<vmem>>, vector<8x1024xf32>,
    %c0_85 = arith.constant 0 : index
    %c0_86 = arith.constant 0 : index
    %c132 = arith.constant 132 : index
    %78 = vector.load %arg1[%c0_85, %c0_86, %c132] : memref<1x8x1408xf32, #tpu.memory_space<vmem>>, vector<1x8x1024xf32>
    %79 = vector.shape_cast %78 : vector<1x8x1024xf32> to vector<8x1024xf32>
    %c192 = arith.constant 192 : index
    %c0_87 = arith.constant 0 : index
    %80 = vector.load %arg14[%c192, %c0_87] : memref<200x1024xf32, #tpu.memory_space<vmem>>, vector<8x1024xf32>
    tpu.vector_store %arg14[%c192, %c0_87], %79 {strides = array<i32>} : memref<200x1024xf32, #tpu.memory_space<vmem>>, vector<8x1024xf32>,
    %c0_88 = arith.constant 0 : index
    %c0_89 = arith.constant 0 : index
    %81 = vector.load %arg2[%c0_88, %c0_89] : memref<6x200xf32, #tpu.memory_space<vmem>>, vector<6x200xf32>
    %c0_90 = arith.constant 0 : index
    %c0_91 = arith.constant 0 : index
    %82 = vector.load %arg14[%c0_90, %c0_91] : memref<200x1024xf32, #tpu.memory_space<vmem>>, vector<200x1024xf32>
    %cst_92 = arith.constant dense<0.000000e+00> : vector<6x1024xf32>
    %83 = tpu.matmul %81, %82, %cst_92 {dimension_numbers = #tpu.dot_dimension_numbers<[1], [0], [0], [1], [0, 0, 1, 1], [], []>} : vector<6x200xf32>, vector<200x1024xf32>, vector<6x1024xf32> -> vector<6x1024xf32>
    %c0_93 = arith.constant 0 : index
    %c0_94 = arith.constant 0 : index
    %84 = vector.load %arg3[%c0_93, %c0_94] : memref<6x1xf32, #tpu.memory_space<vmem>>, vector<6x1xf32>
    %85 = vector.broadcast %84 : vector<6x1xf32> to vector<6x1024xf32>
    %86 = arith.addf %83, %85 : vector<6x1024xf32>
    %cst_95 = arith.constant 0.000000e+00 : f32
    %87 = vector.broadcast %cst_95 : f32 to vector<6x1024xf32>
    %88 = arith.maximumf %86, %87 : vector<6x1024xf32>
    %c0_96 = arith.constant 0 : index
    %c0_97 = arith.constant 0 : index
    %89 = vector.load %arg15[%c0_96, %c0_97] : memref<8x1408xf32, #tpu.memory_space<vmem>>, vector<6x1024xf32>
    tpu.vector_store %arg15[%c0_96, %c0_97], %88 {strides = array<i32>} : memref<8x1408xf32, #tpu.memory_space<vmem>>, vector<6x1024xf32>,
    %c0_98 = arith.constant 0 : index
    %c0_99 = arith.constant 0 : index
    %90 = vector.load %arg15[%c0_98, %c0_99] : memref<8x1408xf32, #tpu.memory_space<vmem>>, vector<6x1024xf32>
    %c0_100 = arith.constant 0 : index
    %c1_101 = arith.constant 1 : index
    %91 = vector.load %arg15[%c0_100, %c1_101] : memref<8x1408xf32, #tpu.memory_space<vmem>>, vector<6x1024xf32>
    %92 = arith.maximumf %90, %91 : vector<6x1024xf32>
    %c0_102 = arith.constant 0 : index
    %c32_103 = arith.constant 32 : index
    %93 = vector.load %arg15[%c0_102, %c32_103] : memref<8x1408xf32, #tpu.memory_space<vmem>>, vector<6x1024xf32>
    %c0_104 = arith.constant 0 : index
    %c33_105 = arith.constant 33 : index
    %94 = vector.load %arg15[%c0_104, %c33_105] : memref<8x1408xf32, #tpu.memory_space<vmem>>, vector<6x1024xf32>
    %95 = arith.maximumf %93, %94 : vector<6x1024xf32>
    %96 = arith.maximumf %92, %95 : vector<6x1024xf32>
    %c0_106 = arith.constant 0 : index
    %c0_107 = arith.constant 0 : index
    %97 = vector.load %arg16[%c0_106, %c0_107] : memref<8x1408xf32, #tpu.memory_space<vmem>>, vector<6x1024xf32>
    tpu.vector_store %arg16[%c0_106, %c0_107], %96 {strides = array<i32>} : memref<8x1408xf32, #tpu.memory_space<vmem>>, vector<6x1024xf32>,
    %c0_108 = arith.constant 0 : index
    %c0_109 = arith.constant 0 : index
    %98 = vector.load %arg16[%c0_108, %c0_109] : memref<8x1408xf32, #tpu.memory_space<vmem>>, vector<8x1024xf32>
    %c0_110 = arith.constant 0 : index
    %c0_111 = arith.constant 0 : index
    %99 = vector.load %arg17[%c0_110, %c0_111] : memref<200x1024xf32, #tpu.memory_space<vmem>>, vector<8x1024xf32>
    tpu.vector_store %arg17[%c0_110, %c0_111], %98 {strides = array<i32>} : memref<200x1024xf32, #tpu.memory_space<vmem>>, vector<8x1024xf32>,
    %c0_112 = arith.constant 0 : index
    %c2_113 = arith.constant 2 : index
    %100 = vector.load %arg16[%c0_112, %c2_113] : memref<8x1408xf32, #tpu.memory_space<vmem>>, vector<8x1024xf32>
    %c8_114 = arith.constant 8 : index
    %c0_115 = arith.constant 0 : index
    %101 = vector.load %arg17[%c8_114, %c0_115] : memref<200x1024xf32, #tpu.memory_space<vmem>>, vector<8x1024xf32>
    tpu.vector_store %arg17[%c8_114, %c0_115], %100 {strides = array<i32>} : memref<200x1024xf32, #tpu.memory_space<vmem>>, vector<8x1024xf32>,
    %c0_116 = arith.constant 0 : index
    %c4_117 = arith.constant 4 : index
    %102 = vector.load %arg16[%c0_116, %c4_117] : memref<8x1408xf32, #tpu.memory_space<vmem>>, vector<8x1024xf32>
    %c16_118 = arith.constant 16 : index
    %c0_119 = arith.constant 0 : index
    %103 = vector.load %arg17[%c16_118, %c0_119] : memref<200x1024xf32, #tpu.memory_space<vmem>>, vector<8x1024xf32>
    tpu.vector_store %arg17[%c16_118, %c0_119], %102 {strides = array<i32>} : memref<200x1024xf32, #tpu.memory_space<vmem>>, vector<8x1024xf32>,
    %c0_120 = arith.constant 0 : index
    %c6 = arith.constant 6 : index
    %104 = vector.load %arg16[%c0_120, %c6] : memref<8x1408xf32, #tpu.memory_space<vmem>>, vector<8x1024xf32>
    %c24_121 = arith.constant 24 : index
    %c0_122 = arith.constant 0 : index
    %105 = vector.load %arg17[%c24_121, %c0_122] : memref<200x1024xf32, #tpu.memory_space<vmem>>, vector<8x1024xf32>
    tpu.vector_store %arg17[%c24_121, %c0_122], %104 {strides = array<i32>} : memref<200x1024xf32, #tpu.memory_space<vmem>>, vector<8x1024xf32>,
    %c0_123 = arith.constant 0 : index
    %c8_124 = arith.constant 8 : index
    %106 = vector.load %arg16[%c0_123, %c8_124] : memref<8x1408xf32, #tpu.memory_space<vmem>>, vector<8x1024xf32>
    %c32_125 = arith.constant 32 : index
    %c0_126 = arith.constant 0 : index
    %107 = vector.load %arg17[%c32_125, %c0_126] : memref<200x1024xf32, #tpu.memory_space<vmem>>, vector<8x1024xf32>
    tpu.vector_store %arg17[%c32_125, %c0_126], %106 {strides = array<i32>} : memref<200x1024xf32, #tpu.memory_space<vmem>>, vector<8x1024xf32>,
    %c0_127 = arith.constant 0 : index
    %c64_128 = arith.constant 64 : index
    %108 = vector.load %arg16[%c0_127, %c64_128] : memref<8x1408xf32, #tpu.memory_space<vmem>>, vector<8x1024xf32>
    %c40_129 = arith.constant 40 : index
    %c0_130 = arith.constant 0 : index
    %109 = vector.load %arg17[%c40_129, %c0_130] : memref<200x1024xf32, #tpu.memory_space<vmem>>, vector<8x1024xf32>
    tpu.vector_store %arg17[%c40_129, %c0_130], %108 {strides = array<i32>} : memref<200x1024xf32, #tpu.memory_space<vmem>>, vector<8x1024xf32>,
    %c0_131 = arith.constant 0 : index
    %c66_132 = arith.constant 66 : index
    %110 = vector.load %arg16[%c0_131, %c66_132] : memref<8x1408xf32, #tpu.memory_space<vmem>>, vector<8x1024xf32>
    %c48_133 = arith.constant 48 : index
    %c0_134 = arith.constant 0 : index
    %111 = vector.load %arg17[%c48_133, %c0_134] : memref<200x1024xf32, #tpu.memory_space<vmem>>, vector<8x1024xf32>
    tpu.vector_store %arg17[%c48_133, %c0_134], %110 {strides = array<i32>} : memref<200x1024xf32, #tpu.memory_space<vmem>>, vector<8x1024xf32>,
    %c0_135 = arith.constant 0 : index
    %c68_136 = arith.constant 68 : index
    %112 = vector.load %arg16[%c0_135, %c68_136] : memref<8x1408xf32, #tpu.memory_space<vmem>>, vector<8x1024xf32>
    %c56_137 = arith.constant 56 : index
    %c0_138 = arith.constant 0 : index
    %113 = vector.load %arg17[%c56_137, %c0_138] : memref<200x1024xf32, #tpu.memory_space<vmem>>, vector<8x1024xf32>
    tpu.vector_store %arg17[%c56_137, %c0_138], %112 {strides = array<i32>} : memref<200x1024xf32, #tpu.memory_space<vmem>>, vector<8x1024xf32>,
    %c0_139 = arith.constant 0 : index
    %c70 = arith.constant 70 : index
    %114 = vector.load %arg16[%c0_139, %c70] : memref<8x1408xf32, #tpu.memory_space<vmem>>, vector<8x1024xf32>
    %c64_140 = arith.constant 64 : index
    %c0_141 = arith.constant 0 : index
    %115 = vector.load %arg17[%c64_140, %c0_141] : memref<200x1024xf32, #tpu.memory_space<vmem>>, vector<8x1024xf32>
    tpu.vector_store %arg17[%c64_140, %c0_141], %114 {strides = array<i32>} : memref<200x1024xf32, #tpu.memory_space<vmem>>, vector<8x1024xf32>,
    %c0_142 = arith.constant 0 : index
    %c72_143 = arith.constant 72 : index
    %116 = vector.load %arg16[%c0_142, %c72_143] : memref<8x1408xf32, #tpu.memory_space<vmem>>, vector<8x1024xf32>
    %c72_144 = arith.constant 72 : index
    %c0_145 = arith.constant 0 : index
    %117 = vector.load %arg17[%c72_144, %c0_145] : memref<200x1024xf32, #tpu.memory_space<vmem>>, vector<8x1024xf32>
    tpu.vector_store %arg17[%c72_144, %c0_145], %116 {strides = array<i32>} : memref<200x1024xf32, #tpu.memory_space<vmem>>, vector<8x1024xf32>,
    %c0_146 = arith.constant 0 : index
    %c128_147 = arith.constant 128 : index
    %118 = vector.load %arg16[%c0_146, %c128_147] : memref<8x1408xf32, #tpu.memory_space<vmem>>, vector<8x1024xf32>
    %c80_148 = arith.constant 80 : index
    %c0_149 = arith.constant 0 : index
    %119 = vector.load %arg17[%c80_148, %c0_149] : memref<200x1024xf32, #tpu.memory_space<vmem>>, vector<8x1024xf32>
    tpu.vector_store %arg17[%c80_148, %c0_149], %118 {strides = array<i32>} : memref<200x1024xf32, #tpu.memory_space<vmem>>, vector<8x1024xf32>,
    %c0_150 = arith.constant 0 : index
    %c130_151 = arith.constant 130 : index
    %120 = vector.load %arg16[%c0_150, %c130_151] : memref<8x1408xf32, #tpu.memory_space<vmem>>, vector<8x1024xf32>
    %c88_152 = arith.constant 88 : index
    %c0_153 = arith.constant 0 : index
    %121 = vector.load %arg17[%c88_152, %c0_153] : memref<200x1024xf32, #tpu.memory_space<vmem>>, vector<8x1024xf32>
    tpu.vector_store %arg17[%c88_152, %c0_153], %120 {strides = array<i32>} : memref<200x1024xf32, #tpu.memory_space<vmem>>, vector<8x1024xf32>,
    %c0_154 = arith.constant 0 : index
    %c132_155 = arith.constant 132 : index
    %122 = vector.load %arg16[%c0_154, %c132_155] : memref<8x1408xf32, #tpu.memory_space<vmem>>, vector<8x1024xf32>
    %c96_156 = arith.constant 96 : index
    %c0_157 = arith.constant 0 : index
    %123 = vector.load %arg17[%c96_156, %c0_157] : memref<200x1024xf32, #tpu.memory_space<vmem>>, vector<8x1024xf32>
    tpu.vector_store %arg17[%c96_156, %c0_157], %122 {strides = array<i32>} : memref<200x1024xf32, #tpu.memory_space<vmem>>, vector<8x1024xf32>,
    %c0_158 = arith.constant 0 : index
    %c134 = arith.constant 134 : index
    %124 = vector.load %arg16[%c0_158, %c134] : memref<8x1408xf32, #tpu.memory_space<vmem>>, vector<8x1024xf32>
    %c104_159 = arith.constant 104 : index
    %c0_160 = arith.constant 0 : index
    %125 = vector.load %arg17[%c104_159, %c0_160] : memref<200x1024xf32, #tpu.memory_space<vmem>>, vector<8x1024xf32>
    tpu.vector_store %arg17[%c104_159, %c0_160], %124 {strides = array<i32>} : memref<200x1024xf32, #tpu.memory_space<vmem>>, vector<8x1024xf32>,
    %c0_161 = arith.constant 0 : index
    %c136_162 = arith.constant 136 : index
    %126 = vector.load %arg16[%c0_161, %c136_162] : memref<8x1408xf32, #tpu.memory_space<vmem>>, vector<8x1024xf32>
    %c112_163 = arith.constant 112 : index
    %c0_164 = arith.constant 0 : index
    %127 = vector.load %arg17[%c112_163, %c0_164] : memref<200x1024xf32, #tpu.memory_space<vmem>>, vector<8x1024xf32>
    tpu.vector_store %arg17[%c112_163, %c0_164], %126 {strides = array<i32>} : memref<200x1024xf32, #tpu.memory_space<vmem>>, vector<8x1024xf32>,
    %c0_165 = arith.constant 0 : index
    %c192_166 = arith.constant 192 : index
    %128 = vector.load %arg16[%c0_165, %c192_166] : memref<8x1408xf32, #tpu.memory_space<vmem>>, vector<8x1024xf32>
    %c120_167 = arith.constant 120 : index
    %c0_168 = arith.constant 0 : index
    %129 = vector.load %arg17[%c120_167, %c0_168] : memref<200x1024xf32, #tpu.memory_space<vmem>>, vector<8x1024xf32>
    tpu.vector_store %arg17[%c120_167, %c0_168], %128 {strides = array<i32>} : memref<200x1024xf32, #tpu.memory_space<vmem>>, vector<8x1024xf32>,
    %c0_169 = arith.constant 0 : index
    %c194 = arith.constant 194 : index
    %130 = vector.load %arg16[%c0_169, %c194] : memref<8x1408xf32, #tpu.memory_space<vmem>>, vector<8x1024xf32>
    %c128_170 = arith.constant 128 : index
    %c0_171 = arith.constant 0 : index
    %131 = vector.load %arg17[%c128_170, %c0_171] : memref<200x1024xf32, #tpu.memory_space<vmem>>, vector<8x1024xf32>
    tpu.vector_store %arg17[%c128_170, %c0_171], %130 {strides = array<i32>} : memref<200x1024xf32, #tpu.memory_space<vmem>>, vector<8x1024xf32>,
    %c0_172 = arith.constant 0 : index
    %c196 = arith.constant 196 : index
    %132 = vector.load %arg16[%c0_172, %c196] : memref<8x1408xf32, #tpu.memory_space<vmem>>, vector<8x1024xf32>
    %c136_173 = arith.constant 136 : index
    %c0_174 = arith.constant 0 : index
    %133 = vector.load %arg17[%c136_173, %c0_174] : memref<200x1024xf32, #tpu.memory_space<vmem>>, vector<8x1024xf32>
    tpu.vector_store %arg17[%c136_173, %c0_174], %132 {strides = array<i32>} : memref<200x1024xf32, #tpu.memory_space<vmem>>, vector<8x1024xf32>,
    %c0_175 = arith.constant 0 : index
    %c198 = arith.constant 198 : index
    %134 = vector.load %arg16[%c0_175, %c198] : memref<8x1408xf32, #tpu.memory_space<vmem>>, vector<8x1024xf32>
    %c144_176 = arith.constant 144 : index
    %c0_177 = arith.constant 0 : index
    %135 = vector.load %arg17[%c144_176, %c0_177] : memref<200x1024xf32, #tpu.memory_space<vmem>>, vector<8x1024xf32>
    tpu.vector_store %arg17[%c144_176, %c0_177], %134 {strides = array<i32>} : memref<200x1024xf32, #tpu.memory_space<vmem>>, vector<8x1024xf32>,
    %c0_178 = arith.constant 0 : index
    %c200 = arith.constant 200 : index
    %136 = vector.load %arg16[%c0_178, %c200] : memref<8x1408xf32, #tpu.memory_space<vmem>>, vector<8x1024xf32>
    %c152_179 = arith.constant 152 : index
    %c0_180 = arith.constant 0 : index
    %137 = vector.load %arg17[%c152_179, %c0_180] : memref<200x1024xf32, #tpu.memory_space<vmem>>, vector<8x1024xf32>
    tpu.vector_store %arg17[%c152_179, %c0_180], %136 {strides = array<i32>} : memref<200x1024xf32, #tpu.memory_space<vmem>>, vector<8x1024xf32>,
    %c0_181 = arith.constant 0 : index
    %c256 = arith.constant 256 : index
    %138 = vector.load %arg16[%c0_181, %c256] : memref<8x1408xf32, #tpu.memory_space<vmem>>, vector<8x1024xf32>
    %c160_182 = arith.constant 160 : index
    %c0_183 = arith.constant 0 : index
    %139 = vector.load %arg17[%c160_182, %c0_183] : memref<200x1024xf32, #tpu.memory_space<vmem>>, vector<8x1024xf32>
    tpu.vector_store %arg17[%c160_182, %c0_183], %138 {strides = array<i32>} : memref<200x1024xf32, #tpu.memory_space<vmem>>, vector<8x1024xf32>,
    %c0_184 = arith.constant 0 : index
    %c258 = arith.constant 258 : index
    %140 = vector.load %arg16[%c0_184, %c258] : memref<8x1408xf32, #tpu.memory_space<vmem>>, vector<8x1024xf32>
    %c168_185 = arith.constant 168 : index
    %c0_186 = arith.constant 0 : index
    %141 = vector.load %arg17[%c168_185, %c0_186] : memref<200x1024xf32, #tpu.memory_space<vmem>>, vector<8x1024xf32>
    tpu.vector_store %arg17[%c168_185, %c0_186], %140 {strides = array<i32>} : memref<200x1024xf32, #tpu.memory_space<vmem>>, vector<8x1024xf32>,
    %c0_187 = arith.constant 0 : index
    %c260 = arith.constant 260 : index
    %142 = vector.load %arg16[%c0_187, %c260] : memref<8x1408xf32, #tpu.memory_space<vmem>>, vector<8x1024xf32>
    %c176_188 = arith.constant 176 : index
    %c0_189 = arith.constant 0 : index
    %143 = vector.load %arg17[%c176_188, %c0_189] : memref<200x1024xf32, #tpu.memory_space<vmem>>, vector<8x1024xf32>
    tpu.vector_store %arg17[%c176_188, %c0_189], %142 {strides = array<i32>} : memref<200x1024xf32, #tpu.memory_space<vmem>>, vector<8x1024xf32>,
    %c0_190 = arith.constant 0 : index
    %c262 = arith.constant 262 : index
    %144 = vector.load %arg16[%c0_190, %c262] : memref<8x1408xf32, #tpu.memory_space<vmem>>, vector<8x1024xf32>
    %c184_191 = arith.constant 184 : index
    %c0_192 = arith.constant 0 : index
    %145 = vector.load %arg17[%c184_191, %c0_192] : memref<200x1024xf32, #tpu.memory_space<vmem>>, vector<8x1024xf32>
    tpu.vector_store %arg17[%c184_191, %c0_192], %144 {strides = array<i32>} : memref<200x1024xf32, #tpu.memory_space<vmem>>, vector<8x1024xf32>,
    %c0_193 = arith.constant 0 : index
    %c264 = arith.constant 264 : index
    %146 = vector.load %arg16[%c0_193, %c264] : memref<8x1408xf32, #tpu.memory_space<vmem>>, vector<8x1024xf32>
    %c192_194 = arith.constant 192 : index
    %c0_195 = arith.constant 0 : index
    %147 = vector.load %arg17[%c192_194, %c0_195] : memref<200x1024xf32, #tpu.memory_space<vmem>>, vector<8x1024xf32>
    tpu.vector_store %arg17[%c192_194, %c0_195], %146 {strides = array<i32>} : memref<200x1024xf32, #tpu.memory_space<vmem>>, vector<8x1024xf32>,
    %c0_196 = arith.constant 0 : index
    %c0_197 = arith.constant 0 : index
    %148 = vector.load %arg4[%c0_196, %c0_197] : memref<16x200xf32, #tpu.memory_space<vmem>>, vector<16x200xf32>
    %c0_198 = arith.constant 0 : index
    %c0_199 = arith.constant 0 : index
    %149 = vector.load %arg17[%c0_198, %c0_199] : memref<200x1024xf32, #tpu.memory_space<vmem>>, vector<200x1024xf32>
    %cst_200 = arith.constant dense<0.000000e+00> : vector<16x1024xf32>
    %150 = tpu.matmul %148, %149, %cst_200 {dimension_numbers = #tpu.dot_dimension_numbers<[1], [0], [0], [1], [0, 0, 1, 1], [], []>} : vector<16x200xf32>, vector<200x1024xf32>, vector<16x1024xf32> -> vector<16x1024xf32>
    %c0_201 = arith.constant 0 : index
    %c0_202 = arith.constant 0 : index
    %151 = vector.load %arg5[%c0_201, %c0_202] : memref<16x1xf32, #tpu.memory_space<vmem>>, vector<16x1xf32>
    %152 = vector.broadcast %151 : vector<16x1xf32> to vector<16x1024xf32>
    %153 = arith.addf %150, %152 : vector<16x1024xf32>
    %cst_203 = arith.constant 0.000000e+00 : f32
    %154 = vector.broadcast %cst_203 : f32 to vector<16x1024xf32>
    %155 = arith.maximumf %153, %154 : vector<16x1024xf32>
    %c0_204 = arith.constant 0 : index
    %c0_205 = arith.constant 0 : index
    %156 = vector.load %arg18[%c0_204, %c0_205] : memref<16x1408xf32, #tpu.memory_space<vmem>>, vector<16x1024xf32>
    tpu.vector_store %arg18[%c0_204, %c0_205], %155 {strides = array<i32>} : memref<16x1408xf32, #tpu.memory_space<vmem>>, vector<16x1024xf32>,
    %c0_206 = arith.constant 0 : index
    %c0_207 = arith.constant 0 : index
    %157 = vector.load %arg18[%c0_206, %c0_207] : memref<16x1408xf32, #tpu.memory_space<vmem>>, vector<16x1024xf32>
    %c0_208 = arith.constant 0 : index
    %c2_209 = arith.constant 2 : index
    %158 = vector.load %arg18[%c0_208, %c2_209] : memref<16x1408xf32, #tpu.memory_space<vmem>>, vector<16x1024xf32>
    %159 = arith.maximumf %157, %158 : vector<16x1024xf32>
    %c0_210 = arith.constant 0 : index
    %c64_211 = arith.constant 64 : index
    %160 = vector.load %arg18[%c0_210, %c64_211] : memref<16x1408xf32, #tpu.memory_space<vmem>>, vector<16x1024xf32>
    %c0_212 = arith.constant 0 : index
    %c66_213 = arith.constant 66 : index
    %161 = vector.load %arg18[%c0_212, %c66_213] : memref<16x1408xf32, #tpu.memory_space<vmem>>, vector<16x1024xf32>
    %162 = arith.maximumf %160, %161 : vector<16x1024xf32>
    %163 = arith.maximumf %159, %162 : vector<16x1024xf32>
    %c0_214 = arith.constant 0 : index
    %c0_215 = arith.constant 0 : index
    %164 = vector.load %arg6[%c0_214, %c0_215] : memref<1024x25xf32, #tpu.memory_space<vmem>>, vector<1024x25xf32>
    %cst_216 = arith.constant dense<0.000000e+00> : vector<16x25xf32>
    %165 = tpu.matmul %163, %164, %cst_216 {dimension_numbers = #tpu.dot_dimension_numbers<[1], [0], [0], [1], [0, 0, 1, 1], [], []>} : vector<16x1024xf32>, vector<1024x25xf32>, vector<16x25xf32> -> vector<16x25xf32>
    %166 = vector.extract_strided_slice %165 {offsets = [0, 0], sizes = [1, 25], strides = [1, 1]} : vector<16x25xf32> to vector<1x25xf32>
    %c0_217 = arith.constant 0 : index
    %c0_218 = arith.constant 0 : index
    %167 = vector.load %arg19[%c0_217, %c0_218] : memref<1x400xf32, #tpu.memory_space<vmem>>, vector<1x25xf32>
    tpu.vector_store %arg19[%c0_217, %c0_218], %166 {strides = array<i32>} : memref<1x400xf32, #tpu.memory_space<vmem>>, vector<1x25xf32>,
    %168 = vector.extract_strided_slice %165 {offsets = [1, 0], sizes = [1, 25], strides = [1, 1]} : vector<16x25xf32> to vector<1x25xf32>
    %c0_219 = arith.constant 0 : index
    %c25 = arith.constant 25 : index
    %169 = vector.load %arg19[%c0_219, %c25] : memref<1x400xf32, #tpu.memory_space<vmem>>, vector<1x25xf32>
    tpu.vector_store %arg19[%c0_219, %c25], %168 {strides = array<i32>} : memref<1x400xf32, #tpu.memory_space<vmem>>, vector<1x25xf32>,
    %170 = vector.extract_strided_slice %165 {offsets = [2, 0], sizes = [1, 25], strides = [1, 1]} : vector<16x25xf32> to vector<1x25xf32>
    %c0_220 = arith.constant 0 : index
    %c50 = arith.constant 50 : index
    %171 = vector.load %arg19[%c0_220, %c50] : memref<1x400xf32, #tpu.memory_space<vmem>>, vector<1x25xf32>
    tpu.vector_store %arg19[%c0_220, %c50], %170 {strides = array<i32>} : memref<1x400xf32, #tpu.memory_space<vmem>>, vector<1x25xf32>,
    %172 = vector.extract_strided_slice %165 {offsets = [3, 0], sizes = [1, 25], strides = [1, 1]} : vector<16x25xf32> to vector<1x25xf32>
    %c0_221 = arith.constant 0 : index
    %c75 = arith.constant 75 : index
    %173 = vector.load %arg19[%c0_221, %c75] : memref<1x400xf32, #tpu.memory_space<vmem>>, vector<1x25xf32>
    tpu.vector_store %arg19[%c0_221, %c75], %172 {strides = array<i32>} : memref<1x400xf32, #tpu.memory_space<vmem>>, vector<1x25xf32>,
    %174 = vector.extract_strided_slice %165 {offsets = [4, 0], sizes = [1, 25], strides = [1, 1]} : vector<16x25xf32> to vector<1x25xf32>
    %c0_222 = arith.constant 0 : index
    %c100_223 = arith.constant 100 : index
    %175 = vector.load %arg19[%c0_222, %c100_223] : memref<1x400xf32, #tpu.memory_space<vmem>>, vector<1x25xf32>
    tpu.vector_store %arg19[%c0_222, %c100_223], %174 {strides = array<i32>} : memref<1x400xf32, #tpu.memory_space<vmem>>, vector<1x25xf32>,
    %176 = vector.extract_strided_slice %165 {offsets = [5, 0], sizes = [1, 25], strides = [1, 1]} : vector<16x25xf32> to vector<1x25xf32>
    %c0_224 = arith.constant 0 : index
    %c125 = arith.constant 125 : index
    %177 = vector.load %arg19[%c0_224, %c125] : memref<1x400xf32, #tpu.memory_space<vmem>>, vector<1x25xf32>
    tpu.vector_store %arg19[%c0_224, %c125], %176 {strides = array<i32>} : memref<1x400xf32, #tpu.memory_space<vmem>>, vector<1x25xf32>,
    %178 = vector.extract_strided_slice %165 {offsets = [6, 0], sizes = [1, 25], strides = [1, 1]} : vector<16x25xf32> to vector<1x25xf32>
    %c0_225 = arith.constant 0 : index
    %c150 = arith.constant 150 : index
    %179 = vector.load %arg19[%c0_225, %c150] : memref<1x400xf32, #tpu.memory_space<vmem>>, vector<1x25xf32>
    tpu.vector_store %arg19[%c0_225, %c150], %178 {strides = array<i32>} : memref<1x400xf32, #tpu.memory_space<vmem>>, vector<1x25xf32>,
    %180 = vector.extract_strided_slice %165 {offsets = [7, 0], sizes = [1, 25], strides = [1, 1]} : vector<16x25xf32> to vector<1x25xf32>
    %c0_226 = arith.constant 0 : index
    %c175 = arith.constant 175 : index
    %181 = vector.load %arg19[%c0_226, %c175] : memref<1x400xf32, #tpu.memory_space<vmem>>, vector<1x25xf32>
    tpu.vector_store %arg19[%c0_226, %c175], %180 {strides = array<i32>} : memref<1x400xf32, #tpu.memory_space<vmem>>, vector<1x25xf32>,
    %182 = vector.extract_strided_slice %165 {offsets = [8, 0], sizes = [1, 25], strides = [1, 1]} : vector<16x25xf32> to vector<1x25xf32>
    %c0_227 = arith.constant 0 : index
    %c200_228 = arith.constant 200 : index
    %183 = vector.load %arg19[%c0_227, %c200_228] : memref<1x400xf32, #tpu.memory_space<vmem>>, vector<1x25xf32>
    tpu.vector_store %arg19[%c0_227, %c200_228], %182 {strides = array<i32>} : memref<1x400xf32, #tpu.memory_space<vmem>>, vector<1x25xf32>,
    %184 = vector.extract_strided_slice %165 {offsets = [9, 0], sizes = [1, 25], strides = [1, 1]} : vector<16x25xf32> to vector<1x25xf32>
    %c0_229 = arith.constant 0 : index
    %c225 = arith.constant 225 : index
    %185 = vector.load %arg19[%c0_229, %c225] : memref<1x400xf32, #tpu.memory_space<vmem>>, vector<1x25xf32>
    tpu.vector_store %arg19[%c0_229, %c225], %184 {strides = array<i32>} : memref<1x400xf32, #tpu.memory_space<vmem>>, vector<1x25xf32>,
    %186 = vector.extract_strided_slice %165 {offsets = [10, 0], sizes = [1, 25], strides = [1, 1]} : vector<16x25xf32> to vector<1x25xf32>
    %c0_230 = arith.constant 0 : index
    %c250 = arith.constant 250 : index
    %187 = vector.load %arg19[%c0_230, %c250] : memref<1x400xf32, #tpu.memory_space<vmem>>, vector<1x25xf32>
    tpu.vector_store %arg19[%c0_230, %c250], %186 {strides = array<i32>} : memref<1x400xf32, #tpu.memory_space<vmem>>, vector<1x25xf32>,
    %188 = vector.extract_strided_slice %165 {offsets = [11, 0], sizes = [1, 25], strides = [1, 1]} : vector<16x25xf32> to vector<1x25xf32>
    %c0_231 = arith.constant 0 : index
    %c275 = arith.constant 275 : index
    %189 = vector.load %arg19[%c0_231, %c275] : memref<1x400xf32, #tpu.memory_space<vmem>>, vector<1x25xf32>
    tpu.vector_store %arg19[%c0_231, %c275], %188 {strides = array<i32>} : memref<1x400xf32, #tpu.memory_space<vmem>>, vector<1x25xf32>,
    %190 = vector.extract_strided_slice %165 {offsets = [12, 0], sizes = [1, 25], strides = [1, 1]} : vector<16x25xf32> to vector<1x25xf32>
    %c0_232 = arith.constant 0 : index
    %c300 = arith.constant 300 : index
    %191 = vector.load %arg19[%c0_232, %c300] : memref<1x400xf32, #tpu.memory_space<vmem>>, vector<1x25xf32>
    tpu.vector_store %arg19[%c0_232, %c300], %190 {strides = array<i32>} : memref<1x400xf32, #tpu.memory_space<vmem>>, vector<1x25xf32>,
    %192 = vector.extract_strided_slice %165 {offsets = [13, 0], sizes = [1, 25], strides = [1, 1]} : vector<16x25xf32> to vector<1x25xf32>
    %c0_233 = arith.constant 0 : index
    %c325 = arith.constant 325 : index
    %193 = vector.load %arg19[%c0_233, %c325] : memref<1x400xf32, #tpu.memory_space<vmem>>, vector<1x25xf32>
    tpu.vector_store %arg19[%c0_233, %c325], %192 {strides = array<i32>} : memref<1x400xf32, #tpu.memory_space<vmem>>, vector<1x25xf32>,
    %194 = vector.extract_strided_slice %165 {offsets = [14, 0], sizes = [1, 25], strides = [1, 1]} : vector<16x25xf32> to vector<1x25xf32>
    %c0_234 = arith.constant 0 : index
    %c350 = arith.constant 350 : index
    %195 = vector.load %arg19[%c0_234, %c350] : memref<1x400xf32, #tpu.memory_space<vmem>>, vector<1x25xf32>
    tpu.vector_store %arg19[%c0_234, %c350], %194 {strides = array<i32>} : memref<1x400xf32, #tpu.memory_space<vmem>>, vector<1x25xf32>,
    %196 = vector.extract_strided_slice %165 {offsets = [15, 0], sizes = [1, 25], strides = [1, 1]} : vector<16x25xf32> to vector<1x25xf32>
    %c0_235 = arith.constant 0 : index
    %c375 = arith.constant 375 : index
    %197 = vector.load %arg19[%c0_235, %c375] : memref<1x400xf32, #tpu.memory_space<vmem>>, vector<1x25xf32>
    tpu.vector_store %arg19[%c0_235, %c375], %196 {strides = array<i32>} : memref<1x400xf32, #tpu.memory_space<vmem>>, vector<1x25xf32>,
    %c0_236 = arith.constant 0 : index
    %c0_237 = arith.constant 0 : index
    %198 = vector.load %arg19[%c0_236, %c0_237] : memref<1x400xf32, #tpu.memory_space<vmem>>, vector<1x400xf32>
    %c0_238 = arith.constant 0 : index
    %c0_239 = arith.constant 0 : index
    %199 = vector.load %arg7[%c0_238, %c0_239] : memref<400x120xf32, #tpu.memory_space<vmem>>, vector<400x120xf32>
    %cst_240 = arith.constant dense<0.000000e+00> : vector<1x120xf32>
    %200 = tpu.matmul %198, %199, %cst_240 {dimension_numbers = #tpu.dot_dimension_numbers<[1], [0], [0], [1], [0, 0, 1, 1], [], []>} : vector<1x400xf32>, vector<400x120xf32>, vector<1x120xf32> -> vector<1x120xf32>
    %c0_241 = arith.constant 0 : index
    %c0_242 = arith.constant 0 : index
    %201 = vector.load %arg8[%c0_241, %c0_242] : memref<1x120xf32, #tpu.memory_space<vmem>>, vector<1x120xf32>
    %202 = arith.addf %200, %201 : vector<1x120xf32>
    %cst_243 = arith.constant 0.000000e+00 : f32
    %203 = vector.broadcast %cst_243 : f32 to vector<1x120xf32>
    %204 = arith.maximumf %202, %203 : vector<1x120xf32>
    %c0_244 = arith.constant 0 : index
    %c0_245 = arith.constant 0 : index
    %205 = vector.load %arg9[%c0_244, %c0_245] : memref<120x84xf32, #tpu.memory_space<vmem>>, vector<120x84xf32>
    %cst_246 = arith.constant dense<0.000000e+00> : vector<1x84xf32>
    %206 = tpu.matmul %204, %205, %cst_246 {dimension_numbers = #tpu.dot_dimension_numbers<[1], [0], [0], [1], [0, 0, 1, 1], [], []>} : vector<1x120xf32>, vector<120x84xf32>, vector<1x84xf32> -> vector<1x84xf32>
    %c0_247 = arith.constant 0 : index
    %c0_248 = arith.constant 0 : index
    %207 = vector.load %arg10[%c0_247, %c0_248] : memref<1x84xf32, #tpu.memory_space<vmem>>, vector<1x84xf32>
    %208 = arith.addf %206, %207 : vector<1x84xf32>
    %cst_249 = arith.constant 0.000000e+00 : f32
    %209 = vector.broadcast %cst_249 : f32 to vector<1x84xf32>
    %210 = arith.maximumf %208, %209 : vector<1x84xf32>
    %c0_250 = arith.constant 0 : index
    %c0_251 = arith.constant 0 : index
    %211 = vector.load %arg11[%c0_250, %c0_251] : memref<84x10xf32, #tpu.memory_space<vmem>>, vector<84x10xf32>
    %cst_252 = arith.constant dense<0.000000e+00> : vector<1x10xf32>
    %212 = tpu.matmul %210, %211, %cst_252 {dimension_numbers = #tpu.dot_dimension_numbers<[1], [0], [0], [1], [0, 0, 1, 1], [], []>} : vector<1x84xf32>, vector<84x10xf32>, vector<1x10xf32> -> vector<1x10xf32>
    %c0_253 = arith.constant 0 : index
    %c0_254 = arith.constant 0 : index
    %213 = vector.load %arg12[%c0_253, %c0_254] : memref<1x10xf32, #tpu.memory_space<vmem>>, vector<1x10xf32>
    %214 = arith.addf %212, %213 : vector<1x10xf32>
    %c0_255 = arith.constant 0 : index
    %c0_256 = arith.constant 0 : index
    %c0_257 = arith.constant 0 : index
    %215 = vector.load %arg13[%c0_255, %c0_256, %c0_257] : memref<1x1x10xf32, #tpu.memory_space<vmem>>, vector<1x1x10xf32>
    %216 = vector.shape_cast %215 : vector<1x1x10xf32> to vector<1x10xf32>
    %217 = vector.shape_cast %214 : vector<1x10xf32> to vector<1x1x10xf32>
    tpu.vector_store %arg13[%c0_255, %c0_256, %c0_257], %217 {strides = array<i32>} : memref<1x1x10xf32, #tpu.memory_space<vmem>>, vector<1x1x10xf32>,
    return
  }
  func.func @transform_0(%arg0: i32) -> (i32, i32, i32) {
    %c0_i32 = arith.constant 0 : i32
    %c0_i32_0 = arith.constant 0 : i32
    %c0_i32_1 = arith.constant 0 : i32
    return %arg0, %c0_i32, %c0_i32_0 : i32, i32, i32
  }
  func.func @transform_1(%arg0: i32) -> (i32, i32) {
    %c0_i32 = arith.constant 0 : i32
    %c0_i32_0 = arith.constant 0 : i32
    %c0_i32_1 = arith.constant 0 : i32
    return %c0_i32, %c0_i32_0 : i32, i32
  }
  func.func @transform_2(%arg0: i32) -> (i32, i32) {
    %c0_i32 = arith.constant 0 : i32
    %c0_i32_0 = arith.constant 0 : i32
    %c0_i32_1 = arith.constant 0 : i32
    return %c0_i32, %c0_i32_0 : i32, i32
  }
  func.func @transform_3(%arg0: i32) -> (i32, i32) {
    %c0_i32 = arith.constant 0 : i32
    %c0_i32_0 = arith.constant 0 : i32
    %c0_i32_1 = arith.constant 0 : i32
    return %c0_i32, %c0_i32_0 : i32, i32
  }
  func.func @transform_4(%arg0: i32) -> (i32, i32) {
    %c0_i32 = arith.constant 0 : i32
    %c0_i32_0 = arith.constant 0 : i32
    %c0_i32_1 = arith.constant 0 : i32
    return %c0_i32, %c0_i32_0 : i32, i32
  }
  func.func @transform_5(%arg0: i32) -> (i32, i32) {
    %c0_i32 = arith.constant 0 : i32
    %c0_i32_0 = arith.constant 0 : i32
    %c0_i32_1 = arith.constant 0 : i32
    return %c0_i32, %c0_i32_0 : i32, i32
  }
  func.func @transform_6(%arg0: i32) -> (i32, i32) {
    %c0_i32 = arith.constant 0 : i32
    %c0_i32_0 = arith.constant 0 : i32
    %c0_i32_1 = arith.constant 0 : i32
    return %c0_i32, %c0_i32_0 : i32, i32
  }
  func.func @transform_7(%arg0: i32) -> (i32, i32) {
    %c0_i32 = arith.constant 0 : i32
    %c0_i32_0 = arith.constant 0 : i32
    %c0_i32_1 = arith.constant 0 : i32
    return %c0_i32, %c0_i32_0 : i32, i32
  }
  func.func @transform_8(%arg0: i32) -> (i32, i32) {
    %c0_i32 = arith.constant 0 : i32
    %c0_i32_0 = arith.constant 0 : i32
    %c0_i32_1 = arith.constant 0 : i32
    return %c0_i32, %c0_i32_0 : i32, i32
  }
  func.func @transform_9(%arg0: i32) -> (i32, i32) {
    %c0_i32 = arith.constant 0 : i32
    %c0_i32_0 = arith.constant 0 : i32
    %c0_i32_1 = arith.constant 0 : i32
    return %c0_i32, %c0_i32_0 : i32, i32
  }
  func.func @transform_10(%arg0: i32) -> (i32, i32) {
    %c0_i32 = arith.constant 0 : i32
    %c0_i32_0 = arith.constant 0 : i32
    %c0_i32_1 = arith.constant 0 : i32
    return %c0_i32, %c0_i32_0 : i32, i32
  }
  func.func @transform_11(%arg0: i32) -> (i32, i32) {
    %c0_i32 = arith.constant 0 : i32
    %c0_i32_0 = arith.constant 0 : i32
    %c0_i32_1 = arith.constant 0 : i32
    return %c0_i32, %c0_i32_0 : i32, i32
  }
  func.func @transform_12(%arg0: i32) -> (i32, i32, i32) {
    %c0_i32 = arith.constant 0 : i32
    %c0_i32_0 = arith.constant 0 : i32
    %c0_i32_1 = arith.constant 0 : i32
    return %arg0, %c0_i32, %c0_i32_0 : i32, i32, i32
  }
}

</mosaic_0001>

<llo_original>
// kernel: lenet5_forward.1
$region0: #{lenet5_forward.1}
  #allocation0 [shape = 'u32[]', space=smem, size = 0x4, offset = 0x4, fixed_abs, tag = 'smem constant byte address 0x4 - core index']
  #allocation1 [shape = 'u32[72,128]{1,0:T(1,128)}', space=vmem, size = 0x9000, scoped, tag = 'internal scratch']
  #allocation2 [shape = 'f32[200,1024]{1,0:T(8,128)}', space=vmem, size = 0xc8000, scoped, tag = 'scratch operand']
  #allocation3 [shape = 'f32[8,1408]{1,0:T(8,128)}', space=vmem, size = 0xb000, scoped, tag = 'scratch operand']
  #allocation4 [shape = 'f32[8,1408]{1,0:T(8,128)}', space=vmem, size = 0xb000, scoped, tag = 'scratch operand']
  #allocation5 [shape = 'f32[200,1024]{1,0:T(8,128)}', space=vmem, size = 0xc8000, scoped, tag = 'scratch operand']
  #allocation6 [shape = 'f32[16,1408]{1,0:T(8,128)}', space=vmem, size = 0x16000, scoped, tag = 'scratch operand']
  #allocation7 [shape = 'f32[1,400]{1,0:T(1,128)}', space=vmem, size = 0x800, scoped, tag = 'scratch operand']
  %s0 = inlined_call_operand.vmem [shape: f32[2,8,1408], index: 0, kind: input, shape index: {}]
  %s1 = inlined_call_operand.vmem [shape: f32[6,200], index: 1, kind: input, shape index: {}]
  %s2 = inlined_call_operand.vmem [shape: f32[6,1], index: 2, kind: input, shape index: {}]
  %s3 = inlined_call_operand.vmem [shape: f32[16,200], index: 3, kind: input, shape index: {}]
  %s4 = inlined_call_operand.vmem [shape: f32[16,1], index: 4, kind: input, shape index: {}]
  %s5 = inlined_call_operand.vmem [shape: f32[1024,25], index: 5, kind: input, shape index: {}]
  %s6 = inlined_call_operand.vmem [shape: f32[400,120], index: 6, kind: input, shape index: {}]
  %s7 = inlined_call_operand.vmem [shape: f32[1,120], index: 7, kind: input, shape index: {}]
  %s8 = inlined_call_operand.vmem [shape: f32[120,84], index: 8, kind: input, shape index: {}]
  %s9 = inlined_call_operand.vmem [shape: f32[1,84], index: 9, kind: input, shape index: {}]
  %s10 = inlined_call_operand.vmem [shape: f32[84,10], index: 10, kind: input, shape index: {}]
  %s11 = inlined_call_operand.vmem [shape: f32[1,10], index: 11, kind: input, shape index: {}]
  %s12 = inlined_call_operand.hbm [shape: f32[2,1,10], index: 12, kind: output, shape index: {}]
  %s13 = sld [smem:[#allocation0]]
  $region81: #{lenet5_forward.1} parent=0
    _
  %s15 = ssub.s32 1, %s13
  %s16 = scalar_select 0, %s15, %s13
  $region1: #{lenet5_forward.1} parent=0
    #allocation8 [shape = 'u8[1024]{0}', space=vmem, size = 0x400, scoped, tag = 'output window, operand 0']
    #allocation9 [shape = 's32[2]{0}', space=sflag, size = 0x8, scoped, tag = 'scoped memory for lenet5_forward.1']
    %17 = vsyncpa [#allocation9], 0
    %s18 = scalar_lea.sflag [#allocation9], 1
    %19 = vsyncpa %s18, 0
    loop: start=0, step=1, limit=4
    $region2: #{lenet5_forward.1} parent=1 // loop_pre_header
      _
    $region3: #{lenet5_forward.1} parent=1 // loop_header
      %s21 = sphi 0, %s25
      %p22 = scmp.ge.s32.totalorder %s21, 4
      %s31 = sphi 0, %s33
      %s34 = sphi 0, %s31
      %s35 = sphi 0, %s34
      %s51 = sphi 0, %s35
      %s55 = sphi 0, %s55
      %s57 = sphi 0, %s55
      %s58 = sphi 0, %s57
      %s72 = sphi 0, %s58
      %s76 = sphi 0, %s76
      %s78 = sphi 0, %s76
      %s79 = sphi 0, %s78
      %s93 = sphi 0, %s79
      %s97 = sphi 0, %s97
      %s99 = sphi 0, %s97
      %s100 = sphi 0, %s99
      %s114 = sphi 0, %s100
      %s118 = sphi 0, %s118
      %s120 = sphi 0, %s118
      %s121 = sphi 0, %s120
      %s135 = sphi 0, %s121
      %s139 = sphi 0, %s139
      %s141 = sphi 0, %s139
      %s142 = sphi 0, %s141
      %s156 = sphi 0, %s142
      %s160 = sphi 0, %s160
      %s162 = sphi 0, %s160
      %s163 = sphi 0, %s162
      %s177 = sphi 0, %s163
      %s181 = sphi 0, %s181
      %s183 = sphi 0, %s181
      %s184 = sphi 0, %s183
      %s198 = sphi 0, %s184
      %s202 = sphi 0, %s202
      %s204 = sphi 0, %s202
      %s205 = sphi 0, %s204
      %s219 = sphi 0, %s205
      %s223 = sphi 0, %s223
      %s225 = sphi 0, %s223
      %s226 = sphi 0, %s225
      %s240 = sphi 0, %s226
      %s244 = sphi 0, %s244
      %s246 = sphi 0, %s244
      %s247 = sphi 0, %s246
      %s261 = sphi 0, %s247
      %s265 = sphi 0, %s265
      %s267 = sphi 0, %s265
      %s268 = sphi 0, %s267
      %s282 = sphi 0, %s268
      %s288 = sphi 0, %s290
      %s291 = sphi 0, %s288
      %s292 = sphi 0, %s291
      %s308 = sphi 0, %s292
    $region4: #{lenet5_forward.1} parent=1 // loop_header_branch
      %24 = sbr.rel (%p22) target = $region8
    $region5: #{lenet5_forward.1} parent=1 // loop_body
      %s26 = ssub.s32 %s21, 1
      %s27 = ssub.s32 %s21, 2
      %s28 = sadd.s32 %s21, 1
      %s29 = ssub.s32 %s21, %s28
      %p30 = scmp.eq.s32.totalorder %s29, 0
      %s32 = sadd.s32 %s31, 1
      %s33 = scalar_select %p30, %s31, %s32
      %p36 = pneg %p30
      %p37 = scmp.eq.s32.totalorder %s21, 1
      %p38 = por %p36, %p37
      %p39 = scmp.ne.s32.totalorder %s31, %s34
      %p40 = scmp.eq.s32.totalorder %s21, 0
      %p41 = por %p39, %p40
      %p42 = scmp.ne.s32.totalorder %s31, %s34
      %p43 = scmp.eq.s32.totalorder %s26, 1
      %p44 = por %p42, %p43
      %p45 = scmp.ne.s32.totalorder %s34, %s35
      %p46 = scmp.eq.s32.totalorder %s26, 0
      %p47 = por %p45, %p46
      %p48 = scmp.ne.s32.totalorder %s34, %s35
      %p49 = scmp.eq.s32.totalorder %s27, 1
      %p50 = por %p48, %p49
      %p52 = scmp.ne.s32.totalorder %s35, %s51
      %p53 = scmp.eq.s32.totalorder %s27, 0
      %p54 = por %p52, %p53
      %s56 = sadd.s32 %s55, 1
      %p59 = scmp.eq.s32.totalorder %s21, 1
      %p60 = scmp.ne.s32.totalorder %s55, %s57
      %p61 = scmp.eq.s32.totalorder %s21, 0
      %p62 = por %p60, %p61
      %p63 = scmp.ne.s32.totalorder %s55, %s57
      %p64 = scmp.eq.s32.totalorder %s26, 1
      %p65 = por %p63, %p64
      %p66 = scmp.ne.s32.totalorder %s57, %s58
      %p67 = scmp.eq.s32.totalorder %s26, 0
      %p68 = por %p66, %p67
      %p69 = scmp.ne.s32.totalorder %s57, %s58
      %p70 = scmp.eq.s32.totalorder %s27, 1
      %p71 = por %p69, %p70
      %p73 = scmp.ne.s32.totalorder %s58, %s72
      %p74 = scmp.eq.s32.totalorder %s27, 0
      %p75 = por %p73, %p74
      %s77 = sadd.s32 %s76, 1
      %p80 = scmp.eq.s32.totalorder %s21, 1
      %p81 = scmp.ne.s32.totalorder %s76, %s78
      %p82 = scmp.eq.s32.totalorder %s21, 0
      %p83 = por %p81, %p82
      %p84 = scmp.ne.s32.totalorder %s76, %s78
      %p85 = scmp.eq.s32.totalorder %s26, 1
      %p86 = por %p84, %p85
      %p87 = scmp.ne.s32.totalorder %s78, %s79
      %p88 = scmp.eq.s32.totalorder %s26, 0
      %p89 = por %p87, %p88
      %p90 = scmp.ne.s32.totalorder %s78, %s79
      %p91 = scmp.eq.s32.totalorder %s27, 1
      %p92 = por %p90, %p91
      %p94 = scmp.ne.s32.totalorder %s79, %s93
      %p95 = scmp.eq.s32.totalorder %s27, 0
      %p96 = por %p94, %p95
      %s98 = sadd.s32 %s97, 1
      %p101 = scmp.eq.s32.totalorder %s21, 1
      %p102 = scmp.ne.s32.totalorder %s97, %s99
      %p103 = scmp.eq.s32.totalorder %s21, 0
      %p104 = por %p102, %p103
      %p105 = scmp.ne.s32.totalorder %s97, %s99
      %p106 = scmp.eq.s32.totalorder %s26, 1
      %p107 = por %p105, %p106
      %p108 = scmp.ne.s32.totalorder %s99, %s100
      %p109 = scmp.eq.s32.totalorder %s26, 0
      %p110 = por %p108, %p109
      %p111 = scmp.ne.s32.totalorder %s99, %s100
      %p112 = scmp.eq.s32.totalorder %s27, 1
      %p113 = por %p111, %p112
      %p115 = scmp.ne.s32.totalorder %s100, %s114
      %p116 = scmp.eq.s32.totalorder %s27, 0
      %p117 = por %p115, %p116
      %s119 = sadd.s32 %s118, 1
      %p122 = scmp.eq.s32.totalorder %s21, 1
      %p123 = scmp.ne.s32.totalorder %s118, %s120
      %p124 = scmp.eq.s32.totalorder %s21, 0
      %p125 = por %p123, %p124
      %p126 = scmp.ne.s32.totalorder %s118, %s120
      %p127 = scmp.eq.s32.totalorder %s26, 1
      %p128 = por %p126, %p127
      %p129 = scmp.ne.s32.totalorder %s120, %s121
      %p130 = scmp.eq.s32.totalorder %s26, 0
      %p131 = por %p129, %p130
      %p132 = scmp.ne.s32.totalorder %s120, %s121
      %p133 = scmp.eq.s32.totalorder %s27, 1
      %p134 = por %p132, %p133
      %p136 = scmp.ne.s32.totalorder %s121, %s135
      %p137 = scmp.eq.s32.totalorder %s27, 0
      %p138 = por %p136, %p137
      %s140 = sadd.s32 %s139, 1
      %p143 = scmp.eq.s32.totalorder %s21, 1
      %p144 = scmp.ne.s32.totalorder %s139, %s141
      %p145 = scmp.eq.s32.totalorder %s21, 0
      %p146 = por %p144, %p145
      %p147 = scmp.ne.s32.totalorder %s139, %s141
      %p148 = scmp.eq.s32.totalorder %s26, 1
      %p149 = por %p147, %p148
      %p150 = scmp.ne.s32.totalorder %s141, %s142
      %p151 = scmp.eq.s32.totalorder %s26, 0
      %p152 = por %p150, %p151
      %p153 = scmp.ne.s32.totalorder %s141, %s142
      %p154 = scmp.eq.s32.totalorder %s27, 1
      %p155 = por %p153, %p154
      %p157 = scmp.ne.s32.totalorder %s142, %s156
      %p158 = scmp.eq.s32.totalorder %s27, 0
      %p159 = por %p157, %p158
      %s161 = sadd.s32 %s160, 1
      %p164 = scmp.eq.s32.totalorder %s21, 1
      %p165 = scmp.ne.s32.totalorder %s160, %s162
      %p166 = scmp.eq.s32.totalorder %s21, 0
      %p167 = por %p165, %p166
      %p168 = scmp.ne.s32.totalorder %s160, %s162
      %p169 = scmp.eq.s32.totalorder %s26, 1
      %p170 = por %p168, %p169
      %p171 = scmp.ne.s32.totalorder %s162, %s163
      %p172 = scmp.eq.s32.totalorder %s26, 0
      %p173 = por %p171, %p172
      %p174 = scmp.ne.s32.totalorder %s162, %s163
      %p175 = scmp.eq.s32.totalorder %s27, 1
      %p176 = por %p174, %p175
      %p178 = scmp.ne.s32.totalorder %s163, %s177
      %p179 = scmp.eq.s32.totalorder %s27, 0
      %p180 = por %p178, %p179
      %s182 = sadd.s32 %s181, 1
      %p185 = scmp.eq.s32.totalorder %s21, 1
      %p186 = scmp.ne.s32.totalorder %s181, %s183
      %p187 = scmp.eq.s32.totalorder %s21, 0
      %p188 = por %p186, %p187
      %p189 = scmp.ne.s32.totalorder %s181, %s183
      %p190 = scmp.eq.s32.totalorder %s26, 1
      %p191 = por %p189, %p190
      %p192 = scmp.ne.s32.totalorder %s183, %s184
      %p193 = scmp.eq.s32.totalorder %s26, 0
      %p194 = por %p192, %p193
      %p195 = scmp.ne.s32.totalorder %s183, %s184
      %p196 = scmp.eq.s32.totalorder %s27, 1
      %p197 = por %p195, %p196
      %p199 = scmp.ne.s32.totalorder %s184, %s198
      %p200 = scmp.eq.s32.totalorder %s27, 0
      %p201 = por %p199, %p200
      %s203 = sadd.s32 %s202, 1
      %p206 = scmp.eq.s32.totalorder %s21, 1
      %p207 = scmp.ne.s32.totalorder %s202, %s204
      %p208 = scmp.eq.s32.totalorder %s21, 0
      %p209 = por %p207, %p208
      %p210 = scmp.ne.s32.totalorder %s202, %s204
      %p211 = scmp.eq.s32.totalorder %s26, 1
      %p212 = por %p210, %p211
      %p213 = scmp.ne.s32.totalorder %s204, %s205
      %p214 = scmp.eq.s32.totalorder %s26, 0
      %p215 = por %p213, %p214
      %p216 = scmp.ne.s32.totalorder %s204, %s205
      %p217 = scmp.eq.s32.totalorder %s27, 1
      %p218 = por %p216, %p217
      %p220 = scmp.ne.s32.totalorder %s205, %s219
      %p221 = scmp.eq.s32.totalorder %s27, 0
      %p222 = por %p220, %p221
      %s224 = sadd.s32 %s223, 1
      %p227 = scmp.eq.s32.totalorder %s21, 1
      %p228 = scmp.ne.s32.totalorder %s223, %s225
      %p229 = scmp.eq.s32.totalorder %s21, 0
      %p230 = por %p228, %p229
      %p231 = scmp.ne.s32.totalorder %s223, %s225
      %p232 = scmp.eq.s32.totalorder %s26, 1
      %p233 = por %p231, %p232
      %p234 = scmp.ne.s32.totalorder %s225, %s226
      %p235 = scmp.eq.s32.totalorder %s26, 0
      %p236 = por %p234, %p235
      %p237 = scmp.ne.s32.totalorder %s225, %s226
      %p238 = scmp.eq.s32.totalorder %s27, 1
      %p239 = por %p237, %p238
      %p241 = scmp.ne.s32.totalorder %s226, %s240
      %p242 = scmp.eq.s32.totalorder %s27, 0
      %p243 = por %p241, %p242
      %s245 = sadd.s32 %s244, 1
      %p248 = scmp.eq.s32.totalorder %s21, 1
      %p249 = scmp.ne.s32.totalorder %s244, %s246
      %p250 = scmp.eq.s32.totalorder %s21, 0
      %p251 = por %p249, %p250
      %p252 = scmp.ne.s32.totalorder %s244, %s246
      %p253 = scmp.eq.s32.totalorder %s26, 1
      %p254 = por %p252, %p253
      %p255 = scmp.ne.s32.totalorder %s246, %s247
      %p256 = scmp.eq.s32.totalorder %s26, 0
      %p257 = por %p255, %p256
      %p258 = scmp.ne.s32.totalorder %s246, %s247
      %p259 = scmp.eq.s32.totalorder %s27, 1
      %p260 = por %p258, %p259
      %p262 = scmp.ne.s32.totalorder %s247, %s261
      %p263 = scmp.eq.s32.totalorder %s27, 0
      %p264 = por %p262, %p263
      %s266 = sadd.s32 %s265, 1
      %p269 = scmp.eq.s32.totalorder %s21, 1
      %p270 = scmp.ne.s32.totalorder %s265, %s267
      %p271 = scmp.eq.s32.totalorder %s21, 0
      %p272 = por %p270, %p271
      %p273 = scmp.ne.s32.totalorder %s265, %s267
      %p274 = scmp.eq.s32.totalorder %s26, 1
      %p275 = por %p273, %p274
      %p276 = scmp.ne.s32.totalorder %s267, %s268
      %p277 = scmp.eq.s32.totalorder %s26, 0
      %p278 = por %p276, %p277
      %p279 = scmp.ne.s32.totalorder %s267, %s268
      %p280 = scmp.eq.s32.totalorder %s27, 1
      %p281 = por %p279, %p280
      %p283 = scmp.ne.s32.totalorder %s268, %s282
      %p284 = scmp.eq.s32.totalorder %s27, 0
      %p285 = por %p283, %p284
      %s286 = ssub.s32 %s21, %s28
      %p287 = scmp.eq.s32.totalorder %s286, 0
      %s289 = sadd.s32 %s288, 1
      %s290 = scalar_select %p287, %s288, %s289
      %p293 = pneg %p287
      %p294 = scmp.eq.s32.totalorder %s21, 1
      %p295 = por %p293, %p294
      %p296 = scmp.ne.s32.totalorder %s288, %s291
      %p297 = scmp.eq.s32.totalorder %s21, 0
      %p298 = por %p296, %p297
      %p299 = scmp.ne.s32.totalorder %s288, %s291
      %p300 = scmp.eq.s32.totalorder %s26, 1
      %p301 = por %p299, %p300
      %p302 = scmp.ne.s32.totalorder %s291, %s292
      %p303 = scmp.eq.s32.totalorder %s26, 0
      %p304 = por %p302, %p303
      %p305 = scmp.ne.s32.totalorder %s291, %s292
      %p306 = scmp.eq.s32.totalorder %s27, 1
      %p307 = por %p305, %p306
      %p309 = scmp.ne.s32.totalorder %s292, %s308
      %p310 = scmp.eq.s32.totalorder %s27, 0
      %p311 = por %p309, %p310
      %p312 = scmp.le.s32.totalorder 1, %s21
      %p313 = scmp.lt.s32.totalorder %s21, 3
      %p314 = pnand %p312, %p313
      %p315 = pneg %p314
      // Predicated region
      $region9: #{lenet5_forward.1} parent=5 // pred_check
        _
      $region10: #{lenet5_forward.1} parent=5 // pred_check_branch
        %317 = sbr.rel (%p314) target = $region12
      $region11: #{lenet5_forward.1} parent=5 // pred_region
        %s318 = ssub.s32 %s21, 1
        // Predicated region
        $region13: #{lenet5_forward.1} parent=11 // pred_check
          %p319 = pneg %p68
        $region14: #{lenet5_forward.1} parent=11 // pred_check_branch
          %321 = sbr.rel (%p319) target = $region16
        $region15: #{lenet5_forward.1} parent=11 // pred_region
          _
        $region16: #{lenet5_forward.1} parent=11 // pred_fallthru
          _
        // Predicated region
        $region17: #{lenet5_forward.1} parent=11 // pred_check
          %p322 = pneg %p89
        $region18: #{lenet5_forward.1} parent=11 // pred_check_branch
          %324 = sbr.rel (%p322) target = $region20
        $region19: #{lenet5_forward.1} parent=11 // pred_region
          _
        $region20: #{lenet5_forward.1} parent=11 // pred_fallthru
          _
        // Predicated region
        $region21: #{lenet5_forward.1} parent=11 // pred_check
          %p325 = pneg %p110
        $region22: #{lenet5_forward.1} parent=11 // pred_check_branch
          %327 = sbr.rel (%p325) target = $region24
        $region23: #{lenet5_forward.1} parent=11 // pred_region
          _
        $region24: #{lenet5_forward.1} parent=11 // pred_fallthru
          _
        // Predicated region
        $region25: #{lenet5_forward.1} parent=11 // pred_check
          %p328 = pneg %p131
        $region26: #{lenet5_forward.1} parent=11 // pred_check_branch
          %330 = sbr.rel (%p328) target = $region28
        $region27: #{lenet5_forward.1} parent=11 // pred_region
          _
        $region28: #{lenet5_forward.1} parent=11 // pred_fallthru
          _
        // Predicated region
        $region29: #{lenet5_forward.1} parent=11 // pred_check
          %p331 = pneg %p152
        $region30: #{lenet5_forward.1} parent=11 // pred_check_branch
          %333 = sbr.rel (%p331) target = $region32
        $region31: #{lenet5_forward.1} parent=11 // pred_region
          _
        $region32: #{lenet5_forward.1} parent=11 // pred_fallthru
          _
        // Predicated region
        $region33: #{lenet5_forward.1} parent=11 // pred_check
          %p334 = pneg %p173
        $region34: #{lenet5_forward.1} parent=11 // pred_check_branch
          %336 = sbr.rel (%p334) target = $region36
        $region35: #{lenet5_forward.1} parent=11 // pred_region
          _
        $region36: #{lenet5_forward.1} parent=11 // pred_fallthru
          _
        // Predicated region
        $region37: #{lenet5_forward.1} parent=11 // pred_check
          %p337 = pneg %p194
        $region38: #{lenet5_forward.1} parent=11 // pred_check_branch
          %339 = sbr.rel (%p337) target = $region40
        $region39: #{lenet5_forward.1} parent=11 // pred_region
          _
        $region40: #{lenet5_forward.1} parent=11 // pred_fallthru
          _
        // Predicated region
        $region41: #{lenet5_forward.1} parent=11 // pred_check
          %p340 = pneg %p215
        $region42: #{lenet5_forward.1} parent=11 // pred_check_branch
          %342 = sbr.rel (%p340) target = $region44
        $region43: #{lenet5_forward.1} parent=11 // pred_region
          _
        $region44: #{lenet5_forward.1} parent=11 // pred_fallthru
          _
        // Predicated region
        $region45: #{lenet5_forward.1} parent=11 // pred_check
          %p343 = pneg %p236
        $region46: #{lenet5_forward.1} parent=11 // pred_check_branch
          %345 = sbr.rel (%p343) target = $region48
        $region47: #{lenet5_forward.1} parent=11 // pred_region
          _
        $region48: #{lenet5_forward.1} parent=11 // pred_fallthru
          _
        // Predicated region
        $region49: #{lenet5_forward.1} parent=11 // pred_check
          %p346 = pneg %p257
        $region50: #{lenet5_forward.1} parent=11 // pred_check_branch
          %348 = sbr.rel (%p346) target = $region52
        $region51: #{lenet5_forward.1} parent=11 // pred_region
          _
        $region52: #{lenet5_forward.1} parent=11 // pred_fallthru
          _
        // Predicated region
        $region53: #{lenet5_forward.1} parent=11 // pred_check
          %p349 = pneg %p278
        $region54: #{lenet5_forward.1} parent=11 // pred_check_branch
          %351 = sbr.rel (%p349) target = $region56
        $region55: #{lenet5_forward.1} parent=11 // pred_region
          _
        $region56: #{lenet5_forward.1} parent=11 // pred_fallthru
          _
      $region12: #{lenet5_forward.1} parent=5 // pred_fallthru
        _
      %p352 = scmp.lt.s32.totalorder %s21, 2
      // Predicated region
      $region57: #{lenet5_forward.1} parent=5 // pred_check
        %p353 = pneg %p352
      $region58: #{lenet5_forward.1} parent=5 // pred_check_branch
        %355 = sbr.rel (%p353) target = $region60
      $region59: #{lenet5_forward.1} parent=5 // pred_region
        // Predicated region
        $region61: #{lenet5_forward.1} parent=59 // pred_check
          %p356 = pneg %p41
        $region62: #{lenet5_forward.1} parent=59 // pred_check_branch
          %358 = sbr.rel (%p356) target = $region64
        $region63: #{lenet5_forward.1} parent=59 // pred_region
          %p359 = scmp.lt.s32.totalorder %s21, 1
          %s360 = scalar_select %p359, %s21, 1
          %s361 = smul.addr %s360, 11
          %s362 = smul.addr %s361, 8
          %s363 = scalar_lea.vmem %s0, %s362
        $region64: #{lenet5_forward.1} parent=59 // pred_fallthru
          _
      $region60: #{lenet5_forward.1} parent=5 // pred_fallthru
        _
      %p364 = scmp.le.s32.totalorder 1, %s21
      %p365 = scmp.lt.s32.totalorder %s21, 3
      %p366 = pnand %p364, %p365
      %p367 = pneg %p366
      // Predicated region
      $region65: #{lenet5_forward.1} parent=5 // pred_check
        _
      $region66: #{lenet5_forward.1} parent=5 // pred_check_branch
        %369 = sbr.rel (%p366) target = $region68
      $region67: #{lenet5_forward.1} parent=5 // pred_region
        %s370 = ssub.s32 %s21, 1
        %p371 = scmp.lt.s32.totalorder %s26, 1
        %s372 = scalar_select %p371, %s26, 1
        %s373 = smul.addr %s372, 11
        %s374 = smul.addr %s373, 8
        %s375 = scalar_lea.vmem %s0, %s374
        %p376 = pneg %p47
        %p377 = pneg %p44
        %p378 = pneg %p68
        %p379 = pneg %p65
        %p380 = pneg %p89
        %p381 = pneg %p86
        %p382 = pneg %p110
        %p383 = pneg %p107
        %p384 = pneg %p131
        %p385 = pneg %p128
        %p386 = pneg %p152
        %p387 = pneg %p149
        %p388 = pneg %p173
        %p389 = pneg %p170
        %p390 = pneg %p194
        %p391 = pneg %p191
        %p392 = pneg %p215
        %p393 = pneg %p212
        %p394 = pneg %p236
        %p395 = pneg %p233
        %p396 = pneg %p257
        %p397 = pneg %p254
        %p398 = pneg %p278
        %p399 = pneg %p275
        %p400 = pneg %p304
        %p401 = pneg %p301
        %s402 = sand.u32 %s291, 1
        %s403 = scalar_lea.sflag [#allocation9], %s402
        %s404 = sand.u32 %s291, 1
        %s405 = scalar_lea.vmem [#allocation8], %s404
        %p406 = scmp.lt.s32.totalorder %s26, 1
        %s407 = scalar_select %p406, %s26, 1
        %s408 = smul.addr %s407, 11
        %s409 = smul.addr %s408, 8
        %s410 = scalar_lea.vmem %s0, %s409
        %411 = vst [vmem:[#allocation3] sm:$0xff] 0.0
        %412 = vst [vmem:[#allocation3 + $0x8] sm:$0xff] 0.0
        %413 = vst [vmem:[#allocation3 + $0x10] sm:$0xff] 0.0
        %414 = vst [vmem:[#allocation3 + $0x18] sm:$0xff] 0.0
        %415 = vst [vmem:[#allocation3 + $0x20] sm:$0xff] 0.0
        %416 = vst [vmem:[#allocation3 + $0x28] sm:$0xff] 0.0
        %417 = vst [vmem:[#allocation3 + $0x30] sm:$0xff] 0.0
        %418 = vst [vmem:[#allocation3 + $0x38] sm:$0xff] 0.0
        %419 = vst [vmem:[#allocation3 + $0x40] sm:$0xff] 0.0
        %420 = vst [vmem:[#allocation3 + $0x48] sm:$0xff] 0.0
        %421 = vst [vmem:[#allocation3 + $0x50] sm:$0xff] 0.0
        %422 = vst [vmem:[#allocation4] sm:$0xff] 0.0
        %423 = vst [vmem:[#allocation4 + $0x8] sm:$0xff] 0.0
        %424 = vst [vmem:[#allocation4 + $0x10] sm:$0xff] 0.0
        %425 = vst [vmem:[#allocation4 + $0x18] sm:$0xff] 0.0
        %426 = vst [vmem:[#allocation4 + $0x20] sm:$0xff] 0.0
        %427 = vst [vmem:[#allocation4 + $0x28] sm:$0xff] 0.0
        %428 = vst [vmem:[#allocation4 + $0x30] sm:$0xff] 0.0
        %429 = vst [vmem:[#allocation4 + $0x38] sm:$0xff] 0.0
        %430 = vst [vmem:[#allocation4 + $0x40] sm:$0xff] 0.0
        %431 = vst [vmem:[#allocation4 + $0x48] sm:$0xff] 0.0
        %432 = vst [vmem:[#allocation4 + $0x50] sm:$0xff] 0.0
        %433 = vst [vmem:[#allocation6] sm:$0xff] 0.0
        %434 = vst [vmem:[#allocation6 + $0x8] sm:$0xff] 0.0
        %435 = vst [vmem:[#allocation6 + $0x10] sm:$0xff] 0.0
        %436 = vst [vmem:[#allocation6 + $0x18] sm:$0xff] 0.0
        %437 = vst [vmem:[#allocation6 + $0x20] sm:$0xff] 0.0
        %438 = vst [vmem:[#allocation6 + $0x28] sm:$0xff] 0.0
        %439 = vst [vmem:[#allocation6 + $0x30] sm:$0xff] 0.0
        %440 = vst [vmem:[#allocation6 + $0x38] sm:$0xff] 0.0
        %441 = vst [vmem:[#allocation6 + $0x40] sm:$0xff] 0.0
        %442 = vst [vmem:[#allocation6 + $0x48] sm:$0xff] 0.0
        %443 = vst [vmem:[#allocation6 + $0x50] sm:$0xff] 0.0
        %444 = vst [vmem:[#allocation6 + $0x58] sm:$0xff] 0.0
        %445 = vst [vmem:[#allocation6 + $0x60] sm:$0xff] 0.0
        %446 = vst [vmem:[#allocation6 + $0x68] sm:$0xff] 0.0
        %447 = vst [vmem:[#allocation6 + $0x70] sm:$0xff] 0.0
        %448 = vst [vmem:[#allocation6 + $0x78] sm:$0xff] 0.0
        %449 = vst [vmem:[#allocation6 + $0x80] sm:$0xff] 0.0
        %450 = vst [vmem:[#allocation6 + $0x88] sm:$0xff] 0.0
        %451 = vst [vmem:[#allocation6 + $0x90] sm:$0xff] 0.0
        %452 = vst [vmem:[#allocation6 + $0x98] sm:$0xff] 0.0
        %453 = vst [vmem:[#allocation6 + $0xa0] sm:$0xff] 0.0
        %454 = vst [vmem:[#allocation6 + $0xa8] sm:$0xff] 0.0
        %v455 = vld [vmem:[%s410] sm:$0xff]
        %v456 = vld [vmem:[%s410 + $0x8] sm:$0xff]
        %v457 = vld [vmem:[%s410 + $0x10] sm:$0xff]
        %v458 = vld [vmem:[%s410 + $0x18] sm:$0xff]
        %v459 = vld [vmem:[%s410 + $0x20] sm:$0xff]
        %v460 = vld [vmem:[%s410 + $0x28] sm:$0xff]
        %v461 = vld [vmem:[%s410 + $0x30] sm:$0xff]
        %v462 = vld [vmem:[%s410 + $0x38] sm:$0xff]
        %463 = vst [vmem:[#allocation2] sm:$0xff] %v455
        %464 = vst [vmem:[#allocation2 + $0x8] sm:$0xff] %v456
        %465 = vst [vmem:[#allocation2 + $0x10] sm:$0xff] %v457
        %466 = vst [vmem:[#allocation2 + $0x18] sm:$0xff] %v458
        %467 = vst [vmem:[#allocation2 + $0x20] sm:$0xff] %v459
        %468 = vst [vmem:[#allocation2 + $0x28] sm:$0xff] %v460
        %469 = vst [vmem:[#allocation2 + $0x30] sm:$0xff] %v461
        %470 = vst [vmem:[#allocation2 + $0x38] sm:$0xff] %v462
        %v471 = vld [vmem:[%s410] sm:$0xff]
        %v472 = vld [vmem:[%s410 + $0x8] sm:$0xff]
        %v473 = vld [vmem:[%s410 + $0x10] sm:$0xff]
        %v474 = vld [vmem:[%s410 + $0x18] sm:$0xff]
        %v475 = vld [vmem:[%s410 + $0x20] sm:$0xff]
        %v476 = vld [vmem:[%s410 + $0x28] sm:$0xff]
        %v477 = vld [vmem:[%s410 + $0x30] sm:$0xff]
        %v478 = vld [vmem:[%s410 + $0x38] sm:$0xff]
        %v479 = vld [vmem:[%s410 + $0x40] sm:$0xff]
        %489 = vrot.lane.b32.xlu0 %v471, 127
        %v490 = vpop.permute.xlu0 %489
        %491 = vrot.lane.b32.xlu0 %v472, 127
        %v492 = vpop.permute.xlu0 %491
        %493 = vrot.lane.b32.xlu0 %v473, 127
        %v494 = vpop.permute.xlu0 %493
        %495 = vrot.lane.b32.xlu0 %v474, 127
        %v496 = vpop.permute.xlu0 %495
        %497 = vrot.lane.b32.xlu0 %v475, 127
        %v498 = vpop.permute.xlu0 %497
        %499 = vrot.lane.b32.xlu0 %v476, 127
        %v500 = vpop.permute.xlu0 %499
        %501 = vrot.lane.b32.xlu0 %v477, 127
        %v502 = vpop.permute.xlu0 %501
        %503 = vrot.lane.b32.xlu0 %v478, 127
        %v504 = vpop.permute.xlu0 %503
        %505 = vrot.lane.b32.xlu0 %v479, 127
        %v506 = vpop.permute.xlu0 %505
        %vm507 = vcmask 1039360
        %v508 = vsel %vm507, %v490, %v492
        %v509 = vsel %vm507, %v492, %v494
        %v510 = vsel %vm507, %v494, %v496
        %v511 = vsel %vm507, %v496, %v498
        %v512 = vsel %vm507, %v498, %v500
        %v513 = vsel %vm507, %v500, %v502
        %v514 = vsel %vm507, %v502, %v504
        %v515 = vsel %vm507, %v504, %v506
        %524 = vst [vmem:[#allocation2 + $0x40] sm:$0xff] %v508
        %525 = vst [vmem:[#allocation2 + $0x48] sm:$0xff] %v509
        %526 = vst [vmem:[#allocation2 + $0x50] sm:$0xff] %v510
        %527 = vst [vmem:[#allocation2 + $0x58] sm:$0xff] %v511
        %528 = vst [vmem:[#allocation2 + $0x60] sm:$0xff] %v512
        %529 = vst [vmem:[#allocation2 + $0x68] sm:$0xff] %v513
        %530 = vst [vmem:[#allocation2 + $0x70] sm:$0xff] %v514
        %531 = vst [vmem:[#allocation2 + $0x78] sm:$0xff] %v515
        %v532 = vld [vmem:[%s410] sm:$0xff]
        %v533 = vld [vmem:[%s410 + $0x8] sm:$0xff]
        %v534 = vld [vmem:[%s410 + $0x10] sm:$0xff]
        %v535 = vld [vmem:[%s410 + $0x18] sm:$0xff]
        %v536 = vld [vmem:[%s410 + $0x20] sm:$0xff]
        %v537 = vld [vmem:[%s410 + $0x28] sm:$0xff]
        %v538 = vld [vmem:[%s410 + $0x30] sm:$0xff]
        %v539 = vld [vmem:[%s410 + $0x38] sm:$0xff]
        %v540 = vld [vmem:[%s410 + $0x40] sm:$0xff]
        %550 = vrot.lane.b32.xlu0 %v532, 126
        %v551 = vpop.permute.xlu0 %550
        %552 = vrot.lane.b32.xlu0 %v533, 126
        %v553 = vpop.permute.xlu0 %552
        %554 = vrot.lane.b32.xlu0 %v534, 126
        %v555 = vpop.permute.xlu0 %554
        %556 = vrot.lane.b32.xlu0 %v535, 126
        %v557 = vpop.permute.xlu0 %556
        %558 = vrot.lane.b32.xlu0 %v536, 126
        %v559 = vpop.permute.xlu0 %558
        %560 = vrot.lane.b32.xlu0 %v537, 126
        %v561 = vpop.permute.xlu0 %560
        %562 = vrot.lane.b32.xlu0 %v538, 126
        %v563 = vpop.permute.xlu0 %562
        %564 = vrot.lane.b32.xlu0 %v539, 126
        %v565 = vpop.permute.xlu0 %564
        %566 = vrot.lane.b32.xlu0 %v540, 126
        %v567 = vpop.permute.xlu0 %566
        %vm568 = vcmask 1031168
        %v569 = vsel %vm568, %v551, %v553
        %v570 = vsel %vm568, %v553, %v555
        %v571 = vsel %vm568, %v555, %v557
        %v572 = vsel %vm568, %v557, %v559
        %v573 = vsel %vm568, %v559, %v561
        %v574 = vsel %vm568, %v561, %v563
        %v575 = vsel %vm568, %v563, %v565
        %v576 = vsel %vm568, %v565, %v567
        %585 = vst [vmem:[#allocation2 + $0x80] sm:$0xff] %v569
        %586 = vst [vmem:[#allocation2 + $0x88] sm:$0xff] %v570
        %587 = vst [vmem:[#allocation2 + $0x90] sm:$0xff] %v571
        %588 = vst [vmem:[#allocation2 + $0x98] sm:$0xff] %v572
        %589 = vst [vmem:[#allocation2 + $0xa0] sm:$0xff] %v573
        %590 = vst [vmem:[#allocation2 + $0xa8] sm:$0xff] %v574
        %591 = vst [vmem:[#allocation2 + $0xb0] sm:$0xff] %v575
        %592 = vst [vmem:[#allocation2 + $0xb8] sm:$0xff] %v576
        %v593 = vld [vmem:[%s410] sm:$0xff]
        %v594 = vld [vmem:[%s410 + $0x8] sm:$0xff]
        %v595 = vld [vmem:[%s410 + $0x10] sm:$0xff]
        %v596 = vld [vmem:[%s410 + $0x18] sm:$0xff]
        %v597 = vld [vmem:[%s410 + $0x20] sm:$0xff]
        %v598 = vld [vmem:[%s410 + $0x28] sm:$0xff]
        %v599 = vld [vmem:[%s410 + $0x30] sm:$0xff]
        %v600 = vld [vmem:[%s410 + $0x38] sm:$0xff]
        %v601 = vld [vmem:[%s410 + $0x40] sm:$0xff]
        %611 = vrot.lane.b32.xlu0 %v593, 125
        %v612 = vpop.permute.xlu0 %611
        %613 = vrot.lane.b32.xlu0 %v594, 125
        %v614 = vpop.permute.xlu0 %613
        %615 = vrot.lane.b32.xlu0 %v595, 125
        %v616 = vpop.permute.xlu0 %615
        %617 = vrot.lane.b32.xlu0 %v596, 125
        %v618 = vpop.permute.xlu0 %617
        %619 = vrot.lane.b32.xlu0 %v597, 125
        %v620 = vpop.permute.xlu0 %619
        %621 = vrot.lane.b32.xlu0 %v598, 125
        %v622 = vpop.permute.xlu0 %621
        %623 = vrot.lane.b32.xlu0 %v599, 125
        %v624 = vpop.permute.xlu0 %623
        %625 = vrot.lane.b32.xlu0 %v600, 125
        %v626 = vpop.permute.xlu0 %625
        %627 = vrot.lane.b32.xlu0 %v601, 125
        %v628 = vpop.permute.xlu0 %627
        %vm629 = vcmask 1022976
        %v630 = vsel %vm629, %v612, %v614
        %v631 = vsel %vm629, %v614, %v616
        %v632 = vsel %vm629, %v616, %v618
        %v633 = vsel %vm629, %v618, %v620
        %v634 = vsel %vm629, %v620, %v622
        %v635 = vsel %vm629, %v622, %v624
        %v636 = vsel %vm629, %v624, %v626
        %v637 = vsel %vm629, %v626, %v628
        %646 = vst [vmem:[#allocation2 + $0xc0] sm:$0xff] %v630
        %647 = vst [vmem:[#allocation2 + $0xc8] sm:$0xff] %v631
        %648 = vst [vmem:[#allocation2 + $0xd0] sm:$0xff] %v632
        %649 = vst [vmem:[#allocation2 + $0xd8] sm:$0xff] %v633
        %650 = vst [vmem:[#allocation2 + $0xe0] sm:$0xff] %v634
        %651 = vst [vmem:[#allocation2 + $0xe8] sm:$0xff] %v635
        %652 = vst [vmem:[#allocation2 + $0xf0] sm:$0xff] %v636
        %653 = vst [vmem:[#allocation2 + $0xf8] sm:$0xff] %v637
        %v654 = vld [vmem:[%s410] sm:$0xff]
        %v655 = vld [vmem:[%s410 + $0x8] sm:$0xff]
        %v656 = vld [vmem:[%s410 + $0x10] sm:$0xff]
        %v657 = vld [vmem:[%s410 + $0x18] sm:$0xff]
        %v658 = vld [vmem:[%s410 + $0x20] sm:$0xff]
        %v659 = vld [vmem:[%s410 + $0x28] sm:$0xff]
        %v660 = vld [vmem:[%s410 + $0x30] sm:$0xff]
        %v661 = vld [vmem:[%s410 + $0x38] sm:$0xff]
        %v662 = vld [vmem:[%s410 + $0x40] sm:$0xff]
        %672 = vrot.lane.b32.xlu0 %v654, 124
        %v673 = vpop.permute.xlu0 %672
        %674 = vrot.lane.b32.xlu0 %v655, 124
        %v675 = vpop.permute.xlu0 %674
        %676 = vrot.lane.b32.xlu0 %v656, 124
        %v677 = vpop.permute.xlu0 %676
        %678 = vrot.lane.b32.xlu0 %v657, 124
        %v679 = vpop.permute.xlu0 %678
        %680 = vrot.lane.b32.xlu0 %v658, 124
        %v681 = vpop.permute.xlu0 %680
        %682 = vrot.lane.b32.xlu0 %v659, 124
        %v683 = vpop.permute.xlu0 %682
        %684 = vrot.lane.b32.xlu0 %v660, 124
        %v685 = vpop.permute.xlu0 %684
        %686 = vrot.lane.b32.xlu0 %v661, 124
        %v687 = vpop.permute.xlu0 %686
        %688 = vrot.lane.b32.xlu0 %v662, 124
        %v689 = vpop.permute.xlu0 %688
        %vm690 = vcmask 1014784
        %v691 = vsel %vm690, %v673, %v675
        %v692 = vsel %vm690, %v675, %v677
        %v693 = vsel %vm690, %v677, %v679
        %v694 = vsel %vm690, %v679, %v681
        %v695 = vsel %vm690, %v681, %v683
        %v696 = vsel %vm690, %v683, %v685
        %v697 = vsel %vm690, %v685, %v687
        %v698 = vsel %vm690, %v687, %v689
        %707 = vst [vmem:[#allocation2 + $0x100] sm:$0xff] %v691
        %708 = vst [vmem:[#allocation2 + $0x108] sm:$0xff] %v692
        %709 = vst [vmem:[#allocation2 + $0x110] sm:$0xff] %v693
        %710 = vst [vmem:[#allocation2 + $0x118] sm:$0xff] %v694
        %711 = vst [vmem:[#allocation2 + $0x120] sm:$0xff] %v695
        %712 = vst [vmem:[#allocation2 + $0x128] sm:$0xff] %v696
        %713 = vst [vmem:[#allocation2 + $0x130] sm:$0xff] %v697
        %714 = vst [vmem:[#allocation2 + $0x138] sm:$0xff] %v698
        %v715 = vld [vmem:[%s410] sm:$0xff]
        %v716 = vld [vmem:[%s410 + $0x8] sm:$0xff]
        %v717 = vld [vmem:[%s410 + $0x10] sm:$0xff]
        %v718 = vld [vmem:[%s410 + $0x18] sm:$0xff]
        %v719 = vld [vmem:[%s410 + $0x20] sm:$0xff]
        %v720 = vld [vmem:[%s410 + $0x28] sm:$0xff]
        %v721 = vld [vmem:[%s410 + $0x30] sm:$0xff]
        %v722 = vld [vmem:[%s410 + $0x38] sm:$0xff]
        %v723 = vld [vmem:[%s410 + $0x40] sm:$0xff]
        %733 = vrot.lane.b32.xlu0 %v715, 96
        %v734 = vpop.permute.xlu0 %733
        %735 = vrot.lane.b32.xlu0 %v716, 96
        %v736 = vpop.permute.xlu0 %735
        %737 = vrot.lane.b32.xlu0 %v717, 96
        %v738 = vpop.permute.xlu0 %737
        %739 = vrot.lane.b32.xlu0 %v718, 96
        %v740 = vpop.permute.xlu0 %739
        %741 = vrot.lane.b32.xlu0 %v719, 96
        %v742 = vpop.permute.xlu0 %741
        %743 = vrot.lane.b32.xlu0 %v720, 96
        %v744 = vpop.permute.xlu0 %743
        %745 = vrot.lane.b32.xlu0 %v721, 96
        %v746 = vpop.permute.xlu0 %745
        %747 = vrot.lane.b32.xlu0 %v722, 96
        %v748 = vpop.permute.xlu0 %747
        %749 = vrot.lane.b32.xlu0 %v723, 96
        %v750 = vpop.permute.xlu0 %749
        %vm751 = vcmask 785408
        %v752 = vsel %vm751, %v734, %v736
        %v753 = vsel %vm751, %v736, %v738
        %v754 = vsel %vm751, %v738, %v740
        %v755 = vsel %vm751, %v740, %v742
        %v756 = vsel %vm751, %v742, %v744
        %v757 = vsel %vm751, %v744, %v746
        %v758 = vsel %vm751, %v746, %v748
        %v759 = vsel %vm751, %v748, %v750
        %768 = vst [vmem:[#allocation2 + $0x140] sm:$0xff] %v752
        %769 = vst [vmem:[#allocation2 + $0x148] sm:$0xff] %v753
        %770 = vst [vmem:[#allocation2 + $0x150] sm:$0xff] %v754
        %771 = vst [vmem:[#allocation2 + $0x158] sm:$0xff] %v755
        %772 = vst [vmem:[#allocation2 + $0x160] sm:$0xff] %v756
        %773 = vst [vmem:[#allocation2 + $0x168] sm:$0xff] %v757
        %774 = vst [vmem:[#allocation2 + $0x170] sm:$0xff] %v758
        %775 = vst [vmem:[#allocation2 + $0x178] sm:$0xff] %v759
        %v776 = vld [vmem:[%s410] sm:$0xff]
        %v777 = vld [vmem:[%s410 + $0x8] sm:$0xff]
        %v778 = vld [vmem:[%s410 + $0x10] sm:$0xff]
        %v779 = vld [vmem:[%s410 + $0x18] sm:$0xff]
        %v780 = vld [vmem:[%s410 + $0x20] sm:$0xff]
        %v781 = vld [vmem:[%s410 + $0x28] sm:$0xff]
        %v782 = vld [vmem:[%s410 + $0x30] sm:$0xff]
        %v783 = vld [vmem:[%s410 + $0x38] sm:$0xff]
        %v784 = vld [vmem:[%s410 + $0x40] sm:$0xff]
        %794 = vrot.lane.b32.xlu0 %v776, 95
        %v795 = vpop.permute.xlu0 %794
        %796 = vrot.lane.b32.xlu0 %v777, 95
        %v797 = vpop.permute.xlu0 %796
        %798 = vrot.lane.b32.xlu0 %v778, 95
        %v799 = vpop.permute.xlu0 %798
        %800 = vrot.lane.b32.xlu0 %v779, 95
        %v801 = vpop.permute.xlu0 %800
        %802 = vrot.lane.b32.xlu0 %v780, 95
        %v803 = vpop.permute.xlu0 %802
        %804 = vrot.lane.b32.xlu0 %v781, 95
        %v805 = vpop.permute.xlu0 %804
        %806 = vrot.lane.b32.xlu0 %v782, 95
        %v807 = vpop.permute.xlu0 %806
        %808 = vrot.lane.b32.xlu0 %v783, 95
        %v809 = vpop.permute.xlu0 %808
        %810 = vrot.lane.b32.xlu0 %v784, 95
        %v811 = vpop.permute.xlu0 %810
        %vm812 = vcmask 777216
        %v813 = vsel %vm812, %v795, %v797
        %v814 = vsel %vm812, %v797, %v799
        %v815 = vsel %vm812, %v799, %v801
        %v816 = vsel %vm812, %v801, %v803
        %v817 = vsel %vm812, %v803, %v805
        %v818 = vsel %vm812, %v805, %v807
        %v819 = vsel %vm812, %v807, %v809
        %v820 = vsel %vm812, %v809, %v811
        %829 = vst [vmem:[#allocation2 + $0x180] sm:$0xff] %v813
        %830 = vst [vmem:[#allocation2 + $0x188] sm:$0xff] %v814
        %831 = vst [vmem:[#allocation2 + $0x190] sm:$0xff] %v815
        %832 = vst [vmem:[#allocation2 + $0x198] sm:$0xff] %v816
        %833 = vst [vmem:[#allocation2 + $0x1a0] sm:$0xff] %v817
        %834 = vst [vmem:[#allocation2 + $0x1a8] sm:$0xff] %v818
        %835 = vst [vmem:[#allocation2 + $0x1b0] sm:$0xff] %v819
        %836 = vst [vmem:[#allocation2 + $0x1b8] sm:$0xff] %v820
        %v837 = vld [vmem:[%s410] sm:$0xff]
        %v838 = vld [vmem:[%s410 + $0x8] sm:$0xff]
        %v839 = vld [vmem:[%s410 + $0x10] sm:$0xff]
        %v840 = vld [vmem:[%s410 + $0x18] sm:$0xff]
        %v841 = vld [vmem:[%s410 + $0x20] sm:$0xff]
        %v842 = vld [vmem:[%s410 + $0x28] sm:$0xff]
        %v843 = vld [vmem:[%s410 + $0x30] sm:$0xff]
        %v844 = vld [vmem:[%s410 + $0x38] sm:$0xff]
        %v845 = vld [vmem:[%s410 + $0x40] sm:$0xff]
        %855 = vrot.lane.b32.xlu0 %v837, 94
        %v856 = vpop.permute.xlu0 %855
        %857 = vrot.lane.b32.xlu0 %v838, 94
        %v858 = vpop.permute.xlu0 %857
        %859 = vrot.lane.b32.xlu0 %v839, 94
        %v860 = vpop.permute.xlu0 %859
        %861 = vrot.lane.b32.xlu0 %v840, 94
        %v862 = vpop.permute.xlu0 %861
        %863 = vrot.lane.b32.xlu0 %v841, 94
        %v864 = vpop.permute.xlu0 %863
        %865 = vrot.lane.b32.xlu0 %v842, 94
        %v866 = vpop.permute.xlu0 %865
        %867 = vrot.lane.b32.xlu0 %v843, 94
        %v868 = vpop.permute.xlu0 %867
        %869 = vrot.lane.b32.xlu0 %v844, 94
        %v870 = vpop.permute.xlu0 %869
        %871 = vrot.lane.b32.xlu0 %v845, 94
        %v872 = vpop.permute.xlu0 %871
        %vm873 = vcmask 769024
        %v874 = vsel %vm873, %v856, %v858
        %v875 = vsel %vm873, %v858, %v860
        %v876 = vsel %vm873, %v860, %v862
        %v877 = vsel %vm873, %v862, %v864
        %v878 = vsel %vm873, %v864, %v866
        %v879 = vsel %vm873, %v866, %v868
        %v880 = vsel %vm873, %v868, %v870
        %v881 = vsel %vm873, %v870, %v872
        %890 = vst [vmem:[#allocation2 + $0x1c0] sm:$0xff] %v874
        %891 = vst [vmem:[#allocation2 + $0x1c8] sm:$0xff] %v875
        %892 = vst [vmem:[#allocation2 + $0x1d0] sm:$0xff] %v876
        %893 = vst [vmem:[#allocation2 + $0x1d8] sm:$0xff] %v877
        %894 = vst [vmem:[#allocation2 + $0x1e0] sm:$0xff] %v878
        %895 = vst [vmem:[#allocation2 + $0x1e8] sm:$0xff] %v879
        %896 = vst [vmem:[#allocation2 + $0x1f0] sm:$0xff] %v880
        %897 = vst [vmem:[#allocation2 + $0x1f8] sm:$0xff] %v881
        %v898 = vld [vmem:[%s410] sm:$0xff]
        %v899 = vld [vmem:[%s410 + $0x8] sm:$0xff]
        %v900 = vld [vmem:[%s410 + $0x10] sm:$0xff]
        %v901 = vld [vmem:[%s410 + $0x18] sm:$0xff]
        %v902 = vld [vmem:[%s410 + $0x20] sm:$0xff]
        %v903 = vld [vmem:[%s410 + $0x28] sm:$0xff]
        %v904 = vld [vmem:[%s410 + $0x30] sm:$0xff]
        %v905 = vld [vmem:[%s410 + $0x38] sm:$0xff]
        %v906 = vld [vmem:[%s410 + $0x40] sm:$0xff]
        %916 = vrot.lane.b32.xlu0 %v898, 93
        %v917 = vpop.permute.xlu0 %916
        %918 = vrot.lane.b32.xlu0 %v899, 93
        %v919 = vpop.permute.xlu0 %918
        %920 = vrot.lane.b32.xlu0 %v900, 93
        %v921 = vpop.permute.xlu0 %920
        %922 = vrot.lane.b32.xlu0 %v901, 93
        %v923 = vpop.permute.xlu0 %922
        %924 = vrot.lane.b32.xlu0 %v902, 93
        %v925 = vpop.permute.xlu0 %924
        %926 = vrot.lane.b32.xlu0 %v903, 93
        %v927 = vpop.permute.xlu0 %926
        %928 = vrot.lane.b32.xlu0 %v904, 93
        %v929 = vpop.permute.xlu0 %928
        %930 = vrot.lane.b32.xlu0 %v905, 93
        %v931 = vpop.permute.xlu0 %930
        %932 = vrot.lane.b32.xlu0 %v906, 93
        %v933 = vpop.permute.xlu0 %932
        %vm934 = vcmask 760832
        %v935 = vsel %vm934, %v917, %v919
        %v936 = vsel %vm934, %v919, %v921
        %v937 = vsel %vm934, %v921, %v923
        %v938 = vsel %vm934, %v923, %v925
        %v939 = vsel %vm934, %v925, %v927
        %v940 = vsel %vm934, %v927, %v929
        %v941 = vsel %vm934, %v929, %v931
        %v942 = vsel %vm934, %v931, %v933
        %951 = vst [vmem:[#allocation2 + $0x200] sm:$0xff] %v935
        %952 = vst [vmem:[#allocation2 + $0x208] sm:$0xff] %v936
        %953 = vst [vmem:[#allocation2 + $0x210] sm:$0xff] %v937
        %954 = vst [vmem:[#allocation2 + $0x218] sm:$0xff] %v938
        %955 = vst [vmem:[#allocation2 + $0x220] sm:$0xff] %v939
        %956 = vst [vmem:[#allocation2 + $0x228] sm:$0xff] %v940
        %957 = vst [vmem:[#allocation2 + $0x230] sm:$0xff] %v941
        %958 = vst [vmem:[#allocation2 + $0x238] sm:$0xff] %v942
        %v959 = vld [vmem:[%s410] sm:$0xff]
        %v960 = vld [vmem:[%s410 + $0x8] sm:$0xff]
        %v961 = vld [vmem:[%s410 + $0x10] sm:$0xff]
        %v962 = vld [vmem:[%s410 + $0x18] sm:$0xff]
        %v963 = vld [vmem:[%s410 + $0x20] sm:$0xff]
        %v964 = vld [vmem:[%s410 + $0x28] sm:$0xff]
        %v965 = vld [vmem:[%s410 + $0x30] sm:$0xff]
        %v966 = vld [vmem:[%s410 + $0x38] sm:$0xff]
        %v967 = vld [vmem:[%s410 + $0x40] sm:$0xff]
        %977 = vrot.lane.b32.xlu0 %v959, 92
        %v978 = vpop.permute.xlu0 %977
        %979 = vrot.lane.b32.xlu0 %v960, 92
        %v980 = vpop.permute.xlu0 %979
        %981 = vrot.lane.b32.xlu0 %v961, 92
        %v982 = vpop.permute.xlu0 %981
        %983 = vrot.lane.b32.xlu0 %v962, 92
        %v984 = vpop.permute.xlu0 %983
        %985 = vrot.lane.b32.xlu0 %v963, 92
        %v986 = vpop.permute.xlu0 %985
        %987 = vrot.lane.b32.xlu0 %v964, 92
        %v988 = vpop.permute.xlu0 %987
        %989 = vrot.lane.b32.xlu0 %v965, 92
        %v990 = vpop.permute.xlu0 %989
        %991 = vrot.lane.b32.xlu0 %v966, 92
        %v992 = vpop.permute.xlu0 %991
        %993 = vrot.lane.b32.xlu0 %v967, 92
        %v994 = vpop.permute.xlu0 %993
        %vm995 = vcmask 752640
        %v996 = vsel %vm995, %v978, %v980
        %v997 = vsel %vm995, %v980, %v982
        %v998 = vsel %vm995, %v982, %v984
        %v999 = vsel %vm995, %v984, %v986
        %v1000 = vsel %vm995, %v986, %v988
        %v1001 = vsel %vm995, %v988, %v990
        %v1002 = vsel %vm995, %v990, %v992
        %v1003 = vsel %vm995, %v992, %v994
        %1012 = vst [vmem:[#allocation2 + $0x240] sm:$0xff] %v996
        %1013 = vst [vmem:[#allocation2 + $0x248] sm:$0xff] %v997
        %1014 = vst [vmem:[#allocation2 + $0x250] sm:$0xff] %v998
        %1015 = vst [vmem:[#allocation2 + $0x258] sm:$0xff] %v999
        %1016 = vst [vmem:[#allocation2 + $0x260] sm:$0xff] %v1000
        %1017 = vst [vmem:[#allocation2 + $0x268] sm:$0xff] %v1001
        %1018 = vst [vmem:[#allocation2 + $0x270] sm:$0xff] %v1002
        %1019 = vst [vmem:[#allocation2 + $0x278] sm:$0xff] %v1003
        %v1020 = vld [vmem:[%s410] sm:$0xff]
        %v1021 = vld [vmem:[%s410 + $0x8] sm:$0xff]
        %v1022 = vld [vmem:[%s410 + $0x10] sm:$0xff]
        %v1023 = vld [vmem:[%s410 + $0x18] sm:$0xff]
        %v1024 = vld [vmem:[%s410 + $0x20] sm:$0xff]
        %v1025 = vld [vmem:[%s410 + $0x28] sm:$0xff]
        %v1026 = vld [vmem:[%s410 + $0x30] sm:$0xff]
        %v1027 = vld [vmem:[%s410 + $0x38] sm:$0xff]
        %v1028 = vld [vmem:[%s410 + $0x40] sm:$0xff]
        %1038 = vrot.lane.b32.xlu0 %v1020, 64
        %v1039 = vpop.permute.xlu0 %1038
        %1040 = vrot.lane.b32.xlu0 %v1021, 64
        %v1041 = vpop.permute.xlu0 %1040
        %1042 = vrot.lane.b32.xlu0 %v1022, 64
        %v1043 = vpop.permute.xlu0 %1042
        %1044 = vrot.lane.b32.xlu0 %v1023, 64
        %v1045 = vpop.permute.xlu0 %1044
        %1046 = vrot.lane.b32.xlu0 %v1024, 64
        %v1047 = vpop.permute.xlu0 %1046
        %1048 = vrot.lane.b32.xlu0 %v1025, 64
        %v1049 = vpop.permute.xlu0 %1048
        %1050 = vrot.lane.b32.xlu0 %v1026, 64
        %v1051 = vpop.permute.xlu0 %1050
        %1052 = vrot.lane.b32.xlu0 %v1027, 64
        %v1053 = vpop.permute.xlu0 %1052
        %1054 = vrot.lane.b32.xlu0 %v1028, 64
        %v1055 = vpop.permute.xlu0 %1054
        %vm1056 = vcmask 523264
        %v1057 = vsel %vm1056, %v1039, %v1041
        %v1058 = vsel %vm1056, %v1041, %v1043
        %v1059 = vsel %vm1056, %v1043, %v1045
        %v1060 = vsel %vm1056, %v1045, %v1047
        %v1061 = vsel %vm1056, %v1047, %v1049
        %v1062 = vsel %vm1056, %v1049, %v1051
        %v1063 = vsel %vm1056, %v1051, %v1053
        %v1064 = vsel %vm1056, %v1053, %v1055
        %1073 = vst [vmem:[#allocation2 + $0x280] sm:$0xff] %v1057
        %1074 = vst [vmem:[#allocation2 + $0x288] sm:$0xff] %v1058
        %1075 = vst [vmem:[#allocation2 + $0x290] sm:$0xff] %v1059
        %1076 = vst [vmem:[#allocation2 + $0x298] sm:$0xff] %v1060
        %1077 = vst [vmem:[#allocation2 + $0x2a0] sm:$0xff] %v1061
        %1078 = vst [vmem:[#allocation2 + $0x2a8] sm:$0xff] %v1062
        %1079 = vst [vmem:[#allocation2 + $0x2b0] sm:$0xff] %v1063
        %1080 = vst [vmem:[#allocation2 + $0x2b8] sm:$0xff] %v1064
        %v1081 = vld [vmem:[%s410] sm:$0xff]
        %v1082 = vld [vmem:[%s410 + $0x8] sm:$0xff]
        %v1083 = vld [vmem:[%s410 + $0x10] sm:$0xff]
        %v1084 = vld [vmem:[%s410 + $0x18] sm:$0xff]
        %v1085 = vld [vmem:[%s410 + $0x20] sm:$0xff]
        %v1086 = vld [vmem:[%s410 + $0x28] sm:$0xff]
        %v1087 = vld [vmem:[%s410 + $0x30] sm:$0xff]
        %v1088 = vld [vmem:[%s410 + $0x38] sm:$0xff]
        %v1089 = vld [vmem:[%s410 + $0x40] sm:$0xff]
        %1099 = vrot.lane.b32.xlu0 %v1081, 63
        %v1100 = vpop.permute.xlu0 %1099
        %1101 = vrot.lane.b32.xlu0 %v1082, 63
        %v1102 = vpop.permute.xlu0 %1101
        %1103 = vrot.lane.b32.xlu0 %v1083, 63
        %v1104 = vpop.permute.xlu0 %1103
        %1105 = vrot.lane.b32.xlu0 %v1084, 63
        %v1106 = vpop.permute.xlu0 %1105
        %1107 = vrot.lane.b32.xlu0 %v1085, 63
        %v1108 = vpop.permute.xlu0 %1107
        %1109 = vrot.lane.b32.xlu0 %v1086, 63
        %v1110 = vpop.permute.xlu0 %1109
        %1111 = vrot.lane.b32.xlu0 %v1087, 63
        %v1112 = vpop.permute.xlu0 %1111
        %1113 = vrot.lane.b32.xlu0 %v1088, 63
        %v1114 = vpop.permute.xlu0 %1113
        %1115 = vrot.lane.b32.xlu0 %v1089, 63
        %v1116 = vpop.permute.xlu0 %1115
        %vm1117 = vcmask 515072
        %v1118 = vsel %vm1117, %v1100, %v1102
        %v1119 = vsel %vm1117, %v1102, %v1104
        %v1120 = vsel %vm1117, %v1104, %v1106
        %v1121 = vsel %vm1117, %v1106, %v1108
        %v1122 = vsel %vm1117, %v1108, %v1110
        %v1123 = vsel %vm1117, %v1110, %v1112
        %v1124 = vsel %vm1117, %v1112, %v1114
        %v1125 = vsel %vm1117, %v1114, %v1116
        %1134 = vst [vmem:[#allocation2 + $0x2c0] sm:$0xff] %v1118
        %1135 = vst [vmem:[#allocation2 + $0x2c8] sm:$0xff] %v1119
        %1136 = vst [vmem:[#allocation2 + $0x2d0] sm:$0xff] %v1120
        %1137 = vst [vmem:[#allocation2 + $0x2d8] sm:$0xff] %v1121
        %1138 = vst [vmem:[#allocation2 + $0x2e0] sm:$0xff] %v1122
        %1139 = vst [vmem:[#allocation2 + $0x2e8] sm:$0xff] %v1123
        %1140 = vst [vmem:[#allocation2 + $0x2f0] sm:$0xff] %v1124
        %1141 = vst [vmem:[#allocation2 + $0x2f8] sm:$0xff] %v1125
        %v1142 = vld [vmem:[%s410] sm:$0xff]
        %v1143 = vld [vmem:[%s410 + $0x8] sm:$0xff]
        %v1144 = vld [vmem:[%s410 + $0x10] sm:$0xff]
        %v1145 = vld [vmem:[%s410 + $0x18] sm:$0xff]
        %v1146 = vld [vmem:[%s410 + $0x20] sm:$0xff]
        %v1147 = vld [vmem:[%s410 + $0x28] sm:$0xff]
        %v1148 = vld [vmem:[%s410 + $0x30] sm:$0xff]
        %v1149 = vld [vmem:[%s410 + $0x38] sm:$0xff]
        %v1150 = vld [vmem:[%s410 + $0x40] sm:$0xff]
        %1160 = vrot.lane.b32.xlu0 %v1142, 62
        %v1161 = vpop.permute.xlu0 %1160
        %1162 = vrot.lane.b32.xlu0 %v1143, 62
        %v1163 = vpop.permute.xlu0 %1162
        %1164 = vrot.lane.b32.xlu0 %v1144, 62
        %v1165 = vpop.permute.xlu0 %1164
        %1166 = vrot.lane.b32.xlu0 %v1145, 62
        %v1167 = vpop.permute.xlu0 %1166
        %1168 = vrot.lane.b32.xlu0 %v1146, 62
        %v1169 = vpop.permute.xlu0 %1168
        %1170 = vrot.lane.b32.xlu0 %v1147, 62
        %v1171 = vpop.permute.xlu0 %1170
        %1172 = vrot.lane.b32.xlu0 %v1148, 62
        %v1173 = vpop.permute.xlu0 %1172
        %1174 = vrot.lane.b32.xlu0 %v1149, 62
        %v1175 = vpop.permute.xlu0 %1174
        %1176 = vrot.lane.b32.xlu0 %v1150, 62
        %v1177 = vpop.permute.xlu0 %1176
        %vm1178 = vcmask 506880
        %v1179 = vsel %vm1178, %v1161, %v1163
        %v1180 = vsel %vm1178, %v1163, %v1165
        %v1181 = vsel %vm1178, %v1165, %v1167
        %v1182 = vsel %vm1178, %v1167, %v1169
        %v1183 = vsel %vm1178, %v1169, %v1171
        %v1184 = vsel %vm1178, %v1171, %v1173
        %v1185 = vsel %vm1178, %v1173, %v1175
        %v1186 = vsel %vm1178, %v1175, %v1177
        %1195 = vst [vmem:[#allocation2 + $0x300] sm:$0xff] %v1179
        %1196 = vst [vmem:[#allocation2 + $0x308] sm:$0xff] %v1180
        %1197 = vst [vmem:[#allocation2 + $0x310] sm:$0xff] %v1181
        %1198 = vst [vmem:[#allocation2 + $0x318] sm:$0xff] %v1182
        %1199 = vst [vmem:[#allocation2 + $0x320] sm:$0xff] %v1183
        %1200 = vst [vmem:[#allocation2 + $0x328] sm:$0xff] %v1184
        %1201 = vst [vmem:[#allocation2 + $0x330] sm:$0xff] %v1185
        %1202 = vst [vmem:[#allocation2 + $0x338] sm:$0xff] %v1186
        %v1203 = vld [vmem:[%s410] sm:$0xff]
        %v1204 = vld [vmem:[%s410 + $0x8] sm:$0xff]
        %v1205 = vld [vmem:[%s410 + $0x10] sm:$0xff]
        %v1206 = vld [vmem:[%s410 + $0x18] sm:$0xff]
        %v1207 = vld [vmem:[%s410 + $0x20] sm:$0xff]
        %v1208 = vld [vmem:[%s410 + $0x28] sm:$0xff]
        %v1209 = vld [vmem:[%s410 + $0x30] sm:$0xff]
        %v1210 = vld [vmem:[%s410 + $0x38] sm:$0xff]
        %v1211 = vld [vmem:[%s410 + $0x40] sm:$0xff]
        %1221 = vrot.lane.b32.xlu0 %v1203, 61
        %v1222 = vpop.permute.xlu0 %1221
        %1223 = vrot.lane.b32.xlu0 %v1204, 61
        %v1224 = vpop.permute.xlu0 %1223
        %1225 = vrot.lane.b32.xlu0 %v1205, 61
        %v1226 = vpop.permute.xlu0 %1225
        %1227 = vrot.lane.b32.xlu0 %v1206, 61
        %v1228 = vpop.permute.xlu0 %1227
        %1229 = vrot.lane.b32.xlu0 %v1207, 61
        %v1230 = vpop.permute.xlu0 %1229
        %1231 = vrot.lane.b32.xlu0 %v1208, 61
        %v1232 = vpop.permute.xlu0 %1231
        %1233 = vrot.lane.b32.xlu0 %v1209, 61
        %v1234 = vpop.permute.xlu0 %1233
        %1235 = vrot.lane.b32.xlu0 %v1210, 61
        %v1236 = vpop.permute.xlu0 %1235
        %1237 = vrot.lane.b32.xlu0 %v1211, 61
        %v1238 = vpop.permute.xlu0 %1237
        %vm1239 = vcmask 498688
        %v1240 = vsel %vm1239, %v1222, %v1224
        %v1241 = vsel %vm1239, %v1224, %v1226
        %v1242 = vsel %vm1239, %v1226, %v1228
        %v1243 = vsel %vm1239, %v1228, %v1230
        %v1244 = vsel %vm1239, %v1230, %v1232
        %v1245 = vsel %vm1239, %v1232, %v1234
        %v1246 = vsel %vm1239, %v1234, %v1236
        %v1247 = vsel %vm1239, %v1236, %v1238
        %1256 = vst [vmem:[#allocation2 + $0x340] sm:$0xff] %v1240
        %1257 = vst [vmem:[#allocation2 + $0x348] sm:$0xff] %v1241
        %1258 = vst [vmem:[#allocation2 + $0x350] sm:$0xff] %v1242
        %1259 = vst [vmem:[#allocation2 + $0x358] sm:$0xff] %v1243
        %1260 = vst [vmem:[#allocation2 + $0x360] sm:$0xff] %v1244
        %1261 = vst [vmem:[#allocation2 + $0x368] sm:$0xff] %v1245
        %1262 = vst [vmem:[#allocation2 + $0x370] sm:$0xff] %v1246
        %1263 = vst [vmem:[#allocation2 + $0x378] sm:$0xff] %v1247
        %v1264 = vld [vmem:[%s410] sm:$0xff]
        %v1265 = vld [vmem:[%s410 + $0x8] sm:$0xff]
        %v1266 = vld [vmem:[%s410 + $0x10] sm:$0xff]
        %v1267 = vld [vmem:[%s410 + $0x18] sm:$0xff]
        %v1268 = vld [vmem:[%s410 + $0x20] sm:$0xff]
        %v1269 = vld [vmem:[%s410 + $0x28] sm:$0xff]
        %v1270 = vld [vmem:[%s410 + $0x30] sm:$0xff]
        %v1271 = vld [vmem:[%s410 + $0x38] sm:$0xff]
        %v1272 = vld [vmem:[%s410 + $0x40] sm:$0xff]
        %1282 = vrot.lane.b32.xlu0 %v1264, 60
        %v1283 = vpop.permute.xlu0 %1282
        %1284 = vrot.lane.b32.xlu0 %v1265, 60
        %v1285 = vpop.permute.xlu0 %1284
        %1286 = vrot.lane.b32.xlu0 %v1266, 60
        %v1287 = vpop.permute.xlu0 %1286
        %1288 = vrot.lane.b32.xlu0 %v1267, 60
        %v1289 = vpop.permute.xlu0 %1288
        %1290 = vrot.lane.b32.xlu0 %v1268, 60
        %v1291 = vpop.permute.xlu0 %1290
        %1292 = vrot.lane.b32.xlu0 %v1269, 60
        %v1293 = vpop.permute.xlu0 %1292
        %1294 = vrot.lane.b32.xlu0 %v1270, 60
        %v1295 = vpop.permute.xlu0 %1294
        %1296 = vrot.lane.b32.xlu0 %v1271, 60
        %v1297 = vpop.permute.xlu0 %1296
        %1298 = vrot.lane.b32.xlu0 %v1272, 60
        %v1299 = vpop.permute.xlu0 %1298
        %vm1300 = vcmask 490496
        %v1301 = vsel %vm1300, %v1283, %v1285
        %v1302 = vsel %vm1300, %v1285, %v1287
        %v1303 = vsel %vm1300, %v1287, %v1289
        %v1304 = vsel %vm1300, %v1289, %v1291
        %v1305 = vsel %vm1300, %v1291, %v1293
        %v1306 = vsel %vm1300, %v1293, %v1295
        %v1307 = vsel %vm1300, %v1295, %v1297
        %v1308 = vsel %vm1300, %v1297, %v1299
        %1317 = vst [vmem:[#allocation2 + $0x380] sm:$0xff] %v1301
        %1318 = vst [vmem:[#allocation2 + $0x388] sm:$0xff] %v1302
        %1319 = vst [vmem:[#allocation2 + $0x390] sm:$0xff] %v1303
        %1320 = vst [vmem:[#allocation2 + $0x398] sm:$0xff] %v1304
        %1321 = vst [vmem:[#allocation2 + $0x3a0] sm:$0xff] %v1305
        %1322 = vst [vmem:[#allocation2 + $0x3a8] sm:$0xff] %v1306
        %1323 = vst [vmem:[#allocation2 + $0x3b0] sm:$0xff] %v1307
        %1324 = vst [vmem:[#allocation2 + $0x3b8] sm:$0xff] %v1308
        %v1325 = vld [vmem:[%s410] sm:$0xff]
        %v1326 = vld [vmem:[%s410 + $0x8] sm:$0xff]
        %v1327 = vld [vmem:[%s410 + $0x10] sm:$0xff]
        %v1328 = vld [vmem:[%s410 + $0x18] sm:$0xff]
        %v1329 = vld [vmem:[%s410 + $0x20] sm:$0xff]
        %v1330 = vld [vmem:[%s410 + $0x28] sm:$0xff]
        %v1331 = vld [vmem:[%s410 + $0x30] sm:$0xff]
        %v1332 = vld [vmem:[%s410 + $0x38] sm:$0xff]
        %v1333 = vld [vmem:[%s410 + $0x40] sm:$0xff]
        %1343 = vrot.lane.b32.xlu0 %v1325, 32
        %v1344 = vpop.permute.xlu0 %1343
        %1345 = vrot.lane.b32.xlu0 %v1326, 32
        %v1346 = vpop.permute.xlu0 %1345
        %1347 = vrot.lane.b32.xlu0 %v1327, 32
        %v1348 = vpop.permute.xlu0 %1347
        %1349 = vrot.lane.b32.xlu0 %v1328, 32
        %v1350 = vpop.permute.xlu0 %1349
        %1351 = vrot.lane.b32.xlu0 %v1329, 32
        %v1352 = vpop.permute.xlu0 %1351
        %1353 = vrot.lane.b32.xlu0 %v1330, 32
        %v1354 = vpop.permute.xlu0 %1353
        %1355 = vrot.lane.b32.xlu0 %v1331, 32
        %v1356 = vpop.permute.xlu0 %1355
        %1357 = vrot.lane.b32.xlu0 %v1332, 32
        %v1358 = vpop.permute.xlu0 %1357
        %1359 = vrot.lane.b32.xlu0 %v1333, 32
        %v1360 = vpop.permute.xlu0 %1359
        %vm1361 = vcmask 261120
        %v1362 = vsel %vm1361, %v1344, %v1346
        %v1363 = vsel %vm1361, %v1346, %v1348
        %v1364 = vsel %vm1361, %v1348, %v1350
        %v1365 = vsel %vm1361, %v1350, %v1352
        %v1366 = vsel %vm1361, %v1352, %v1354
        %v1367 = vsel %vm1361, %v1354, %v1356
        %v1368 = vsel %vm1361, %v1356, %v1358
        %v1369 = vsel %vm1361, %v1358, %v1360
        %1378 = vst [vmem:[#allocation2 + $0x3c0] sm:$0xff] %v1362
        %1379 = vst [vmem:[#allocation2 + $0x3c8] sm:$0xff] %v1363
        %1380 = vst [vmem:[#allocation2 + $0x3d0] sm:$0xff] %v1364
        %1381 = vst [vmem:[#allocation2 + $0x3d8] sm:$0xff] %v1365
        %1382 = vst [vmem:[#allocation2 + $0x3e0] sm:$0xff] %v1366
        %1383 = vst [vmem:[#allocation2 + $0x3e8] sm:$0xff] %v1367
        %1384 = vst [vmem:[#allocation2 + $0x3f0] sm:$0xff] %v1368
        %1385 = vst [vmem:[#allocation2 + $0x3f8] sm:$0xff] %v1369
        %v1386 = vld [vmem:[%s410] sm:$0xff]
        %v1387 = vld [vmem:[%s410 + $0x8] sm:$0xff]
        %v1388 = vld [vmem:[%s410 + $0x10] sm:$0xff]
        %v1389 = vld [vmem:[%s410 + $0x18] sm:$0xff]
        %v1390 = vld [vmem:[%s410 + $0x20] sm:$0xff]
        %v1391 = vld [vmem:[%s410 + $0x28] sm:$0xff]
        %v1392 = vld [vmem:[%s410 + $0x30] sm:$0xff]
        %v1393 = vld [vmem:[%s410 + $0x38] sm:$0xff]
        %v1394 = vld [vmem:[%s410 + $0x40] sm:$0xff]
        %1404 = vrot.lane.b32.xlu0 %v1386, 31
        %v1405 = vpop.permute.xlu0 %1404
        %1406 = vrot.lane.b32.xlu0 %v1387, 31
        %v1407 = vpop.permute.xlu0 %1406
        %1408 = vrot.lane.b32.xlu0 %v1388, 31
        %v1409 = vpop.permute.xlu0 %1408
        %1410 = vrot.lane.b32.xlu0 %v1389, 31
        %v1411 = vpop.permute.xlu0 %1410
        %1412 = vrot.lane.b32.xlu0 %v1390, 31
        %v1413 = vpop.permute.xlu0 %1412
        %1414 = vrot.lane.b32.xlu0 %v1391, 31
        %v1415 = vpop.permute.xlu0 %1414
        %1416 = vrot.lane.b32.xlu0 %v1392, 31
        %v1417 = vpop.permute.xlu0 %1416
        %1418 = vrot.lane.b32.xlu0 %v1393, 31
        %v1419 = vpop.permute.xlu0 %1418
        %1420 = vrot.lane.b32.xlu0 %v1394, 31
        %v1421 = vpop.permute.xlu0 %1420
        %vm1422 = vcmask 252928
        %v1423 = vsel %vm1422, %v1405, %v1407
        %v1424 = vsel %vm1422, %v1407, %v1409
        %v1425 = vsel %vm1422, %v1409, %v1411
        %v1426 = vsel %vm1422, %v1411, %v1413
        %v1427 = vsel %vm1422, %v1413, %v1415
        %v1428 = vsel %vm1422, %v1415, %v1417
        %v1429 = vsel %vm1422, %v1417, %v1419
        %v1430 = vsel %vm1422, %v1419, %v1421
        %1439 = vst [vmem:[#allocation2 + $0x400] sm:$0xff] %v1423
        %1440 = vst [vmem:[#allocation2 + $0x408] sm:$0xff] %v1424
        %1441 = vst [vmem:[#allocation2 + $0x410] sm:$0xff] %v1425
        %1442 = vst [vmem:[#allocation2 + $0x418] sm:$0xff] %v1426
        %1443 = vst [vmem:[#allocation2 + $0x420] sm:$0xff] %v1427
        %1444 = vst [vmem:[#allocation2 + $0x428] sm:$0xff] %v1428
        %1445 = vst [vmem:[#allocation2 + $0x430] sm:$0xff] %v1429
        %1446 = vst [vmem:[#allocation2 + $0x438] sm:$0xff] %v1430
        %v1447 = vld [vmem:[%s410] sm:$0xff]
        %v1448 = vld [vmem:[%s410 + $0x8] sm:$0xff]
        %v1449 = vld [vmem:[%s410 + $0x10] sm:$0xff]
        %v1450 = vld [vmem:[%s410 + $0x18] sm:$0xff]
        %v1451 = vld [vmem:[%s410 + $0x20] sm:$0xff]
        %v1452 = vld [vmem:[%s410 + $0x28] sm:$0xff]
        %v1453 = vld [vmem:[%s410 + $0x30] sm:$0xff]
        %v1454 = vld [vmem:[%s410 + $0x38] sm:$0xff]
        %v1455 = vld [vmem:[%s410 + $0x40] sm:$0xff]
        %1465 = vrot.lane.b32.xlu0 %v1447, 30
        %v1466 = vpop.permute.xlu0 %1465
        %1467 = vrot.lane.b32.xlu0 %v1448, 30
        %v1468 = vpop.permute.xlu0 %1467
        %1469 = vrot.lane.b32.xlu0 %v1449, 30
        %v1470 = vpop.permute.xlu0 %1469
        %1471 = vrot.lane.b32.xlu0 %v1450, 30
        %v1472 = vpop.permute.xlu0 %1471
        %1473 = vrot.lane.b32.xlu0 %v1451, 30
        %v1474 = vpop.permute.xlu0 %1473
        %1475 = vrot.lane.b32.xlu0 %v1452, 30
        %v1476 = vpop.permute.xlu0 %1475
        %1477 = vrot.lane.b32.xlu0 %v1453, 30
        %v1478 = vpop.permute.xlu0 %1477
        %1479 = vrot.lane.b32.xlu0 %v1454, 30
        %v1480 = vpop.permute.xlu0 %1479
        %1481 = vrot.lane.b32.xlu0 %v1455, 30
        %v1482 = vpop.permute.xlu0 %1481
        %vm1483 = vcmask 244736
        %v1484 = vsel %vm1483, %v1466, %v1468
        %v1485 = vsel %vm1483, %v1468, %v1470
        %v1486 = vsel %vm1483, %v1470, %v1472
        %v1487 = vsel %vm1483, %v1472, %v1474
        %v1488 = vsel %vm1483, %v1474, %v1476
        %v1489 = vsel %vm1483, %v1476, %v1478
        %v1490 = vsel %vm1483, %v1478, %v1480
        %v1491 = vsel %vm1483, %v1480, %v1482
        %1500 = vst [vmem:[#allocation2 + $0x440] sm:$0xff] %v1484
        %1501 = vst [vmem:[#allocation2 + $0x448] sm:$0xff] %v1485
        %1502 = vst [vmem:[#allocation2 + $0x450] sm:$0xff] %v1486
        %1503 = vst [vmem:[#allocation2 + $0x458] sm:$0xff] %v1487
        %1504 = vst [vmem:[#allocation2 + $0x460] sm:$0xff] %v1488
        %1505 = vst [vmem:[#allocation2 + $0x468] sm:$0xff] %v1489
        %1506 = vst [vmem:[#allocation2 + $0x470] sm:$0xff] %v1490
        %1507 = vst [vmem:[#allocation2 + $0x478] sm:$0xff] %v1491
        %v1508 = vld [vmem:[%s410] sm:$0xff]
        %v1509 = vld [vmem:[%s410 + $0x8] sm:$0xff]
        %v1510 = vld [vmem:[%s410 + $0x10] sm:$0xff]
        %v1511 = vld [vmem:[%s410 + $0x18] sm:$0xff]
        %v1512 = vld [vmem:[%s410 + $0x20] sm:$0xff]
        %v1513 = vld [vmem:[%s410 + $0x28] sm:$0xff]
        %v1514 = vld [vmem:[%s410 + $0x30] sm:$0xff]
        %v1515 = vld [vmem:[%s410 + $0x38] sm:$0xff]
        %v1516 = vld [vmem:[%s410 + $0x40] sm:$0xff]
        %1526 = vrot.lane.b32.xlu0 %v1508, 29
        %v1527 = vpop.permute.xlu0 %1526
        %1528 = vrot.lane.b32.xlu0 %v1509, 29
        %v1529 = vpop.permute.xlu0 %1528
        %1530 = vrot.lane.b32.xlu0 %v1510, 29
        %v1531 = vpop.permute.xlu0 %1530
        %1532 = vrot.lane.b32.xlu0 %v1511, 29
        %v1533 = vpop.permute.xlu0 %1532
        %1534 = vrot.lane.b32.xlu0 %v1512, 29
        %v1535 = vpop.permute.xlu0 %1534
        %1536 = vrot.lane.b32.xlu0 %v1513, 29
        %v1537 = vpop.permute.xlu0 %1536
        %1538 = vrot.lane.b32.xlu0 %v1514, 29
        %v1539 = vpop.permute.xlu0 %1538
        %1540 = vrot.lane.b32.xlu0 %v1515, 29
        %v1541 = vpop.permute.xlu0 %1540
        %1542 = vrot.lane.b32.xlu0 %v1516, 29
        %v1543 = vpop.permute.xlu0 %1542
        %vm1544 = vcmask 236544
        %v1545 = vsel %vm1544, %v1527, %v1529
        %v1546 = vsel %vm1544, %v1529, %v1531
        %v1547 = vsel %vm1544, %v1531, %v1533
        %v1548 = vsel %vm1544, %v1533, %v1535
        %v1549 = vsel %vm1544, %v1535, %v1537
        %v1550 = vsel %vm1544, %v1537, %v1539
        %v1551 = vsel %vm1544, %v1539, %v1541
        %v1552 = vsel %vm1544, %v1541, %v1543
        %1561 = vst [vmem:[#allocation2 + $0x480] sm:$0xff] %v1545
        %1562 = vst [vmem:[#allocation2 + $0x488] sm:$0xff] %v1546
        %1563 = vst [vmem:[#allocation2 + $0x490] sm:$0xff] %v1547
        %1564 = vst [vmem:[#allocation2 + $0x498] sm:$0xff] %v1548
        %1565 = vst [vmem:[#allocation2 + $0x4a0] sm:$0xff] %v1549
        %1566 = vst [vmem:[#allocation2 + $0x4a8] sm:$0xff] %v1550
        %1567 = vst [vmem:[#allocation2 + $0x4b0] sm:$0xff] %v1551
        %1568 = vst [vmem:[#allocation2 + $0x4b8] sm:$0xff] %v1552
        %v1569 = vld [vmem:[%s410] sm:$0xff]
        %v1570 = vld [vmem:[%s410 + $0x8] sm:$0xff]
        %v1571 = vld [vmem:[%s410 + $0x10] sm:$0xff]
        %v1572 = vld [vmem:[%s410 + $0x18] sm:$0xff]
        %v1573 = vld [vmem:[%s410 + $0x20] sm:$0xff]
        %v1574 = vld [vmem:[%s410 + $0x28] sm:$0xff]
        %v1575 = vld [vmem:[%s410 + $0x30] sm:$0xff]
        %v1576 = vld [vmem:[%s410 + $0x38] sm:$0xff]
        %v1577 = vld [vmem:[%s410 + $0x40] sm:$0xff]
        %1587 = vrot.lane.b32.xlu0 %v1569, 28
        %v1588 = vpop.permute.xlu0 %1587
        %1589 = vrot.lane.b32.xlu0 %v1570, 28
        %v1590 = vpop.permute.xlu0 %1589
        %1591 = vrot.lane.b32.xlu0 %v1571, 28
        %v1592 = vpop.permute.xlu0 %1591
        %1593 = vrot.lane.b32.xlu0 %v1572, 28
        %v1594 = vpop.permute.xlu0 %1593
        %1595 = vrot.lane.b32.xlu0 %v1573, 28
        %v1596 = vpop.permute.xlu0 %1595
        %1597 = vrot.lane.b32.xlu0 %v1574, 28
        %v1598 = vpop.permute.xlu0 %1597
        %1599 = vrot.lane.b32.xlu0 %v1575, 28
        %v1600 = vpop.permute.xlu0 %1599
        %1601 = vrot.lane.b32.xlu0 %v1576, 28
        %v1602 = vpop.permute.xlu0 %1601
        %1603 = vrot.lane.b32.xlu0 %v1577, 28
        %v1604 = vpop.permute.xlu0 %1603
        %vm1605 = vcmask 228352
        %v1606 = vsel %vm1605, %v1588, %v1590
        %v1607 = vsel %vm1605, %v1590, %v1592
        %v1608 = vsel %vm1605, %v1592, %v1594
        %v1609 = vsel %vm1605, %v1594, %v1596
        %v1610 = vsel %vm1605, %v1596, %v1598
        %v1611 = vsel %vm1605, %v1598, %v1600
        %v1612 = vsel %vm1605, %v1600, %v1602
        %v1613 = vsel %vm1605, %v1602, %v1604
        %1622 = vst [vmem:[#allocation2 + $0x4c0] sm:$0xff] %v1606
        %1623 = vst [vmem:[#allocation2 + $0x4c8] sm:$0xff] %v1607
        %1624 = vst [vmem:[#allocation2 + $0x4d0] sm:$0xff] %v1608
        %1625 = vst [vmem:[#allocation2 + $0x4d8] sm:$0xff] %v1609
        %1626 = vst [vmem:[#allocation2 + $0x4e0] sm:$0xff] %v1610
        %1627 = vst [vmem:[#allocation2 + $0x4e8] sm:$0xff] %v1611
        %1628 = vst [vmem:[#allocation2 + $0x4f0] sm:$0xff] %v1612
        %1629 = vst [vmem:[#allocation2 + $0x4f8] sm:$0xff] %v1613
        %v1630 = vld [vmem:[%s410 + $0x8] sm:$0xff]
        %v1631 = vld [vmem:[%s410 + $0x10] sm:$0xff]
        %v1632 = vld [vmem:[%s410 + $0x18] sm:$0xff]
        %v1633 = vld [vmem:[%s410 + $0x20] sm:$0xff]
        %v1634 = vld [vmem:[%s410 + $0x28] sm:$0xff]
        %v1635 = vld [vmem:[%s410 + $0x30] sm:$0xff]
        %v1636 = vld [vmem:[%s410 + $0x38] sm:$0xff]
        %v1637 = vld [vmem:[%s410 + $0x40] sm:$0xff]
        %1638 = vst [vmem:[#allocation2 + $0x500] sm:$0xff] %v1630
        %1639 = vst [vmem:[#allocation2 + $0x508] sm:$0xff] %v1631
        %1640 = vst [vmem:[#allocation2 + $0x510] sm:$0xff] %v1632
        %1641 = vst [vmem:[#allocation2 + $0x518] sm:$0xff] %v1633
        %1642 = vst [vmem:[#allocation2 + $0x520] sm:$0xff] %v1634
        %1643 = vst [vmem:[#allocation2 + $0x528] sm:$0xff] %v1635
        %1644 = vst [vmem:[#allocation2 + $0x530] sm:$0xff] %v1636
        %1645 = vst [vmem:[#allocation2 + $0x538] sm:$0xff] %v1637
        %v1646 = vld [vmem:[%s410 + $0x8] sm:$0xff]
        %v1647 = vld [vmem:[%s410 + $0x10] sm:$0xff]
        %v1648 = vld [vmem:[%s410 + $0x18] sm:$0xff]
        %v1649 = vld [vmem:[%s410 + $0x20] sm:$0xff]
        %v1650 = vld [vmem:[%s410 + $0x28] sm:$0xff]
        %v1651 = vld [vmem:[%s410 + $0x30] sm:$0xff]
        %v1652 = vld [vmem:[%s410 + $0x38] sm:$0xff]
        %v1653 = vld [vmem:[%s410 + $0x40] sm:$0xff]
        %v1654 = vld [vmem:[%s410 + $0x48] sm:$0xff]
        %1664 = vrot.lane.b32.xlu0 %v1646, 127
        %v1665 = vpop.permute.xlu0 %1664
        %1666 = vrot.lane.b32.xlu0 %v1647, 127
        %v1667 = vpop.permute.xlu0 %1666
        %1668 = vrot.lane.b32.xlu0 %v1648, 127
        %v1669 = vpop.permute.xlu0 %1668
        %1670 = vrot.lane.b32.xlu0 %v1649, 127
        %v1671 = vpop.permute.xlu0 %1670
        %1672 = vrot.lane.b32.xlu0 %v1650, 127
        %v1673 = vpop.permute.xlu0 %1672
        %1674 = vrot.lane.b32.xlu0 %v1651, 127
        %v1675 = vpop.permute.xlu0 %1674
        %1676 = vrot.lane.b32.xlu0 %v1652, 127
        %v1677 = vpop.permute.xlu0 %1676
        %1678 = vrot.lane.b32.xlu0 %v1653, 127
        %v1679 = vpop.permute.xlu0 %1678
        %1680 = vrot.lane.b32.xlu0 %v1654, 127
        %v1681 = vpop.permute.xlu0 %1680
        %v1682 = vsel %vm507, %v1665, %v1667
        %v1683 = vsel %vm507, %v1667, %v1669
        %v1684 = vsel %vm507, %v1669, %v1671
        %v1685 = vsel %vm507, %v1671, %v1673
        %v1686 = vsel %vm507, %v1673, %v1675
        %v1687 = vsel %vm507, %v1675, %v1677
        %v1688 = vsel %vm507, %v1677, %v1679
        %v1689 = vsel %vm507, %v1679, %v1681
        %1698 = vst [vmem:[#allocation2 + $0x540] sm:$0xff] %v1682
        %1699 = vst [vmem:[#allocation2 + $0x548] sm:$0xff] %v1683
        %1700 = vst [vmem:[#allocation2 + $0x550] sm:$0xff] %v1684
        %1701 = vst [vmem:[#allocation2 + $0x558] sm:$0xff] %v1685
        %1702 = vst [vmem:[#allocation2 + $0x560] sm:$0xff] %v1686
        %1703 = vst [vmem:[#allocation2 + $0x568] sm:$0xff] %v1687
        %1704 = vst [vmem:[#allocation2 + $0x570] sm:$0xff] %v1688
        %1705 = vst [vmem:[#allocation2 + $0x578] sm:$0xff] %v1689
        %v1706 = vld [vmem:[%s410 + $0x8] sm:$0xff]
        %v1707 = vld [vmem:[%s410 + $0x10] sm:$0xff]
        %v1708 = vld [vmem:[%s410 + $0x18] sm:$0xff]
        %v1709 = vld [vmem:[%s410 + $0x20] sm:$0xff]
        %v1710 = vld [vmem:[%s410 + $0x28] sm:$0xff]
        %v1711 = vld [vmem:[%s410 + $0x30] sm:$0xff]
        %v1712 = vld [vmem:[%s410 + $0x38] sm:$0xff]
        %v1713 = vld [vmem:[%s410 + $0x40] sm:$0xff]
        %v1714 = vld [vmem:[%s410 + $0x48] sm:$0xff]
        %1724 = vrot.lane.b32.xlu0 %v1706, 126
        %v1725 = vpop.permute.xlu0 %1724
        %1726 = vrot.lane.b32.xlu0 %v1707, 126
        %v1727 = vpop.permute.xlu0 %1726
        %1728 = vrot.lane.b32.xlu0 %v1708, 126
        %v1729 = vpop.permute.xlu0 %1728
        %1730 = vrot.lane.b32.xlu0 %v1709, 126
        %v1731 = vpop.permute.xlu0 %1730
        %1732 = vrot.lane.b32.xlu0 %v1710, 126
        %v1733 = vpop.permute.xlu0 %1732
        %1734 = vrot.lane.b32.xlu0 %v1711, 126
        %v1735 = vpop.permute.xlu0 %1734
        %1736 = vrot.lane.b32.xlu0 %v1712, 126
        %v1737 = vpop.permute.xlu0 %1736
        %1738 = vrot.lane.b32.xlu0 %v1713, 126
        %v1739 = vpop.permute.xlu0 %1738
        %1740 = vrot.lane.b32.xlu0 %v1714, 126
        %v1741 = vpop.permute.xlu0 %1740
        %v1742 = vsel %vm568, %v1725, %v1727
        %v1743 = vsel %vm568, %v1727, %v1729
        %v1744 = vsel %vm568, %v1729, %v1731
        %v1745 = vsel %vm568, %v1731, %v1733
        %v1746 = vsel %vm568, %v1733, %v1735
        %v1747 = vsel %vm568, %v1735, %v1737
        %v1748 = vsel %vm568, %v1737, %v1739
        %v1749 = vsel %vm568, %v1739, %v1741
        %1758 = vst [vmem:[#allocation2 + $0x580] sm:$0xff] %v1742
        %1759 = vst [vmem:[#allocation2 + $0x588] sm:$0xff] %v1743
        %1760 = vst [vmem:[#allocation2 + $0x590] sm:$0xff] %v1744
        %1761 = vst [vmem:[#allocation2 + $0x598] sm:$0xff] %v1745
        %1762 = vst [vmem:[#allocation2 + $0x5a0] sm:$0xff] %v1746
        %1763 = vst [vmem:[#allocation2 + $0x5a8] sm:$0xff] %v1747
        %1764 = vst [vmem:[#allocation2 + $0x5b0] sm:$0xff] %v1748
        %1765 = vst [vmem:[#allocation2 + $0x5b8] sm:$0xff] %v1749
        %v1766 = vld [vmem:[%s410 + $0x8] sm:$0xff]
        %v1767 = vld [vmem:[%s410 + $0x10] sm:$0xff]
        %v1768 = vld [vmem:[%s410 + $0x18] sm:$0xff]
        %v1769 = vld [vmem:[%s410 + $0x20] sm:$0xff]
        %v1770 = vld [vmem:[%s410 + $0x28] sm:$0xff]
        %v1771 = vld [vmem:[%s410 + $0x30] sm:$0xff]
        %v1772 = vld [vmem:[%s410 + $0x38] sm:$0xff]
        %v1773 = vld [vmem:[%s410 + $0x40] sm:$0xff]
        %v1774 = vld [vmem:[%s410 + $0x48] sm:$0xff]
        %1784 = vrot.lane.b32.xlu0 %v1766, 125
        %v1785 = vpop.permute.xlu0 %1784
        %1786 = vrot.lane.b32.xlu0 %v1767, 125
        %v1787 = vpop.permute.xlu0 %1786
        %1788 = vrot.lane.b32.xlu0 %v1768, 125
        %v1789 = vpop.permute.xlu0 %1788
        %1790 = vrot.lane.b32.xlu0 %v1769, 125
        %v1791 = vpop.permute.xlu0 %1790
        %1792 = vrot.lane.b32.xlu0 %v1770, 125
        %v1793 = vpop.permute.xlu0 %1792
        %1794 = vrot.lane.b32.xlu0 %v1771, 125
        %v1795 = vpop.permute.xlu0 %1794
        %1796 = vrot.lane.b32.xlu0 %v1772, 125
        %v1797 = vpop.permute.xlu0 %1796
        %1798 = vrot.lane.b32.xlu0 %v1773, 125
        %v1799 = vpop.permute.xlu0 %1798
        %1800 = vrot.lane.b32.xlu0 %v1774, 125
        %v1801 = vpop.permute.xlu0 %1800
        %v1802 = vsel %vm629, %v1785, %v1787
        %v1803 = vsel %vm629, %v1787, %v1789
        %v1804 = vsel %vm629, %v1789, %v1791
        %v1805 = vsel %vm629, %v1791, %v1793
        %v1806 = vsel %vm629, %v1793, %v1795
        %v1807 = vsel %vm629, %v1795, %v1797
        %v1808 = vsel %vm629, %v1797, %v1799
        %v1809 = vsel %vm629, %v1799, %v1801
        %1818 = vst [vmem:[#allocation2 + $0x5c0] sm:$0xff] %v1802
        %1819 = vst [vmem:[#allocation2 + $0x5c8] sm:$0xff] %v1803
        %1820 = vst [vmem:[#allocation2 + $0x5d0] sm:$0xff] %v1804
        %1821 = vst [vmem:[#allocation2 + $0x5d8] sm:$0xff] %v1805
        %1822 = vst [vmem:[#allocation2 + $0x5e0] sm:$0xff] %v1806
        %1823 = vst [vmem:[#allocation2 + $0x5e8] sm:$0xff] %v1807
        %1824 = vst [vmem:[#allocation2 + $0x5f0] sm:$0xff] %v1808
        %1825 = vst [vmem:[#allocation2 + $0x5f8] sm:$0xff] %v1809
        %v1826 = vld [vmem:[%s410 + $0x8] sm:$0xff]
        %v1827 = vld [vmem:[%s410 + $0x10] sm:$0xff]
        %v1828 = vld [vmem:[%s410 + $0x18] sm:$0xff]
        %v1829 = vld [vmem:[%s410 + $0x20] sm:$0xff]
        %v1830 = vld [vmem:[%s410 + $0x28] sm:$0xff]
        %v1831 = vld [vmem:[%s410 + $0x30] sm:$0xff]
        %v1832 = vld [vmem:[%s410 + $0x38] sm:$0xff]
        %v1833 = vld [vmem:[%s410 + $0x40] sm:$0xff]
        %v1834 = vld [vmem:[%s410 + $0x48] sm:$0xff]
        %1844 = vrot.lane.b32.xlu0 %v1826, 124
        %v1845 = vpop.permute.xlu0 %1844
        %1846 = vrot.lane.b32.xlu0 %v1827, 124
        %v1847 = vpop.permute.xlu0 %1846
        %1848 = vrot.lane.b32.xlu0 %v1828, 124
        %v1849 = vpop.permute.xlu0 %1848
        %1850 = vrot.lane.b32.xlu0 %v1829, 124
        %v1851 = vpop.permute.xlu0 %1850
        %1852 = vrot.lane.b32.xlu0 %v1830, 124
        %v1853 = vpop.permute.xlu0 %1852
        %1854 = vrot.lane.b32.xlu0 %v1831, 124
        %v1855 = vpop.permute.xlu0 %1854
        %1856 = vrot.lane.b32.xlu0 %v1832, 124
        %v1857 = vpop.permute.xlu0 %1856
        %1858 = vrot.lane.b32.xlu0 %v1833, 124
        %v1859 = vpop.permute.xlu0 %1858
        %1860 = vrot.lane.b32.xlu0 %v1834, 124
        %v1861 = vpop.permute.xlu0 %1860
        %v1862 = vsel %vm690, %v1845, %v1847
        %v1863 = vsel %vm690, %v1847, %v1849
        %v1864 = vsel %vm690, %v1849, %v1851
        %v1865 = vsel %vm690, %v1851, %v1853
        %v1866 = vsel %vm690, %v1853, %v1855
        %v1867 = vsel %vm690, %v1855, %v1857
        %v1868 = vsel %vm690, %v1857, %v1859
        %v1869 = vsel %vm690, %v1859, %v1861
        %1878 = vst [vmem:[#allocation2 + $0x600] sm:$0xff] %v1862
        %1879 = vst [vmem:[#allocation2 + $0x608] sm:$0xff] %v1863
        %1880 = vst [vmem:[#allocation2 + $0x610] sm:$0xff] %v1864
        %1881 = vst [vmem:[#allocation2 + $0x618] sm:$0xff] %v1865
        %1882 = vst [vmem:[#allocation2 + $0x620] sm:$0xff] %v1866
        %1883 = vst [vmem:[#allocation2 + $0x628] sm:$0xff] %v1867
        %1884 = vst [vmem:[#allocation2 + $0x630] sm:$0xff] %v1868
        %1885 = vst [vmem:[#allocation2 + $0x638] sm:$0xff] %v1869
        %v1886 = vld [vmem:[%s1] sm:$0x3f]
        %v1887 = vld [vmem:[%s1 + $0x8] sm:$0x3f]
        %v1888 = vld [vmem:[#allocation2] sm:$0xff]
        %v1889 = vld [vmem:[#allocation2 + $0x8] sm:$0xff]
        %v1890 = vld [vmem:[#allocation2 + $0x10] sm:$0xff]
        %v1891 = vld [vmem:[#allocation2 + $0x18] sm:$0xff]
        %v1892 = vld [vmem:[#allocation2 + $0x20] sm:$0xff]
        %v1893 = vld [vmem:[#allocation2 + $0x28] sm:$0xff]
        %v1894 = vld [vmem:[#allocation2 + $0x30] sm:$0xff]
        %v1895 = vld [vmem:[#allocation2 + $0x38] sm:$0xff]
        %v1896 = vld [vmem:[#allocation2 + $0x40] sm:$0xff]
        %v1897 = vld [vmem:[#allocation2 + $0x48] sm:$0xff]
        %v1898 = vld [vmem:[#allocation2 + $0x50] sm:$0xff]
        %v1899 = vld [vmem:[#allocation2 + $0x58] sm:$0xff]
        %v1900 = vld [vmem:[#allocation2 + $0x60] sm:$0xff]
        %v1901 = vld [vmem:[#allocation2 + $0x68] sm:$0xff]
        %v1902 = vld [vmem:[#allocation2 + $0x70] sm:$0xff]
        %v1903 = vld [vmem:[#allocation2 + $0x78] sm:$0xff]
        %v1904 = vld [vmem:[#allocation2 + $0x80] sm:$0xff]
        %v1905 = vld [vmem:[#allocation2 + $0x88] sm:$0xff]
        %v1906 = vld [vmem:[#allocation2 + $0x90] sm:$0xff]
        %v1907 = vld [vmem:[#allocation2 + $0x98] sm:$0xff]
        %v1908 = vld [vmem:[#allocation2 + $0xa0] sm:$0xff]
        %v1909 = vld [vmem:[#allocation2 + $0xa8] sm:$0xff]
        %v1910 = vld [vmem:[#allocation2 + $0xb0] sm:$0xff]
        %v1911 = vld [vmem:[#allocation2 + $0xb8] sm:$0xff]
        %v1912 = vld [vmem:[#allocation2 + $0xc0] sm:$0xff]
        %v1913 = vld [vmem:[#allocation2 + $0xc8] sm:$0xff]
        %v1914 = vld [vmem:[#allocation2 + $0xd0] sm:$0xff]
        %v1915 = vld [vmem:[#allocation2 + $0xd8] sm:$0xff]
        %v1916 = vld [vmem:[#allocation2 + $0xe0] sm:$0xff]
        %v1917 = vld [vmem:[#allocation2 + $0xe8] sm:$0xff]
        %v1918 = vld [vmem:[#allocation2 + $0xf0] sm:$0xff]
        %v1919 = vld [vmem:[#allocation2 + $0xf8] sm:$0xff]
        %v1920 = vld [vmem:[#allocation2 + $0x100] sm:$0xff]
        %v1921 = vld [vmem:[#allocation2 + $0x108] sm:$0xff]
        %v1922 = vld [vmem:[#allocation2 + $0x110] sm:$0xff]
        %v1923 = vld [vmem:[#allocation2 + $0x118] sm:$0xff]
        %v1924 = vld [vmem:[#allocation2 + $0x120] sm:$0xff]
        %v1925 = vld [vmem:[#allocation2 + $0x128] sm:$0xff]
        %v1926 = vld [vmem:[#allocation2 + $0x130] sm:$0xff]
        %v1927 = vld [vmem:[#allocation2 + $0x138] sm:$0xff]
        %v1928 = vld [vmem:[#allocation2 + $0x140] sm:$0xff]
        %v1929 = vld [vmem:[#allocation2 + $0x148] sm:$0xff]
        %v1930 = vld [vmem:[#allocation2 + $0x150] sm:$0xff]
        %v1931 = vld [vmem:[#allocation2 + $0x158] sm:$0xff]
        %v1932 = vld [vmem:[#allocation2 + $0x160] sm:$0xff]
        %v1933 = vld [vmem:[#allocation2 + $0x168] sm:$0xff]
        %v1934 = vld [vmem:[#allocation2 + $0x170] sm:$0xff]
        %v1935 = vld [vmem:[#allocation2 + $0x178] sm:$0xff]
        %v1936 = vld [vmem:[#allocation2 + $0x180] sm:$0xff]
        %v1937 = vld [vmem:[#allocation2 + $0x188] sm:$0xff]
        %v1938 = vld [vmem:[#allocation2 + $0x190] sm:$0xff]
        %v1939 = vld [vmem:[#allocation2 + $0x198] sm:$0xff]
        %v1940 = vld [vmem:[#allocation2 + $0x1a0] sm:$0xff]
        %v1941 = vld [vmem:[#allocation2 + $0x1a8] sm:$0xff]
        %v1942 = vld [vmem:[#allocation2 + $0x1b0] sm:$0xff]
        %v1943 = vld [vmem:[#allocation2 + $0x1b8] sm:$0xff]
        %v1944 = vld [vmem:[#allocation2 + $0x1c0] sm:$0xff]
        %v1945 = vld [vmem:[#allocation2 + $0x1c8] sm:$0xff]
        %v1946 = vld [vmem:[#allocation2 + $0x1d0] sm:$0xff]
        %v1947 = vld [vmem:[#allocation2 + $0x1d8] sm:$0xff]
        %v1948 = vld [vmem:[#allocation2 + $0x1e0] sm:$0xff]
        %v1949 = vld [vmem:[#allocation2 + $0x1e8] sm:$0xff]
        %v1950 = vld [vmem:[#allocation2 + $0x1f0] sm:$0xff]
        %v1951 = vld [vmem:[#allocation2 + $0x1f8] sm:$0xff]
        %v1952 = vld [vmem:[#allocation2 + $0x200] sm:$0xff]
        %v1953 = vld [vmem:[#allocation2 + $0x208] sm:$0xff]
        %v1954 = vld [vmem:[#allocation2 + $0x210] sm:$0xff]
        %v1955 = vld [vmem:[#allocation2 + $0x218] sm:$0xff]
        %v1956 = vld [vmem:[#allocation2 + $0x220] sm:$0xff]
        %v1957 = vld [vmem:[#allocation2 + $0x228] sm:$0xff]
        %v1958 = vld [vmem:[#allocation2 + $0x230] sm:$0xff]
        %v1959 = vld [vmem:[#allocation2 + $0x238] sm:$0xff]
        %v1960 = vld [vmem:[#allocation2 + $0x240] sm:$0xff]
        %v1961 = vld [vmem:[#allocation2 + $0x248] sm:$0xff]
        %v1962 = vld [vmem:[#allocation2 + $0x250] sm:$0xff]
        %v1963 = vld [vmem:[#allocation2 + $0x258] sm:$0xff]
        %v1964 = vld [vmem:[#allocation2 + $0x260] sm:$0xff]
        %v1965 = vld [vmem:[#allocation2 + $0x268] sm:$0xff]
        %v1966 = vld [vmem:[#allocation2 + $0x270] sm:$0xff]
        %v1967 = vld [vmem:[#allocation2 + $0x278] sm:$0xff]
        %v1968 = vld [vmem:[#allocation2 + $0x280] sm:$0xff]
        %v1969 = vld [vmem:[#allocation2 + $0x288] sm:$0xff]
        %v1970 = vld [vmem:[#allocation2 + $0x290] sm:$0xff]
        %v1971 = vld [vmem:[#allocation2 + $0x298] sm:$0xff]
        %v1972 = vld [vmem:[#allocation2 + $0x2a0] sm:$0xff]
        %v1973 = vld [vmem:[#allocation2 + $0x2a8] sm:$0xff]
        %v1974 = vld [vmem:[#allocation2 + $0x2b0] sm:$0xff]
        %v1975 = vld [vmem:[#allocation2 + $0x2b8] sm:$0xff]
        %v1976 = vld [vmem:[#allocation2 + $0x2c0] sm:$0xff]
        %v1977 = vld [vmem:[#allocation2 + $0x2c8] sm:$0xff]
        %v1978 = vld [vmem:[#allocation2 + $0x2d0] sm:$0xff]
        %v1979 = vld [vmem:[#allocation2 + $0x2d8] sm:$0xff]
        %v1980 = vld [vmem:[#allocation2 + $0x2e0] sm:$0xff]
        %v1981 = vld [vmem:[#allocation2 + $0x2e8] sm:$0xff]
        %v1982 = vld [vmem:[#allocation2 + $0x2f0] sm:$0xff]
        %v1983 = vld [vmem:[#allocation2 + $0x2f8] sm:$0xff]
        %v1984 = vld [vmem:[#allocation2 + $0x300] sm:$0xff]
        %v1985 = vld [vmem:[#allocation2 + $0x308] sm:$0xff]
        %v1986 = vld [vmem:[#allocation2 + $0x310] sm:$0xff]
        %v1987 = vld [vmem:[#allocation2 + $0x318] sm:$0xff]
        %v1988 = vld [vmem:[#allocation2 + $0x320] sm:$0xff]
        %v1989 = vld [vmem:[#allocation2 + $0x328] sm:$0xff]
        %v1990 = vld [vmem:[#allocation2 + $0x330] sm:$0xff]
        %v1991 = vld [vmem:[#allocation2 + $0x338] sm:$0xff]
        %v1992 = vld [vmem:[#allocation2 + $0x340] sm:$0xff]
        %v1993 = vld [vmem:[#allocation2 + $0x348] sm:$0xff]
        %v1994 = vld [vmem:[#allocation2 + $0x350] sm:$0xff]
        %v1995 = vld [vmem:[#allocation2 + $0x358] sm:$0xff]
        %v1996 = vld [vmem:[#allocation2 + $0x360] sm:$0xff]
        %v1997 = vld [vmem:[#allocation2 + $0x368] sm:$0xff]
        %v1998 = vld [vmem:[#allocation2 + $0x370] sm:$0xff]
        %v1999 = vld [vmem:[#allocation2 + $0x378] sm:$0xff]
        %v2000 = vld [vmem:[#allocation2 + $0x380] sm:$0xff]
        %v2001 = vld [vmem:[#allocation2 + $0x388] sm:$0xff]
        %v2002 = vld [vmem:[#allocation2 + $0x390] sm:$0xff]
        %v2003 = vld [vmem:[#allocation2 + $0x398] sm:$0xff]
        %v2004 = vld [vmem:[#allocation2 + $0x3a0] sm:$0xff]
        %v2005 = vld [vmem:[#allocation2 + $0x3a8] sm:$0xff]
        %v2006 = vld [vmem:[#allocation2 + $0x3b0] sm:$0xff]
        %v2007 = vld [vmem:[#allocation2 + $0x3b8] sm:$0xff]
        %v2008 = vld [vmem:[#allocation2 + $0x3c0] sm:$0xff]
        %v2009 = vld [vmem:[#allocation2 + $0x3c8] sm:$0xff]
        %v2010 = vld [vmem:[#allocation2 + $0x3d0] sm:$0xff]
        %v2011 = vld [vmem:[#allocation2 + $0x3d8] sm:$0xff]
        %v2012 = vld [vmem:[#allocation2 + $0x3e0] sm:$0xff]
        %v2013 = vld [vmem:[#allocation2 + $0x3e8] sm:$0xff]
        %v2014 = vld [vmem:[#allocation2 + $0x3f0] sm:$0xff]
        %v2015 = vld [vmem:[#allocation2 + $0x3f8] sm:$0xff]
        %v2016 = vld [vmem:[#allocation2 + $0x400] sm:$0xff]
        %v2017 = vld [vmem:[#allocation2 + $0x408] sm:$0xff]
        %v2018 = vld [vmem:[#allocation2 + $0x410] sm:$0xff]
        %v2019 = vld [vmem:[#allocation2 + $0x418] sm:$0xff]
        %v2020 = vld [vmem:[#allocation2 + $0x420] sm:$0xff]
        %v2021 = vld [vmem:[#allocation2 + $0x428] sm:$0xff]
        %v2022 = vld [vmem:[#allocation2 + $0x430] sm:$0xff]
        %v2023 = vld [vmem:[#allocation2 + $0x438] sm:$0xff]
        %v2024 = vld [vmem:[#allocation2 + $0x440] sm:$0xff]
        %v2025 = vld [vmem:[#allocation2 + $0x448] sm:$0xff]
        %v2026 = vld [vmem:[#allocation2 + $0x450] sm:$0xff]
        %v2027 = vld [vmem:[#allocation2 + $0x458] sm:$0xff]
        %v2028 = vld [vmem:[#allocation2 + $0x460] sm:$0xff]
        %v2029 = vld [vmem:[#allocation2 + $0x468] sm:$0xff]
        %v2030 = vld [vmem:[#allocation2 + $0x470] sm:$0xff]
        %v2031 = vld [vmem:[#allocation2 + $0x478] sm:$0xff]
        %v2032 = vld [vmem:[#allocation2 + $0x480] sm:$0xff]
        %v2033 = vld [vmem:[#allocation2 + $0x488] sm:$0xff]
        %v2034 = vld [vmem:[#allocation2 + $0x490] sm:$0xff]
        %v2035 = vld [vmem:[#allocation2 + $0x498] sm:$0xff]
        %v2036 = vld [vmem:[#allocation2 + $0x4a0] sm:$0xff]
        %v2037 = vld [vmem:[#allocation2 + $0x4a8] sm:$0xff]
        %v2038 = vld [vmem:[#allocation2 + $0x4b0] sm:$0xff]
        %v2039 = vld [vmem:[#allocation2 + $0x4b8] sm:$0xff]
        %v2040 = vld [vmem:[#allocation2 + $0x4c0] sm:$0xff]
        %v2041 = vld [vmem:[#allocation2 + $0x4c8] sm:$0xff]
        %v2042 = vld [vmem:[#allocation2 + $0x4d0] sm:$0xff]
        %v2043 = vld [vmem:[#allocation2 + $0x4d8] sm:$0xff]
        %v2044 = vld [vmem:[#allocation2 + $0x4e0] sm:$0xff]
        %v2045 = vld [vmem:[#allocation2 + $0x4e8] sm:$0xff]
        %v2046 = vld [vmem:[#allocation2 + $0x4f0] sm:$0xff]
        %v2047 = vld [vmem:[#allocation2 + $0x4f8] sm:$0xff]
        %v2048 = vld [vmem:[#allocation2 + $0x500] sm:$0xff]
        %v2049 = vld [vmem:[#allocation2 + $0x508] sm:$0xff]
        %v2050 = vld [vmem:[#allocation2 + $0x510] sm:$0xff]
        %v2051 = vld [vmem:[#allocation2 + $0x518] sm:$0xff]
        %v2052 = vld [vmem:[#allocation2 + $0x520] sm:$0xff]
        %v2053 = vld [vmem:[#allocation2 + $0x528] sm:$0xff]
        %v2054 = vld [vmem:[#allocation2 + $0x530] sm:$0xff]
        %v2055 = vld [vmem:[#allocation2 + $0x538] sm:$0xff]
        %v2056 = vld [vmem:[#allocation2 + $0x540] sm:$0xff]
        %v2057 = vld [vmem:[#allocation2 + $0x548] sm:$0xff]
        %v2058 = vld [vmem:[#allocation2 + $0x550] sm:$0xff]
        %v2059 = vld [vmem:[#allocation2 + $0x558] sm:$0xff]
        %v2060 = vld [vmem:[#allocation2 + $0x560] sm:$0xff]
        %v2061 = vld [vmem:[#allocation2 + $0x568] sm:$0xff]
        %v2062 = vld [vmem:[#allocation2 + $0x570] sm:$0xff]
        %v2063 = vld [vmem:[#allocation2 + $0x578] sm:$0xff]
        %v2064 = vld [vmem:[#allocation2 + $0x580] sm:$0xff]
        %v2065 = vld [vmem:[#allocation2 + $0x588] sm:$0xff]
        %v2066 = vld [vmem:[#allocation2 + $0x590] sm:$0xff]
        %v2067 = vld [vmem:[#allocation2 + $0x598] sm:$0xff]
        %v2068 = vld [vmem:[#allocation2 + $0x5a0] sm:$0xff]
        %v2069 = vld [vmem:[#allocation2 + $0x5a8] sm:$0xff]
        %v2070 = vld [vmem:[#allocation2 + $0x5b0] sm:$0xff]
        %v2071 = vld [vmem:[#allocation2 + $0x5b8] sm:$0xff]
        %v2072 = vld [vmem:[#allocation2 + $0x5c0] sm:$0xff]
        %v2073 = vld [vmem:[#allocation2 + $0x5c8] sm:$0xff]
        %v2074 = vld [vmem:[#allocation2 + $0x5d0] sm:$0xff]
        %v2075 = vld [vmem:[#allocation2 + $0x5d8] sm:$0xff]
        %v2076 = vld [vmem:[#allocation2 + $0x5e0] sm:$0xff]
        %v2077 = vld [vmem:[#allocation2 + $0x5e8] sm:$0xff]
        %v2078 = vld [vmem:[#allocation2 + $0x5f0] sm:$0xff]
        %v2079 = vld [vmem:[#allocation2 + $0x5f8] sm:$0xff]
        %v2080 = vld [vmem:[#allocation2 + $0x600] sm:$0xff]
        %v2081 = vld [vmem:[#allocation2 + $0x608] sm:$0xff]
        %v2082 = vld [vmem:[#allocation2 + $0x610] sm:$0xff]
        %v2083 = vld [vmem:[#allocation2 + $0x618] sm:$0xff]
        %v2084 = vld [vmem:[#allocation2 + $0x620] sm:$0xff]
        %v2085 = vld [vmem:[#allocation2 + $0x628] sm:$0xff]
        %v2086 = vld [vmem:[#allocation2 + $0x630] sm:$0xff]
        %v2087 = vld [vmem:[#allocation2 + $0x638] sm:$0xff]
        %v2088 = vld [vmem:[%s2] sm:$0x3f]
        %2090 = vset.pattern.permute.xlu0 0
        %2091 = vperm.xlu0 %2090, %v2088
        %v2092 = vpop.permute.xlu0 %2091
        %vm2094 = vcmask 588800
        %v2096 = vsel %vm2094, %v1887, 0
        %2098 = vmatpush.msra.mxu0 %v2008
        %2099 = vmatpush.msra.mxu0 %v2000
        %2100 = vmatpush.msra.mxu0 %v1992
        %2101 = vmatpush.msra.mxu0 %v1984
        %2102 = vmatpush.msra.mxu0 %v1976
        %2103 = vmatpush.msra.mxu0 %v1968
        %2104 = vmatpush.msra.mxu0 %v1960
        %2105 = vmatpush.msra.mxu0 %v1952
        %2106 = vmatpush.msra.mxu0 %v1944
        %2107 = vmatpush.msra.mxu0 %v1936
        %2108 = vmatpush.msra.mxu0 %v1928
        %2109 = vmatpush.msra.mxu0 %v1920
        %2110 = vmatpush.msra.mxu0 %v1912
        %2111 = vmatpush.msra.mxu0 %v1904
        %2112 = vmatpush.msra.mxu0 %v1896
        %2113 = vmatpush.msra.mxu0 %v1888
        %2114 = vmatmul.f32.gmra.mxu0 %v1886
        %v2115 = vpop.f32.mrf.mxu0
        %v2116 = vadd.f32 %v2092, %v2115
        %2117 = vdwg.mxu0
        %2118 = vmatpush.msra.mxu0 0.0
        %2119 = vmatpush.msra.mxu0 0.0
        %2120 = vmatpush.msra.mxu0 0.0
        %2121 = vmatpush.msra.mxu0 0.0
        %2122 = vmatpush.msra.mxu0 0.0
        %2123 = vmatpush.msra.mxu0 0.0
        %2124 = vmatpush.msra.mxu0 0.0
        %2125 = vmatpush.msra.mxu0 %v2080
        %2126 = vmatpush.msra.mxu0 %v2072
        %2127 = vmatpush.msra.mxu0 %v2064
        %2128 = vmatpush.msra.mxu0 %v2056
        %2129 = vmatpush.msra.mxu0 %v2048
        %2130 = vmatpush.msra.mxu0 %v2040
        %2131 = vmatpush.msra.mxu0 %v2032
        %2132 = vmatpush.msra.mxu0 %v2024
        %2133 = vmatpush.msra.mxu0 %v2016
        %2134 = vmatmul.f32.gmra.mxu0 %v2096
        %v2135 = vpop.f32.mrf.mxu0
        %v2136 = vadd.f32 %v2116, %v2135
        %2137 = vdwg.mxu0
        %2138 = vmatpush.msra.mxu0 %v2009
        %2139 = vmatpush.msra.mxu0 %v2001
        %2140 = vmatpush.msra.mxu0 %v1993
        %2141 = vmatpush.msra.mxu0 %v1985
        %2142 = vmatpush.msra.mxu0 %v1977
        %2143 = vmatpush.msra.mxu0 %v1969
        %2144 = vmatpush.msra.mxu0 %v1961
        %2145 = vmatpush.msra.mxu0 %v1953
        %2146 = vmatpush.msra.mxu0 %v1945
        %2147 = vmatpush.msra.mxu0 %v1937
        %2148 = vmatpush.msra.mxu0 %v1929
        %2149 = vmatpush.msra.mxu0 %v1921
        %2150 = vmatpush.msra.mxu0 %v1913
        %2151 = vmatpush.msra.mxu0 %v1905
        %2152 = vmatpush.msra.mxu0 %v1897
        %2153 = vmatpush.msra.mxu0 %v1889
        %2154 = vmatmul.f32.gmra.mxu0 %v1886
        %v2155 = vpop.f32.mrf.mxu0
        %v2156 = vadd.f32 %v2092, %v2155
        %2157 = vdwg.mxu0
        %2158 = vmatpush.msra.mxu0 0.0
        %2159 = vmatpush.msra.mxu0 0.0
        %2160 = vmatpush.msra.mxu0 0.0
        %2161 = vmatpush.msra.mxu0 0.0
        %2162 = vmatpush.msra.mxu0 0.0
        %2163 = vmatpush.msra.mxu0 0.0
        %2164 = vmatpush.msra.mxu0 0.0
        %2165 = vmatpush.msra.mxu0 %v2081
        %2166 = vmatpush.msra.mxu0 %v2073
        %2167 = vmatpush.msra.mxu0 %v2065
        %2168 = vmatpush.msra.mxu0 %v2057
        %2169 = vmatpush.msra.mxu0 %v2049
        %2170 = vmatpush.msra.mxu0 %v2041
        %2171 = vmatpush.msra.mxu0 %v2033
        %2172 = vmatpush.msra.mxu0 %v2025
        %2173 = vmatpush.msra.mxu0 %v2017
        %2174 = vmatmul.f32.gmra.mxu0 %v2096
        %v2175 = vpop.f32.mrf.mxu0
        %v2176 = vadd.f32 %v2156, %v2175
        %2177 = vdwg.mxu0
        %2178 = vmatpush.msra.mxu0 %v2010
        %2179 = vmatpush.msra.mxu0 %v2002
        %2180 = vmatpush.msra.mxu0 %v1994
        %2181 = vmatpush.msra.mxu0 %v1986
        %2182 = vmatpush.msra.mxu0 %v1978
        %2183 = vmatpush.msra.mxu0 %v1970
        %2184 = vmatpush.msra.mxu0 %v1962
        %2185 = vmatpush.msra.mxu0 %v1954
        %2186 = vmatpush.msra.mxu0 %v1946
        %2187 = vmatpush.msra.mxu0 %v1938
        %2188 = vmatpush.msra.mxu0 %v1930
        %2189 = vmatpush.msra.mxu0 %v1922
        %2190 = vmatpush.msra.mxu0 %v1914
        %2191 = vmatpush.msra.mxu0 %v1906
        %2192 = vmatpush.msra.mxu0 %v1898
        %2193 = vmatpush.msra.mxu0 %v1890
        %2194 = vmatmul.f32.gmra.mxu0 %v1886
        %v2195 = vpop.f32.mrf.mxu0
        %v2196 = vadd.f32 %v2092, %v2195
        %2197 = vdwg.mxu0
        %2198 = vmatpush.msra.mxu0 0.0
        %2199 = vmatpush.msra.mxu0 0.0
        %2200 = vmatpush.msra.mxu0 0.0
        %2201 = vmatpush.msra.mxu0 0.0
        %2202 = vmatpush.msra.mxu0 0.0
        %2203 = vmatpush.msra.mxu0 0.0
        %2204 = vmatpush.msra.mxu0 0.0
        %2205 = vmatpush.msra.mxu0 %v2082
        %2206 = vmatpush.msra.mxu0 %v2074
        %2207 = vmatpush.msra.mxu0 %v2066
        %2208 = vmatpush.msra.mxu0 %v2058
        %2209 = vmatpush.msra.mxu0 %v2050
        %2210 = vmatpush.msra.mxu0 %v2042
        %2211 = vmatpush.msra.mxu0 %v2034
        %2212 = vmatpush.msra.mxu0 %v2026
        %2213 = vmatpush.msra.mxu0 %v2018
        %2214 = vmatmul.f32.gmra.mxu0 %v2096
        %v2215 = vpop.f32.mrf.mxu0
        %v2216 = vadd.f32 %v2196, %v2215
        %2217 = vdwg.mxu0
        %2218 = vmatpush.msra.mxu0 %v2011
        %2219 = vmatpush.msra.mxu0 %v2003
        %2220 = vmatpush.msra.mxu0 %v1995
        %2221 = vmatpush.msra.mxu0 %v1987
        %2222 = vmatpush.msra.mxu0 %v1979
        %2223 = vmatpush.msra.mxu0 %v1971
        %2224 = vmatpush.msra.mxu0 %v1963
        %2225 = vmatpush.msra.mxu0 %v1955
        %2226 = vmatpush.msra.mxu0 %v1947
        %2227 = vmatpush.msra.mxu0 %v1939
        %2228 = vmatpush.msra.mxu0 %v1931
        %2229 = vmatpush.msra.mxu0 %v1923
        %2230 = vmatpush.msra.mxu0 %v1915
        %2231 = vmatpush.msra.mxu0 %v1907
        %2232 = vmatpush.msra.mxu0 %v1899
        %2233 = vmatpush.msra.mxu0 %v1891
        %2234 = vmatmul.f32.gmra.mxu0 %v1886
        %v2235 = vpop.f32.mrf.mxu0
        %v2236 = vadd.f32 %v2092, %v2235
        %2237 = vdwg.mxu0
        %2238 = vmatpush.msra.mxu0 0.0
        %2239 = vmatpush.msra.mxu0 0.0
        %2240 = vmatpush.msra.mxu0 0.0
        %2241 = vmatpush.msra.mxu0 0.0
        %2242 = vmatpush.msra.mxu0 0.0
        %2243 = vmatpush.msra.mxu0 0.0
        %2244 = vmatpush.msra.mxu0 0.0
        %2245 = vmatpush.msra.mxu0 %v2083
        %2246 = vmatpush.msra.mxu0 %v2075
        %2247 = vmatpush.msra.mxu0 %v2067
        %2248 = vmatpush.msra.mxu0 %v2059
        %2249 = vmatpush.msra.mxu0 %v2051
        %2250 = vmatpush.msra.mxu0 %v2043
        %2251 = vmatpush.msra.mxu0 %v2035
        %2252 = vmatpush.msra.mxu0 %v2027
        %2253 = vmatpush.msra.mxu0 %v2019
        %2254 = vmatmul.f32.gmra.mxu0 %v2096
        %v2255 = vpop.f32.mrf.mxu0
        %v2256 = vadd.f32 %v2236, %v2255
        %2257 = vdwg.mxu0
        %2258 = vmatpush.msra.mxu0 %v2012
        %2259 = vmatpush.msra.mxu0 %v2004
        %2260 = vmatpush.msra.mxu0 %v1996
        %2261 = vmatpush.msra.mxu0 %v1988
        %2262 = vmatpush.msra.mxu0 %v1980
        %2263 = vmatpush.msra.mxu0 %v1972
        %2264 = vmatpush.msra.mxu0 %v1964
        %2265 = vmatpush.msra.mxu0 %v1956
        %2266 = vmatpush.msra.mxu0 %v1948
        %2267 = vmatpush.msra.mxu0 %v1940
        %2268 = vmatpush.msra.mxu0 %v1932
        %2269 = vmatpush.msra.mxu0 %v1924
        %2270 = vmatpush.msra.mxu0 %v1916
        %2271 = vmatpush.msra.mxu0 %v1908
        %2272 = vmatpush.msra.mxu0 %v1900
        %2273 = vmatpush.msra.mxu0 %v1892
        %2274 = vmatmul.f32.gmra.mxu0 %v1886
        %v2275 = vpop.f32.mrf.mxu0
        %v2276 = vadd.f32 %v2092, %v2275
        %2277 = vdwg.mxu0
        %2278 = vmatpush.msra.mxu0 0.0
        %2279 = vmatpush.msra.mxu0 0.0
        %2280 = vmatpush.msra.mxu0 0.0
        %2281 = vmatpush.msra.mxu0 0.0
        %2282 = vmatpush.msra.mxu0 0.0
        %2283 = vmatpush.msra.mxu0 0.0
        %2284 = vmatpush.msra.mxu0 0.0
        %2285 = vmatpush.msra.mxu0 %v2084
        %2286 = vmatpush.msra.mxu0 %v2076
        %2287 = vmatpush.msra.mxu0 %v2068
        %2288 = vmatpush.msra.mxu0 %v2060
        %2289 = vmatpush.msra.mxu0 %v2052
        %2290 = vmatpush.msra.mxu0 %v2044
        %2291 = vmatpush.msra.mxu0 %v2036
        %2292 = vmatpush.msra.mxu0 %v2028
        %2293 = vmatpush.msra.mxu0 %v2020
        %2294 = vmatmul.f32.gmra.mxu0 %v2096
        %v2295 = vpop.f32.mrf.mxu0
        %v2296 = vadd.f32 %v2276, %v2295
        %2297 = vdwg.mxu0
        %2298 = vmatpush.msra.mxu0 %v2013
        %2299 = vmatpush.msra.mxu0 %v2005
        %2300 = vmatpush.msra.mxu0 %v1997
        %2301 = vmatpush.msra.mxu0 %v1989
        %2302 = vmatpush.msra.mxu0 %v1981
        %2303 = vmatpush.msra.mxu0 %v1973
        %2304 = vmatpush.msra.mxu0 %v1965
        %2305 = vmatpush.msra.mxu0 %v1957
        %2306 = vmatpush.msra.mxu0 %v1949
        %2307 = vmatpush.msra.mxu0 %v1941
        %2308 = vmatpush.msra.mxu0 %v1933
        %2309 = vmatpush.msra.mxu0 %v1925
        %2310 = vmatpush.msra.mxu0 %v1917
        %2311 = vmatpush.msra.mxu0 %v1909
        %2312 = vmatpush.msra.mxu0 %v1901
        %2313 = vmatpush.msra.mxu0 %v1893
        %2314 = vmatmul.f32.gmra.mxu0 %v1886
        %v2315 = vpop.f32.mrf.mxu0
        %v2316 = vadd.f32 %v2092, %v2315
        %2317 = vdwg.mxu0
        %2318 = vmatpush.msra.mxu0 0.0
        %2319 = vmatpush.msra.mxu0 0.0
        %2320 = vmatpush.msra.mxu0 0.0
        %2321 = vmatpush.msra.mxu0 0.0
        %2322 = vmatpush.msra.mxu0 0.0
        %2323 = vmatpush.msra.mxu0 0.0
        %2324 = vmatpush.msra.mxu0 0.0
        %2325 = vmatpush.msra.mxu0 %v2085
        %2326 = vmatpush.msra.mxu0 %v2077
        %2327 = vmatpush.msra.mxu0 %v2069
        %2328 = vmatpush.msra.mxu0 %v2061
        %2329 = vmatpush.msra.mxu0 %v2053
        %2330 = vmatpush.msra.mxu0 %v2045
        %2331 = vmatpush.msra.mxu0 %v2037
        %2332 = vmatpush.msra.mxu0 %v2029
        %2333 = vmatpush.msra.mxu0 %v2021
        %2334 = vmatmul.f32.gmra.mxu0 %v2096
        %v2335 = vpop.f32.mrf.mxu0
        %v2336 = vadd.f32 %v2316, %v2335
        %2337 = vdwg.mxu0
        %2338 = vmatpush.msra.mxu0 %v2014
        %2339 = vmatpush.msra.mxu0 %v2006
        %2340 = vmatpush.msra.mxu0 %v1998
        %2341 = vmatpush.msra.mxu0 %v1990
        %2342 = vmatpush.msra.mxu0 %v1982
        %2343 = vmatpush.msra.mxu0 %v1974
        %2344 = vmatpush.msra.mxu0 %v1966
        %2345 = vmatpush.msra.mxu0 %v1958
        %2346 = vmatpush.msra.mxu0 %v1950
        %2347 = vmatpush.msra.mxu0 %v1942
        %2348 = vmatpush.msra.mxu0 %v1934
        %2349 = vmatpush.msra.mxu0 %v1926
        %2350 = vmatpush.msra.mxu0 %v1918
        %2351 = vmatpush.msra.mxu0 %v1910
        %2352 = vmatpush.msra.mxu0 %v1902
        %2353 = vmatpush.msra.mxu0 %v1894
        %2354 = vmatmul.f32.gmra.mxu0 %v1886
        %v2355 = vpop.f32.mrf.mxu0
        %v2356 = vadd.f32 %v2092, %v2355
        %2357 = vdwg.mxu0
        %2358 = vmatpush.msra.mxu0 0.0
        %2359 = vmatpush.msra.mxu0 0.0
        %2360 = vmatpush.msra.mxu0 0.0
        %2361 = vmatpush.msra.mxu0 0.0
        %2362 = vmatpush.msra.mxu0 0.0
        %2363 = vmatpush.msra.mxu0 0.0
        %2364 = vmatpush.msra.mxu0 0.0
        %2365 = vmatpush.msra.mxu0 %v2086
        %2366 = vmatpush.msra.mxu0 %v2078
        %2367 = vmatpush.msra.mxu0 %v2070
        %2368 = vmatpush.msra.mxu0 %v2062
        %2369 = vmatpush.msra.mxu0 %v2054
        %2370 = vmatpush.msra.mxu0 %v2046
        %2371 = vmatpush.msra.mxu0 %v2038
        %2372 = vmatpush.msra.mxu0 %v2030
        %2373 = vmatpush.msra.mxu0 %v2022
        %2374 = vmatmul.f32.gmra.mxu0 %v2096
        %v2375 = vpop.f32.mrf.mxu0
        %v2376 = vadd.f32 %v2356, %v2375
        %2377 = vdwg.mxu0
        %2378 = vmatpush.msra.mxu0 %v2015
        %2379 = vmatpush.msra.mxu0 %v2007
        %2380 = vmatpush.msra.mxu0 %v1999
        %2381 = vmatpush.msra.mxu0 %v1991
        %2382 = vmatpush.msra.mxu0 %v1983
        %2383 = vmatpush.msra.mxu0 %v1975
        %2384 = vmatpush.msra.mxu0 %v1967
        %2385 = vmatpush.msra.mxu0 %v1959
        %2386 = vmatpush.msra.mxu0 %v1951
        %2387 = vmatpush.msra.mxu0 %v1943
        %2388 = vmatpush.msra.mxu0 %v1935
        %2389 = vmatpush.msra.mxu0 %v1927
        %2390 = vmatpush.msra.mxu0 %v1919
        %2391 = vmatpush.msra.mxu0 %v1911
        %2392 = vmatpush.msra.mxu0 %v1903
        %2393 = vmatpush.msra.mxu0 %v1895
        %2394 = vmatmul.f32.gmra.mxu0 %v1886
        %v2395 = vpop.f32.mrf.mxu0
        %v2396 = vadd.f32 %v2092, %v2395
        %2397 = vdwg.mxu0
        %2398 = vmatpush.msra.mxu0 0.0
        %2399 = vmatpush.msra.mxu0 0.0
        %2400 = vmatpush.msra.mxu0 0.0
        %2401 = vmatpush.msra.mxu0 0.0
        %2402 = vmatpush.msra.mxu0 0.0
        %2403 = vmatpush.msra.mxu0 0.0
        %2404 = vmatpush.msra.mxu0 0.0
        %2405 = vmatpush.msra.mxu0 %v2087
        %2406 = vmatpush.msra.mxu0 %v2079
        %2407 = vmatpush.msra.mxu0 %v2071
        %2408 = vmatpush.msra.mxu0 %v2063
        %2409 = vmatpush.msra.mxu0 %v2055
        %2410 = vmatpush.msra.mxu0 %v2047
        %2411 = vmatpush.msra.mxu0 %v2039
        %2412 = vmatpush.msra.mxu0 %v2031
        %2413 = vmatpush.msra.mxu0 %v2023
        %2414 = vmatmul.f32.gmra.mxu0 %v2096
        %v2415 = vpop.f32.mrf.mxu0
        %v2416 = vadd.f32 %v2396, %v2415
        %2417 = vdwg.mxu0
        %v2418 = vmax.f32 %v2136, 0.0
        %v2419 = vmax.f32 %v2176, 0.0
        %v2420 = vmax.f32 %v2216, 0.0
        %v2421 = vmax.f32 %v2256, 0.0
        %v2422 = vmax.f32 %v2296, 0.0
        %v2423 = vmax.f32 %v2336, 0.0
        %v2424 = vmax.f32 %v2376, 0.0
        %v2425 = vmax.f32 %v2416, 0.0
        %2426 = vst [vmem:[#allocation3] sm:$0x3f] %v2418
        %2427 = vst [vmem:[#allocation3 + $0x8] sm:$0x3f] %v2419
        %2428 = vst [vmem:[#allocation3 + $0x10] sm:$0x3f] %v2420
        %2429 = vst [vmem:[#allocation3 + $0x18] sm:$0x3f] %v2421
        %2430 = vst [vmem:[#allocation3 + $0x20] sm:$0x3f] %v2422
        %2431 = vst [vmem:[#allocation3 + $0x28] sm:$0x3f] %v2423
        %2432 = vst [vmem:[#allocation3 + $0x30] sm:$0x3f] %v2424
        %2433 = vst [vmem:[#allocation3 + $0x38] sm:$0x3f] %v2425
        %v2434 = vld [vmem:[#allocation3] sm:$0x3f]
        %v2435 = vld [vmem:[#allocation3 + $0x8] sm:$0x3f]
        %v2436 = vld [vmem:[#allocation3 + $0x10] sm:$0x3f]
        %v2437 = vld [vmem:[#allocation3 + $0x18] sm:$0x3f]
        %v2438 = vld [vmem:[#allocation3 + $0x20] sm:$0x3f]
        %v2439 = vld [vmem:[#allocation3 + $0x28] sm:$0x3f]
        %v2440 = vld [vmem:[#allocation3 + $0x30] sm:$0x3f]
        %v2441 = vld [vmem:[#allocation3 + $0x38] sm:$0x3f]
        %v2442 = vld [vmem:[#allocation3 + $0x40] sm:$0x3f]
        %2452 = vrot.lane.b32.xlu0 %v2434, 127
        %v2453 = vpop.permute.xlu0 %2452
        %2454 = vrot.lane.b32.xlu0 %v2435, 127
        %v2455 = vpop.permute.xlu0 %2454
        %2456 = vrot.lane.b32.xlu0 %v2436, 127
        %v2457 = vpop.permute.xlu0 %2456
        %2458 = vrot.lane.b32.xlu0 %v2437, 127
        %v2459 = vpop.permute.xlu0 %2458
        %2460 = vrot.lane.b32.xlu0 %v2438, 127
        %v2461 = vpop.permute.xlu0 %2460
        %2462 = vrot.lane.b32.xlu0 %v2439, 127
        %v2463 = vpop.permute.xlu0 %2462
        %2464 = vrot.lane.b32.xlu0 %v2440, 127
        %v2465 = vpop.permute.xlu0 %2464
        %2466 = vrot.lane.b32.xlu0 %v2441, 127
        %v2467 = vpop.permute.xlu0 %2466
        %2468 = vrot.lane.b32.xlu0 %v2442, 127
        %v2469 = vpop.permute.xlu0 %2468
        %v2470 = vsel %vm507, %v2453, %v2455
        %v2471 = vsel %vm507, %v2455, %v2457
        %v2472 = vsel %vm507, %v2457, %v2459
        %v2473 = vsel %vm507, %v2459, %v2461
        %v2474 = vsel %vm507, %v2461, %v2463
        %v2475 = vsel %vm507, %v2463, %v2465
        %v2476 = vsel %vm507, %v2465, %v2467
        %v2477 = vsel %vm507, %v2467, %v2469
        %v2486 = vmax.f32 %v2434, %v2470
        %v2487 = vmax.f32 %v2435, %v2471
        %v2488 = vmax.f32 %v2436, %v2472
        %v2489 = vmax.f32 %v2437, %v2473
        %v2490 = vmax.f32 %v2438, %v2474
        %v2491 = vmax.f32 %v2439, %v2475
        %v2492 = vmax.f32 %v2440, %v2476
        %v2493 = vmax.f32 %v2441, %v2477
        %v2495 = vmax.f32 %v2442, %v2469
        %2505 = vrot.lane.b32.xlu0 %v2486, 96
        %v2506 = vpop.permute.xlu0 %2505
        %2507 = vrot.lane.b32.xlu0 %v2487, 96
        %v2508 = vpop.permute.xlu0 %2507
        %2509 = vrot.lane.b32.xlu0 %v2488, 96
        %v2510 = vpop.permute.xlu0 %2509
        %2511 = vrot.lane.b32.xlu0 %v2489, 96
        %v2512 = vpop.permute.xlu0 %2511
        %2513 = vrot.lane.b32.xlu0 %v2490, 96
        %v2514 = vpop.permute.xlu0 %2513
        %2515 = vrot.lane.b32.xlu0 %v2491, 96
        %v2516 = vpop.permute.xlu0 %2515
        %2517 = vrot.lane.b32.xlu0 %v2492, 96
        %v2518 = vpop.permute.xlu0 %2517
        %2519 = vrot.lane.b32.xlu0 %v2493, 96
        %v2520 = vpop.permute.xlu0 %2519
        %2521 = vrot.lane.b32.xlu0 %v2495, 96
        %v2522 = vpop.permute.xlu0 %2521
        %v2523 = vsel %vm751, %v2506, %v2508
        %v2524 = vsel %vm751, %v2508, %v2510
        %v2525 = vsel %vm751, %v2510, %v2512
        %v2526 = vsel %vm751, %v2512, %v2514
        %v2527 = vsel %vm751, %v2514, %v2516
        %v2528 = vsel %vm751, %v2516, %v2518
        %v2529 = vsel %vm751, %v2518, %v2520
        %v2530 = vsel %vm751, %v2520, %v2522
        %v2539 = vmax.f32 %v2486, %v2523
        %v2540 = vmax.f32 %v2487, %v2524
        %v2541 = vmax.f32 %v2488, %v2525
        %v2542 = vmax.f32 %v2489, %v2526
        %v2543 = vmax.f32 %v2490, %v2527
        %v2544 = vmax.f32 %v2491, %v2528
        %v2545 = vmax.f32 %v2492, %v2529
        %v2546 = vmax.f32 %v2493, %v2530
        %2547 = vst [vmem:[#allocation4] sm:$0x3f] %v2539
        %2548 = vst [vmem:[#allocation4 + $0x8] sm:$0x3f] %v2540
        %2549 = vst [vmem:[#allocation4 + $0x10] sm:$0x3f] %v2541
        %2550 = vst [vmem:[#allocation4 + $0x18] sm:$0x3f] %v2542
        %2551 = vst [vmem:[#allocation4 + $0x20] sm:$0x3f] %v2543
        %2552 = vst [vmem:[#allocation4 + $0x28] sm:$0x3f] %v2544
        %2553 = vst [vmem:[#allocation4 + $0x30] sm:$0x3f] %v2545
        %2554 = vst [vmem:[#allocation4 + $0x38] sm:$0x3f] %v2546
        %v2555 = vld [vmem:[#allocation4] sm:$0xff]
        %v2556 = vld [vmem:[#allocation4 + $0x8] sm:$0xff]
        %v2557 = vld [vmem:[#allocation4 + $0x10] sm:$0xff]
        %v2558 = vld [vmem:[#allocation4 + $0x18] sm:$0xff]
        %v2559 = vld [vmem:[#allocation4 + $0x20] sm:$0xff]
        %v2560 = vld [vmem:[#allocation4 + $0x28] sm:$0xff]
        %v2561 = vld [vmem:[#allocation4 + $0x30] sm:$0xff]
        %v2562 = vld [vmem:[#allocation4 + $0x38] sm:$0xff]
        %2563 = vst [vmem:[#allocation5] sm:$0xff] %v2555
        %2564 = vst [vmem:[#allocation5 + $0x8] sm:$0xff] %v2556
        %2565 = vst [vmem:[#allocation5 + $0x10] sm:$0xff] %v2557
        %2566 = vst [vmem:[#allocation5 + $0x18] sm:$0xff] %v2558
        %2567 = vst [vmem:[#allocation5 + $0x20] sm:$0xff] %v2559
        %2568 = vst [vmem:[#allocation5 + $0x28] sm:$0xff] %v2560
        %2569 = vst [vmem:[#allocation5 + $0x30] sm:$0xff] %v2561
        %2570 = vst [vmem:[#allocation5 + $0x38] sm:$0xff] %v2562
        %v2571 = vld [vmem:[#allocation4] sm:$0xff]
        %v2572 = vld [vmem:[#allocation4 + $0x8] sm:$0xff]
        %v2573 = vld [vmem:[#allocation4 + $0x10] sm:$0xff]
        %v2574 = vld [vmem:[#allocation4 + $0x18] sm:$0xff]
        %v2575 = vld [vmem:[#allocation4 + $0x20] sm:$0xff]
        %v2576 = vld [vmem:[#allocation4 + $0x28] sm:$0xff]
        %v2577 = vld [vmem:[#allocation4 + $0x30] sm:$0xff]
        %v2578 = vld [vmem:[#allocation4 + $0x38] sm:$0xff]
        %v2579 = vld [vmem:[#allocation4 + $0x40] sm:$0xff]
        %2589 = vrot.lane.b32.xlu0 %v2571, 126
        %v2590 = vpop.permute.xlu0 %2589
        %2591 = vrot.lane.b32.xlu0 %v2572, 126
        %v2592 = vpop.permute.xlu0 %2591
        %2593 = vrot.lane.b32.xlu0 %v2573, 126
        %v2594 = vpop.permute.xlu0 %2593
        %2595 = vrot.lane.b32.xlu0 %v2574, 126
        %v2596 = vpop.permute.xlu0 %2595
        %2597 = vrot.lane.b32.xlu0 %v2575, 126
        %v2598 = vpop.permute.xlu0 %2597
        %2599 = vrot.lane.b32.xlu0 %v2576, 126
        %v2600 = vpop.permute.xlu0 %2599
        %2601 = vrot.lane.b32.xlu0 %v2577, 126
        %v2602 = vpop.permute.xlu0 %2601
        %2603 = vrot.lane.b32.xlu0 %v2578, 126
        %v2604 = vpop.permute.xlu0 %2603
        %2605 = vrot.lane.b32.xlu0 %v2579, 126
        %v2606 = vpop.permute.xlu0 %2605
        %v2607 = vsel %vm568, %v2590, %v2592
        %v2608 = vsel %vm568, %v2592, %v2594
        %v2609 = vsel %vm568, %v2594, %v2596
        %v2610 = vsel %vm568, %v2596, %v2598
        %v2611 = vsel %vm568, %v2598, %v2600
        %v2612 = vsel %vm568, %v2600, %v2602
        %v2613 = vsel %vm568, %v2602, %v2604
        %v2614 = vsel %vm568, %v2604, %v2606
        %2623 = vst [vmem:[#allocation5 + $0x40] sm:$0xff] %v2607
        %2624 = vst [vmem:[#allocation5 + $0x48] sm:$0xff] %v2608
        %2625 = vst [vmem:[#allocation5 + $0x50] sm:$0xff] %v2609
        %2626 = vst [vmem:[#allocation5 + $0x58] sm:$0xff] %v2610
        %2627 = vst [vmem:[#allocation5 + $0x60] sm:$0xff] %v2611
        %2628 = vst [vmem:[#allocation5 + $0x68] sm:$0xff] %v2612
        %2629 = vst [vmem:[#allocation5 + $0x70] sm:$0xff] %v2613
        %2630 = vst [vmem:[#allocation5 + $0x78] sm:$0xff] %v2614
        %v2631 = vld [vmem:[#allocation4] sm:$0xff]
        %v2632 = vld [vmem:[#allocation4 + $0x8] sm:$0xff]
        %v2633 = vld [vmem:[#allocation4 + $0x10] sm:$0xff]
        %v2634 = vld [vmem:[#allocation4 + $0x18] sm:$0xff]
        %v2635 = vld [vmem:[#allocation4 + $0x20] sm:$0xff]
        %v2636 = vld [vmem:[#allocation4 + $0x28] sm:$0xff]
        %v2637 = vld [vmem:[#allocation4 + $0x30] sm:$0xff]
        %v2638 = vld [vmem:[#allocation4 + $0x38] sm:$0xff]
        %v2639 = vld [vmem:[#allocation4 + $0x40] sm:$0xff]
        %2649 = vrot.lane.b32.xlu0 %v2631, 124
        %v2650 = vpop.permute.xlu0 %2649
        %2651 = vrot.lane.b32.xlu0 %v2632, 124
        %v2652 = vpop.permute.xlu0 %2651
        %2653 = vrot.lane.b32.xlu0 %v2633, 124
        %v2654 = vpop.permute.xlu0 %2653
        %2655 = vrot.lane.b32.xlu0 %v2634, 124
        %v2656 = vpop.permute.xlu0 %2655
        %2657 = vrot.lane.b32.xlu0 %v2635, 124
        %v2658 = vpop.permute.xlu0 %2657
        %2659 = vrot.lane.b32.xlu0 %v2636, 124
        %v2660 = vpop.permute.xlu0 %2659
        %2661 = vrot.lane.b32.xlu0 %v2637, 124
        %v2662 = vpop.permute.xlu0 %2661
        %2663 = vrot.lane.b32.xlu0 %v2638, 124
        %v2664 = vpop.permute.xlu0 %2663
        %2665 = vrot.lane.b32.xlu0 %v2639, 124
        %v2666 = vpop.permute.xlu0 %2665
        %v2667 = vsel %vm690, %v2650, %v2652
        %v2668 = vsel %vm690, %v2652, %v2654
        %v2669 = vsel %vm690, %v2654, %v2656
        %v2670 = vsel %vm690, %v2656, %v2658
        %v2671 = vsel %vm690, %v2658, %v2660
        %v2672 = vsel %vm690, %v2660, %v2662
        %v2673 = vsel %vm690, %v2662, %v2664
        %v2674 = vsel %vm690, %v2664, %v2666
        %2683 = vst [vmem:[#allocation5 + $0x80] sm:$0xff] %v2667
        %2684 = vst [vmem:[#allocation5 + $0x88] sm:$0xff] %v2668
        %2685 = vst [vmem:[#allocation5 + $0x90] sm:$0xff] %v2669
        %2686 = vst [vmem:[#allocation5 + $0x98] sm:$0xff] %v2670
        %2687 = vst [vmem:[#allocation5 + $0xa0] sm:$0xff] %v2671
        %2688 = vst [vmem:[#allocation5 + $0xa8] sm:$0xff] %v2672
        %2689 = vst [vmem:[#allocation5 + $0xb0] sm:$0xff] %v2673
        %2690 = vst [vmem:[#allocation5 + $0xb8] sm:$0xff] %v2674
        %v2691 = vld [vmem:[#allocation4] sm:$0xff]
        %v2692 = vld [vmem:[#allocation4 + $0x8] sm:$0xff]
        %v2693 = vld [vmem:[#allocation4 + $0x10] sm:$0xff]
        %v2694 = vld [vmem:[#allocation4 + $0x18] sm:$0xff]
        %v2695 = vld [vmem:[#allocation4 + $0x20] sm:$0xff]
        %v2696 = vld [vmem:[#allocation4 + $0x28] sm:$0xff]
        %v2697 = vld [vmem:[#allocation4 + $0x30] sm:$0xff]
        %v2698 = vld [vmem:[#allocation4 + $0x38] sm:$0xff]
        %v2699 = vld [vmem:[#allocation4 + $0x40] sm:$0xff]
        %2709 = vrot.lane.b32.xlu0 %v2691, 122
        %v2710 = vpop.permute.xlu0 %2709
        %2711 = vrot.lane.b32.xlu0 %v2692, 122
        %v2712 = vpop.permute.xlu0 %2711
        %2713 = vrot.lane.b32.xlu0 %v2693, 122
        %v2714 = vpop.permute.xlu0 %2713
        %2715 = vrot.lane.b32.xlu0 %v2694, 122
        %v2716 = vpop.permute.xlu0 %2715
        %2717 = vrot.lane.b32.xlu0 %v2695, 122
        %v2718 = vpop.permute.xlu0 %2717
        %2719 = vrot.lane.b32.xlu0 %v2696, 122
        %v2720 = vpop.permute.xlu0 %2719
        %2721 = vrot.lane.b32.xlu0 %v2697, 122
        %v2722 = vpop.permute.xlu0 %2721
        %2723 = vrot.lane.b32.xlu0 %v2698, 122
        %v2724 = vpop.permute.xlu0 %2723
        %2725 = vrot.lane.b32.xlu0 %v2699, 122
        %v2726 = vpop.permute.xlu0 %2725
        %vm2727 = vcmask 998400
        %v2728 = vsel %vm2727, %v2710, %v2712
        %v2729 = vsel %vm2727, %v2712, %v2714
        %v2730 = vsel %vm2727, %v2714, %v2716
        %v2731 = vsel %vm2727, %v2716, %v2718
        %v2732 = vsel %vm2727, %v2718, %v2720
        %v2733 = vsel %vm2727, %v2720, %v2722
        %v2734 = vsel %vm2727, %v2722, %v2724
        %v2735 = vsel %vm2727, %v2724, %v2726
        %2744 = vst [vmem:[#allocation5 + $0xc0] sm:$0xff] %v2728
        %2745 = vst [vmem:[#allocation5 + $0xc8] sm:$0xff] %v2729
        %2746 = vst [vmem:[#allocation5 + $0xd0] sm:$0xff] %v2730
        %2747 = vst [vmem:[#allocation5 + $0xd8] sm:$0xff] %v2731
        %2748 = vst [vmem:[#allocation5 + $0xe0] sm:$0xff] %v2732
        %2749 = vst [vmem:[#allocation5 + $0xe8] sm:$0xff] %v2733
        %2750 = vst [vmem:[#allocation5 + $0xf0] sm:$0xff] %v2734
        %2751 = vst [vmem:[#allocation5 + $0xf8] sm:$0xff] %v2735
        %v2752 = vld [vmem:[#allocation4] sm:$0xff]
        %v2753 = vld [vmem:[#allocation4 + $0x8] sm:$0xff]
        %v2754 = vld [vmem:[#allocation4 + $0x10] sm:$0xff]
        %v2755 = vld [vmem:[#allocation4 + $0x18] sm:$0xff]
        %v2756 = vld [vmem:[#allocation4 + $0x20] sm:$0xff]
        %v2757 = vld [vmem:[#allocation4 + $0x28] sm:$0xff]
        %v2758 = vld [vmem:[#allocation4 + $0x30] sm:$0xff]
        %v2759 = vld [vmem:[#allocation4 + $0x38] sm:$0xff]
        %v2760 = vld [vmem:[#allocation4 + $0x40] sm:$0xff]
        %2770 = vrot.lane.b32.xlu0 %v2752, 120
        %v2771 = vpop.permute.xlu0 %2770
        %2772 = vrot.lane.b32.xlu0 %v2753, 120
        %v2773 = vpop.permute.xlu0 %2772
        %2774 = vrot.lane.b32.xlu0 %v2754, 120
        %v2775 = vpop.permute.xlu0 %2774
        %2776 = vrot.lane.b32.xlu0 %v2755, 120
        %v2777 = vpop.permute.xlu0 %2776
        %2778 = vrot.lane.b32.xlu0 %v2756, 120
        %v2779 = vpop.permute.xlu0 %2778
        %2780 = vrot.lane.b32.xlu0 %v2757, 120
        %v2781 = vpop.permute.xlu0 %2780
        %2782 = vrot.lane.b32.xlu0 %v2758, 120
        %v2783 = vpop.permute.xlu0 %2782
        %2784 = vrot.lane.b32.xlu0 %v2759, 120
        %v2785 = vpop.permute.xlu0 %2784
        %2786 = vrot.lane.b32.xlu0 %v2760, 120
        %v2787 = vpop.permute.xlu0 %2786
        %vm2788 = vcmask 982016
        %v2789 = vsel %vm2788, %v2771, %v2773
        %v2790 = vsel %vm2788, %v2773, %v2775
        %v2791 = vsel %vm2788, %v2775, %v2777
        %v2792 = vsel %vm2788, %v2777, %v2779
        %v2793 = vsel %vm2788, %v2779, %v2781
        %v2794 = vsel %vm2788, %v2781, %v2783
        %v2795 = vsel %vm2788, %v2783, %v2785
        %v2796 = vsel %vm2788, %v2785, %v2787
        %2805 = vst [vmem:[#allocation5 + $0x100] sm:$0xff] %v2789
        %2806 = vst [vmem:[#allocation5 + $0x108] sm:$0xff] %v2790
        %2807 = vst [vmem:[#allocation5 + $0x110] sm:$0xff] %v2791
        %2808 = vst [vmem:[#allocation5 + $0x118] sm:$0xff] %v2792
        %2809 = vst [vmem:[#allocation5 + $0x120] sm:$0xff] %v2793
        %2810 = vst [vmem:[#allocation5 + $0x128] sm:$0xff] %v2794
        %2811 = vst [vmem:[#allocation5 + $0x130] sm:$0xff] %v2795
        %2812 = vst [vmem:[#allocation5 + $0x138] sm:$0xff] %v2796
        %v2813 = vld [vmem:[#allocation4] sm:$0xff]
        %v2814 = vld [vmem:[#allocation4 + $0x8] sm:$0xff]
        %v2815 = vld [vmem:[#allocation4 + $0x10] sm:$0xff]
        %v2816 = vld [vmem:[#allocation4 + $0x18] sm:$0xff]
        %v2817 = vld [vmem:[#allocation4 + $0x20] sm:$0xff]
        %v2818 = vld [vmem:[#allocation4 + $0x28] sm:$0xff]
        %v2819 = vld [vmem:[#allocation4 + $0x30] sm:$0xff]
        %v2820 = vld [vmem:[#allocation4 + $0x38] sm:$0xff]
        %v2821 = vld [vmem:[#allocation4 + $0x40] sm:$0xff]
        %2831 = vrot.lane.b32.xlu0 %v2813, 64
        %v2832 = vpop.permute.xlu0 %2831
        %2833 = vrot.lane.b32.xlu0 %v2814, 64
        %v2834 = vpop.permute.xlu0 %2833
        %2835 = vrot.lane.b32.xlu0 %v2815, 64
        %v2836 = vpop.permute.xlu0 %2835
        %2837 = vrot.lane.b32.xlu0 %v2816, 64
        %v2838 = vpop.permute.xlu0 %2837
        %2839 = vrot.lane.b32.xlu0 %v2817, 64
        %v2840 = vpop.permute.xlu0 %2839
        %2841 = vrot.lane.b32.xlu0 %v2818, 64
        %v2842 = vpop.permute.xlu0 %2841
        %2843 = vrot.lane.b32.xlu0 %v2819, 64
        %v2844 = vpop.permute.xlu0 %2843
        %2845 = vrot.lane.b32.xlu0 %v2820, 64
        %v2846 = vpop.permute.xlu0 %2845
        %2847 = vrot.lane.b32.xlu0 %v2821, 64
        %v2848 = vpop.permute.xlu0 %2847
        %v2849 = vsel %vm1056, %v2832, %v2834
        %v2850 = vsel %vm1056, %v2834, %v2836
        %v2851 = vsel %vm1056, %v2836, %v2838
        %v2852 = vsel %vm1056, %v2838, %v2840
        %v2853 = vsel %vm1056, %v2840, %v2842
        %v2854 = vsel %vm1056, %v2842, %v2844
        %v2855 = vsel %vm1056, %v2844, %v2846
        %v2856 = vsel %vm1056, %v2846, %v2848
        %2865 = vst [vmem:[#allocation5 + $0x140] sm:$0xff] %v2849
        %2866 = vst [vmem:[#allocation5 + $0x148] sm:$0xff] %v2850
        %2867 = vst [vmem:[#allocation5 + $0x150] sm:$0xff] %v2851
        %2868 = vst [vmem:[#allocation5 + $0x158] sm:$0xff] %v2852
        %2869 = vst [vmem:[#allocation5 + $0x160] sm:$0xff] %v2853
        %2870 = vst [vmem:[#allocation5 + $0x168] sm:$0xff] %v2854
        %2871 = vst [vmem:[#allocation5 + $0x170] sm:$0xff] %v2855
        %2872 = vst [vmem:[#allocation5 + $0x178] sm:$0xff] %v2856
        %v2873 = vld [vmem:[#allocation4] sm:$0xff]
        %v2874 = vld [vmem:[#allocation4 + $0x8] sm:$0xff]
        %v2875 = vld [vmem:[#allocation4 + $0x10] sm:$0xff]
        %v2876 = vld [vmem:[#allocation4 + $0x18] sm:$0xff]
        %v2877 = vld [vmem:[#allocation4 + $0x20] sm:$0xff]
        %v2878 = vld [vmem:[#allocation4 + $0x28] sm:$0xff]
        %v2879 = vld [vmem:[#allocation4 + $0x30] sm:$0xff]
        %v2880 = vld [vmem:[#allocation4 + $0x38] sm:$0xff]
        %v2881 = vld [vmem:[#allocation4 + $0x40] sm:$0xff]
        %2891 = vrot.lane.b32.xlu0 %v2873, 62
        %v2892 = vpop.permute.xlu0 %2891
        %2893 = vrot.lane.b32.xlu0 %v2874, 62
        %v2894 = vpop.permute.xlu0 %2893
        %2895 = vrot.lane.b32.xlu0 %v2875, 62
        %v2896 = vpop.permute.xlu0 %2895
        %2897 = vrot.lane.b32.xlu0 %v2876, 62
        %v2898 = vpop.permute.xlu0 %2897
        %2899 = vrot.lane.b32.xlu0 %v2877, 62
        %v2900 = vpop.permute.xlu0 %2899
        %2901 = vrot.lane.b32.xlu0 %v2878, 62
        %v2902 = vpop.permute.xlu0 %2901
        %2903 = vrot.lane.b32.xlu0 %v2879, 62
        %v2904 = vpop.permute.xlu0 %2903
        %2905 = vrot.lane.b32.xlu0 %v2880, 62
        %v2906 = vpop.permute.xlu0 %2905
        %2907 = vrot.lane.b32.xlu0 %v2881, 62
        %v2908 = vpop.permute.xlu0 %2907
        %v2909 = vsel %vm1178, %v2892, %v2894
        %v2910 = vsel %vm1178, %v2894, %v2896
        %v2911 = vsel %vm1178, %v2896, %v2898
        %v2912 = vsel %vm1178, %v2898, %v2900
        %v2913 = vsel %vm1178, %v2900, %v2902
        %v2914 = vsel %vm1178, %v2902, %v2904
        %v2915 = vsel %vm1178, %v2904, %v2906
        %v2916 = vsel %vm1178, %v2906, %v2908
        %2925 = vst [vmem:[#allocation5 + $0x180] sm:$0xff] %v2909
        %2926 = vst [vmem:[#allocation5 + $0x188] sm:$0xff] %v2910
        %2927 = vst [vmem:[#allocation5 + $0x190] sm:$0xff] %v2911
        %2928 = vst [vmem:[#allocation5 + $0x198] sm:$0xff] %v2912
        %2929 = vst [vmem:[#allocation5 + $0x1a0] sm:$0xff] %v2913
        %2930 = vst [vmem:[#allocation5 + $0x1a8] sm:$0xff] %v2914
        %2931 = vst [vmem:[#allocation5 + $0x1b0] sm:$0xff] %v2915
        %2932 = vst [vmem:[#allocation5 + $0x1b8] sm:$0xff] %v2916
        %v2933 = vld [vmem:[#allocation4] sm:$0xff]
        %v2934 = vld [vmem:[#allocation4 + $0x8] sm:$0xff]
        %v2935 = vld [vmem:[#allocation4 + $0x10] sm:$0xff]
        %v2936 = vld [vmem:[#allocation4 + $0x18] sm:$0xff]
        %v2937 = vld [vmem:[#allocation4 + $0x20] sm:$0xff]
        %v2938 = vld [vmem:[#allocation4 + $0x28] sm:$0xff]
        %v2939 = vld [vmem:[#allocation4 + $0x30] sm:$0xff]
        %v2940 = vld [vmem:[#allocation4 + $0x38] sm:$0xff]
        %v2941 = vld [vmem:[#allocation4 + $0x40] sm:$0xff]
        %2951 = vrot.lane.b32.xlu0 %v2933, 60
        %v2952 = vpop.permute.xlu0 %2951
        %2953 = vrot.lane.b32.xlu0 %v2934, 60
        %v2954 = vpop.permute.xlu0 %2953
        %2955 = vrot.lane.b32.xlu0 %v2935, 60
        %v2956 = vpop.permute.xlu0 %2955
        %2957 = vrot.lane.b32.xlu0 %v2936, 60
        %v2958 = vpop.permute.xlu0 %2957
        %2959 = vrot.lane.b32.xlu0 %v2937, 60
        %v2960 = vpop.permute.xlu0 %2959
        %2961 = vrot.lane.b32.xlu0 %v2938, 60
        %v2962 = vpop.permute.xlu0 %2961
        %2963 = vrot.lane.b32.xlu0 %v2939, 60
        %v2964 = vpop.permute.xlu0 %2963
        %2965 = vrot.lane.b32.xlu0 %v2940, 60
        %v2966 = vpop.permute.xlu0 %2965
        %2967 = vrot.lane.b32.xlu0 %v2941, 60
        %v2968 = vpop.permute.xlu0 %2967
        %v2969 = vsel %vm1300, %v2952, %v2954
        %v2970 = vsel %vm1300, %v2954, %v2956
        %v2971 = vsel %vm1300, %v2956, %v2958
        %v2972 = vsel %vm1300, %v2958, %v2960
        %v2973 = vsel %vm1300, %v2960, %v2962
        %v2974 = vsel %vm1300, %v2962, %v2964
        %v2975 = vsel %vm1300, %v2964, %v2966
        %v2976 = vsel %vm1300, %v2966, %v2968
        %2985 = vst [vmem:[#allocation5 + $0x1c0] sm:$0xff] %v2969
        %2986 = vst [vmem:[#allocation5 + $0x1c8] sm:$0xff] %v2970
        %2987 = vst [vmem:[#allocation5 + $0x1d0] sm:$0xff] %v2971
        %2988 = vst [vmem:[#allocation5 + $0x1d8] sm:$0xff] %v2972
        %2989 = vst [vmem:[#allocation5 + $0x1e0] sm:$0xff] %v2973
        %2990 = vst [vmem:[#allocation5 + $0x1e8] sm:$0xff] %v2974
        %2991 = vst [vmem:[#allocation5 + $0x1f0] sm:$0xff] %v2975
        %2992 = vst [vmem:[#allocation5 + $0x1f8] sm:$0xff] %v2976
        %v2993 = vld [vmem:[#allocation4] sm:$0xff]
        %v2994 = vld [vmem:[#allocation4 + $0x8] sm:$0xff]
        %v2995 = vld [vmem:[#allocation4 + $0x10] sm:$0xff]
        %v2996 = vld [vmem:[#allocation4 + $0x18] sm:$0xff]
        %v2997 = vld [vmem:[#allocation4 + $0x20] sm:$0xff]
        %v2998 = vld [vmem:[#allocation4 + $0x28] sm:$0xff]
        %v2999 = vld [vmem:[#allocation4 + $0x30] sm:$0xff]
        %v3000 = vld [vmem:[#allocation4 + $0x38] sm:$0xff]
        %v3001 = vld [vmem:[#allocation4 + $0x40] sm:$0xff]
        %3011 = vrot.lane.b32.xlu0 %v2993, 58
        %v3012 = vpop.permute.xlu0 %3011
        %3013 = vrot.lane.b32.xlu0 %v2994, 58
        %v3014 = vpop.permute.xlu0 %3013
        %3015 = vrot.lane.b32.xlu0 %v2995, 58
        %v3016 = vpop.permute.xlu0 %3015
        %3017 = vrot.lane.b32.xlu0 %v2996, 58
        %v3018 = vpop.permute.xlu0 %3017
        %3019 = vrot.lane.b32.xlu0 %v2997, 58
        %v3020 = vpop.permute.xlu0 %3019
        %3021 = vrot.lane.b32.xlu0 %v2998, 58
        %v3022 = vpop.permute.xlu0 %3021
        %3023 = vrot.lane.b32.xlu0 %v2999, 58
        %v3024 = vpop.permute.xlu0 %3023
        %3025 = vrot.lane.b32.xlu0 %v3000, 58
        %v3026 = vpop.permute.xlu0 %3025
        %3027 = vrot.lane.b32.xlu0 %v3001, 58
        %v3028 = vpop.permute.xlu0 %3027
        %vm3029 = vcmask 474112
        %v3030 = vsel %vm3029, %v3012, %v3014
        %v3031 = vsel %vm3029, %v3014, %v3016
        %v3032 = vsel %vm3029, %v3016, %v3018
        %v3033 = vsel %vm3029, %v3018, %v3020
        %v3034 = vsel %vm3029, %v3020, %v3022
        %v3035 = vsel %vm3029, %v3022, %v3024
        %v3036 = vsel %vm3029, %v3024, %v3026
        %v3037 = vsel %vm3029, %v3026, %v3028
        %3046 = vst [vmem:[#allocation5 + $0x200] sm:$0xff] %v3030
        %3047 = vst [vmem:[#allocation5 + $0x208] sm:$0xff] %v3031
        %3048 = vst [vmem:[#allocation5 + $0x210] sm:$0xff] %v3032
        %3049 = vst [vmem:[#allocation5 + $0x218] sm:$0xff] %v3033
        %3050 = vst [vmem:[#allocation5 + $0x220] sm:$0xff] %v3034
        %3051 = vst [vmem:[#allocation5 + $0x228] sm:$0xff] %v3035
        %3052 = vst [vmem:[#allocation5 + $0x230] sm:$0xff] %v3036
        %3053 = vst [vmem:[#allocation5 + $0x238] sm:$0xff] %v3037
        %v3054 = vld [vmem:[#allocation4] sm:$0xff]
        %v3055 = vld [vmem:[#allocation4 + $0x8] sm:$0xff]
        %v3056 = vld [vmem:[#allocation4 + $0x10] sm:$0xff]
        %v3057 = vld [vmem:[#allocation4 + $0x18] sm:$0xff]
        %v3058 = vld [vmem:[#allocation4 + $0x20] sm:$0xff]
        %v3059 = vld [vmem:[#allocation4 + $0x28] sm:$0xff]
        %v3060 = vld [vmem:[#allocation4 + $0x30] sm:$0xff]
        %v3061 = vld [vmem:[#allocation4 + $0x38] sm:$0xff]
        %v3062 = vld [vmem:[#allocation4 + $0x40] sm:$0xff]
        %3072 = vrot.lane.b32.xlu0 %v3054, 56
        %v3073 = vpop.permute.xlu0 %3072
        %3074 = vrot.lane.b32.xlu0 %v3055, 56
        %v3075 = vpop.permute.xlu0 %3074
        %3076 = vrot.lane.b32.xlu0 %v3056, 56
        %v3077 = vpop.permute.xlu0 %3076
        %3078 = vrot.lane.b32.xlu0 %v3057, 56
        %v3079 = vpop.permute.xlu0 %3078
        %3080 = vrot.lane.b32.xlu0 %v3058, 56
        %v3081 = vpop.permute.xlu0 %3080
        %3082 = vrot.lane.b32.xlu0 %v3059, 56
        %v3083 = vpop.permute.xlu0 %3082
        %3084 = vrot.lane.b32.xlu0 %v3060, 56
        %v3085 = vpop.permute.xlu0 %3084
        %3086 = vrot.lane.b32.xlu0 %v3061, 56
        %v3087 = vpop.permute.xlu0 %3086
        %3088 = vrot.lane.b32.xlu0 %v3062, 56
        %v3089 = vpop.permute.xlu0 %3088
        %vm3090 = vcmask 457728
        %v3091 = vsel %vm3090, %v3073, %v3075
        %v3092 = vsel %vm3090, %v3075, %v3077
        %v3093 = vsel %vm3090, %v3077, %v3079
        %v3094 = vsel %vm3090, %v3079, %v3081
        %v3095 = vsel %vm3090, %v3081, %v3083
        %v3096 = vsel %vm3090, %v3083, %v3085
        %v3097 = vsel %vm3090, %v3085, %v3087
        %v3098 = vsel %vm3090, %v3087, %v3089
        %3107 = vst [vmem:[#allocation5 + $0x240] sm:$0xff] %v3091
        %3108 = vst [vmem:[#allocation5 + $0x248] sm:$0xff] %v3092
        %3109 = vst [vmem:[#allocation5 + $0x250] sm:$0xff] %v3093
        %3110 = vst [vmem:[#allocation5 + $0x258] sm:$0xff] %v3094
        %3111 = vst [vmem:[#allocation5 + $0x260] sm:$0xff] %v3095
        %3112 = vst [vmem:[#allocation5 + $0x268] sm:$0xff] %v3096
        %3113 = vst [vmem:[#allocation5 + $0x270] sm:$0xff] %v3097
        %3114 = vst [vmem:[#allocation5 + $0x278] sm:$0xff] %v3098
        %v3115 = vld [vmem:[#allocation4 + $0x8] sm:$0xff]
        %v3116 = vld [vmem:[#allocation4 + $0x10] sm:$0xff]
        %v3117 = vld [vmem:[#allocation4 + $0x18] sm:$0xff]
        %v3118 = vld [vmem:[#allocation4 + $0x20] sm:$0xff]
        %v3119 = vld [vmem:[#allocation4 + $0x28] sm:$0xff]
        %v3120 = vld [vmem:[#allocation4 + $0x30] sm:$0xff]
        %v3121 = vld [vmem:[#allocation4 + $0x38] sm:$0xff]
        %v3122 = vld [vmem:[#allocation4 + $0x40] sm:$0xff]
        %3123 = vst [vmem:[#allocation5 + $0x280] sm:$0xff] %v3115
        %3124 = vst [vmem:[#allocation5 + $0x288] sm:$0xff] %v3116
        %3125 = vst [vmem:[#allocation5 + $0x290] sm:$0xff] %v3117
        %3126 = vst [vmem:[#allocation5 + $0x298] sm:$0xff] %v3118
        %3127 = vst [vmem:[#allocation5 + $0x2a0] sm:$0xff] %v3119
        %3128 = vst [vmem:[#allocation5 + $0x2a8] sm:$0xff] %v3120
        %3129 = vst [vmem:[#allocation5 + $0x2b0] sm:$0xff] %v3121
        %3130 = vst [vmem:[#allocation5 + $0x2b8] sm:$0xff] %v3122
        %v3131 = vld [vmem:[#allocation4 + $0x8] sm:$0xff]
        %v3132 = vld [vmem:[#allocation4 + $0x10] sm:$0xff]
        %v3133 = vld [vmem:[#allocation4 + $0x18] sm:$0xff]
        %v3134 = vld [vmem:[#allocation4 + $0x20] sm:$0xff]
        %v3135 = vld [vmem:[#allocation4 + $0x28] sm:$0xff]
        %v3136 = vld [vmem:[#allocation4 + $0x30] sm:$0xff]
        %v3137 = vld [vmem:[#allocation4 + $0x38] sm:$0xff]
        %v3138 = vld [vmem:[#allocation4 + $0x40] sm:$0xff]
        %v3139 = vld [vmem:[#allocation4 + $0x48] sm:$0xff]
        %3149 = vrot.lane.b32.xlu0 %v3131, 126
        %v3150 = vpop.permute.xlu0 %3149
        %3151 = vrot.lane.b32.xlu0 %v3132, 126
        %v3152 = vpop.permute.xlu0 %3151
        %3153 = vrot.lane.b32.xlu0 %v3133, 126
        %v3154 = vpop.permute.xlu0 %3153
        %3155 = vrot.lane.b32.xlu0 %v3134, 126
        %v3156 = vpop.permute.xlu0 %3155
        %3157 = vrot.lane.b32.xlu0 %v3135, 126
        %v3158 = vpop.permute.xlu0 %3157
        %3159 = vrot.lane.b32.xlu0 %v3136, 126
        %v3160 = vpop.permute.xlu0 %3159
        %3161 = vrot.lane.b32.xlu0 %v3137, 126
        %v3162 = vpop.permute.xlu0 %3161
        %3163 = vrot.lane.b32.xlu0 %v3138, 126
        %v3164 = vpop.permute.xlu0 %3163
        %3165 = vrot.lane.b32.xlu0 %v3139, 126
        %v3166 = vpop.permute.xlu0 %3165
        %v3167 = vsel %vm568, %v3150, %v3152
        %v3168 = vsel %vm568, %v3152, %v3154
        %v3169 = vsel %vm568, %v3154, %v3156
        %v3170 = vsel %vm568, %v3156, %v3158
        %v3171 = vsel %vm568, %v3158, %v3160
        %v3172 = vsel %vm568, %v3160, %v3162
        %v3173 = vsel %vm568, %v3162, %v3164
        %v3174 = vsel %vm568, %v3164, %v3166
        %3183 = vst [vmem:[#allocation5 + $0x2c0] sm:$0xff] %v3167
        %3184 = vst [vmem:[#allocation5 + $0x2c8] sm:$0xff] %v3168
        %3185 = vst [vmem:[#allocation5 + $0x2d0] sm:$0xff] %v3169
        %3186 = vst [vmem:[#allocation5 + $0x2d8] sm:$0xff] %v3170
        %3187 = vst [vmem:[#allocation5 + $0x2e0] sm:$0xff] %v3171
        %3188 = vst [vmem:[#allocation5 + $0x2e8] sm:$0xff] %v3172
        %3189 = vst [vmem:[#allocation5 + $0x2f0] sm:$0xff] %v3173
        %3190 = vst [vmem:[#allocation5 + $0x2f8] sm:$0xff] %v3174
        %v3191 = vld [vmem:[#allocation4 + $0x8] sm:$0xff]
        %v3192 = vld [vmem:[#allocation4 + $0x10] sm:$0xff]
        %v3193 = vld [vmem:[#allocation4 + $0x18] sm:$0xff]
        %v3194 = vld [vmem:[#allocation4 + $0x20] sm:$0xff]
        %v3195 = vld [vmem:[#allocation4 + $0x28] sm:$0xff]
        %v3196 = vld [vmem:[#allocation4 + $0x30] sm:$0xff]
        %v3197 = vld [vmem:[#allocation4 + $0x38] sm:$0xff]
        %v3198 = vld [vmem:[#allocation4 + $0x40] sm:$0xff]
        %v3199 = vld [vmem:[#allocation4 + $0x48] sm:$0xff]
        %3209 = vrot.lane.b32.xlu0 %v3191, 124
        %v3210 = vpop.permute.xlu0 %3209
        %3211 = vrot.lane.b32.xlu0 %v3192, 124
        %v3212 = vpop.permute.xlu0 %3211
        %3213 = vrot.lane.b32.xlu0 %v3193, 124
        %v3214 = vpop.permute.xlu0 %3213
        %3215 = vrot.lane.b32.xlu0 %v3194, 124
        %v3216 = vpop.permute.xlu0 %3215
        %3217 = vrot.lane.b32.xlu0 %v3195, 124
        %v3218 = vpop.permute.xlu0 %3217
        %3219 = vrot.lane.b32.xlu0 %v3196, 124
        %v3220 = vpop.permute.xlu0 %3219
        %3221 = vrot.lane.b32.xlu0 %v3197, 124
        %v3222 = vpop.permute.xlu0 %3221
        %3223 = vrot.lane.b32.xlu0 %v3198, 124
        %v3224 = vpop.permute.xlu0 %3223
        %3225 = vrot.lane.b32.xlu0 %v3199, 124
        %v3226 = vpop.permute.xlu0 %3225
        %v3227 = vsel %vm690, %v3210, %v3212
        %v3228 = vsel %vm690, %v3212, %v3214
        %v3229 = vsel %vm690, %v3214, %v3216
        %v3230 = vsel %vm690, %v3216, %v3218
        %v3231 = vsel %vm690, %v3218, %v3220
        %v3232 = vsel %vm690, %v3220, %v3222
        %v3233 = vsel %vm690, %v3222, %v3224
        %v3234 = vsel %vm690, %v3224, %v3226
        %3243 = vst [vmem:[#allocation5 + $0x300] sm:$0xff] %v3227
        %3244 = vst [vmem:[#allocation5 + $0x308] sm:$0xff] %v3228
        %3245 = vst [vmem:[#allocation5 + $0x310] sm:$0xff] %v3229
        %3246 = vst [vmem:[#allocation5 + $0x318] sm:$0xff] %v3230
        %3247 = vst [vmem:[#allocation5 + $0x320] sm:$0xff] %v3231
        %3248 = vst [vmem:[#allocation5 + $0x328] sm:$0xff] %v3232
        %3249 = vst [vmem:[#allocation5 + $0x330] sm:$0xff] %v3233
        %3250 = vst [vmem:[#allocation5 + $0x338] sm:$0xff] %v3234
        %v3251 = vld [vmem:[#allocation4 + $0x8] sm:$0xff]
        %v3252 = vld [vmem:[#allocation4 + $0x10] sm:$0xff]
        %v3253 = vld [vmem:[#allocation4 + $0x18] sm:$0xff]
        %v3254 = vld [vmem:[#allocation4 + $0x20] sm:$0xff]
        %v3255 = vld [vmem:[#allocation4 + $0x28] sm:$0xff]
        %v3256 = vld [vmem:[#allocation4 + $0x30] sm:$0xff]
        %v3257 = vld [vmem:[#allocation4 + $0x38] sm:$0xff]
        %v3258 = vld [vmem:[#allocation4 + $0x40] sm:$0xff]
        %v3259 = vld [vmem:[#allocation4 + $0x48] sm:$0xff]
        %3269 = vrot.lane.b32.xlu0 %v3251, 122
        %v3270 = vpop.permute.xlu0 %3269
        %3271 = vrot.lane.b32.xlu0 %v3252, 122
        %v3272 = vpop.permute.xlu0 %3271
        %3273 = vrot.lane.b32.xlu0 %v3253, 122
        %v3274 = vpop.permute.xlu0 %3273
        %3275 = vrot.lane.b32.xlu0 %v3254, 122
        %v3276 = vpop.permute.xlu0 %3275
        %3277 = vrot.lane.b32.xlu0 %v3255, 122
        %v3278 = vpop.permute.xlu0 %3277
        %3279 = vrot.lane.b32.xlu0 %v3256, 122
        %v3280 = vpop.permute.xlu0 %3279
        %3281 = vrot.lane.b32.xlu0 %v3257, 122
        %v3282 = vpop.permute.xlu0 %3281
        %3283 = vrot.lane.b32.xlu0 %v3258, 122
        %v3284 = vpop.permute.xlu0 %3283
        %3285 = vrot.lane.b32.xlu0 %v3259, 122
        %v3286 = vpop.permute.xlu0 %3285
        %v3287 = vsel %vm2727, %v3270, %v3272
        %v3288 = vsel %vm2727, %v3272, %v3274
        %v3289 = vsel %vm2727, %v3274, %v3276
        %v3290 = vsel %vm2727, %v3276, %v3278
        %v3291 = vsel %vm2727, %v3278, %v3280
        %v3292 = vsel %vm2727, %v3280, %v3282
        %v3293 = vsel %vm2727, %v3282, %v3284
        %v3294 = vsel %vm2727, %v3284, %v3286
        %3303 = vst [vmem:[#allocation5 + $0x340] sm:$0xff] %v3287
        %3304 = vst [vmem:[#allocation5 + $0x348] sm:$0xff] %v3288
        %3305 = vst [vmem:[#allocation5 + $0x350] sm:$0xff] %v3289
        %3306 = vst [vmem:[#allocation5 + $0x358] sm:$0xff] %v3290
        %3307 = vst [vmem:[#allocation5 + $0x360] sm:$0xff] %v3291
        %3308 = vst [vmem:[#allocation5 + $0x368] sm:$0xff] %v3292
        %3309 = vst [vmem:[#allocation5 + $0x370] sm:$0xff] %v3293
        %3310 = vst [vmem:[#allocation5 + $0x378] sm:$0xff] %v3294
        %v3311 = vld [vmem:[#allocation4 + $0x8] sm:$0xff]
        %v3312 = vld [vmem:[#allocation4 + $0x10] sm:$0xff]
        %v3313 = vld [vmem:[#allocation4 + $0x18] sm:$0xff]
        %v3314 = vld [vmem:[#allocation4 + $0x20] sm:$0xff]
        %v3315 = vld [vmem:[#allocation4 + $0x28] sm:$0xff]
        %v3316 = vld [vmem:[#allocation4 + $0x30] sm:$0xff]
        %v3317 = vld [vmem:[#allocation4 + $0x38] sm:$0xff]
        %v3318 = vld [vmem:[#allocation4 + $0x40] sm:$0xff]
        %v3319 = vld [vmem:[#allocation4 + $0x48] sm:$0xff]
        %3329 = vrot.lane.b32.xlu0 %v3311, 120
        %v3330 = vpop.permute.xlu0 %3329
        %3331 = vrot.lane.b32.xlu0 %v3312, 120
        %v3332 = vpop.permute.xlu0 %3331
        %3333 = vrot.lane.b32.xlu0 %v3313, 120
        %v3334 = vpop.permute.xlu0 %3333
        %3335 = vrot.lane.b32.xlu0 %v3314, 120
        %v3336 = vpop.permute.xlu0 %3335
        %3337 = vrot.lane.b32.xlu0 %v3315, 120
        %v3338 = vpop.permute.xlu0 %3337
        %3339 = vrot.lane.b32.xlu0 %v3316, 120
        %v3340 = vpop.permute.xlu0 %3339
        %3341 = vrot.lane.b32.xlu0 %v3317, 120
        %v3342 = vpop.permute.xlu0 %3341
        %3343 = vrot.lane.b32.xlu0 %v3318, 120
        %v3344 = vpop.permute.xlu0 %3343
        %3345 = vrot.lane.b32.xlu0 %v3319, 120
        %v3346 = vpop.permute.xlu0 %3345
        %v3347 = vsel %vm2788, %v3330, %v3332
        %v3348 = vsel %vm2788, %v3332, %v3334
        %v3349 = vsel %vm2788, %v3334, %v3336
        %v3350 = vsel %vm2788, %v3336, %v3338
        %v3351 = vsel %vm2788, %v3338, %v3340
        %v3352 = vsel %vm2788, %v3340, %v3342
        %v3353 = vsel %vm2788, %v3342, %v3344
        %v3354 = vsel %vm2788, %v3344, %v3346
        %3363 = vst [vmem:[#allocation5 + $0x380] sm:$0xff] %v3347
        %3364 = vst [vmem:[#allocation5 + $0x388] sm:$0xff] %v3348
        %3365 = vst [vmem:[#allocation5 + $0x390] sm:$0xff] %v3349
        %3366 = vst [vmem:[#allocation5 + $0x398] sm:$0xff] %v3350
        %3367 = vst [vmem:[#allocation5 + $0x3a0] sm:$0xff] %v3351
        %3368 = vst [vmem:[#allocation5 + $0x3a8] sm:$0xff] %v3352
        %3369 = vst [vmem:[#allocation5 + $0x3b0] sm:$0xff] %v3353
        %3370 = vst [vmem:[#allocation5 + $0x3b8] sm:$0xff] %v3354
        %v3371 = vld [vmem:[#allocation4 + $0x8] sm:$0xff]
        %v3372 = vld [vmem:[#allocation4 + $0x10] sm:$0xff]
        %v3373 = vld [vmem:[#allocation4 + $0x18] sm:$0xff]
        %v3374 = vld [vmem:[#allocation4 + $0x20] sm:$0xff]
        %v3375 = vld [vmem:[#allocation4 + $0x28] sm:$0xff]
        %v3376 = vld [vmem:[#allocation4 + $0x30] sm:$0xff]
        %v3377 = vld [vmem:[#allocation4 + $0x38] sm:$0xff]
        %v3378 = vld [vmem:[#allocation4 + $0x40] sm:$0xff]
        %v3379 = vld [vmem:[#allocation4 + $0x48] sm:$0xff]
        %3389 = vrot.lane.b32.xlu0 %v3371, 64
        %v3390 = vpop.permute.xlu0 %3389
        %3391 = vrot.lane.b32.xlu0 %v3372, 64
        %v3392 = vpop.permute.xlu0 %3391
        %3393 = vrot.lane.b32.xlu0 %v3373, 64
        %v3394 = vpop.permute.xlu0 %3393
        %3395 = vrot.lane.b32.xlu0 %v3374, 64
        %v3396 = vpop.permute.xlu0 %3395
        %3397 = vrot.lane.b32.xlu0 %v3375, 64
        %v3398 = vpop.permute.xlu0 %3397
        %3399 = vrot.lane.b32.xlu0 %v3376, 64
        %v3400 = vpop.permute.xlu0 %3399
        %3401 = vrot.lane.b32.xlu0 %v3377, 64
        %v3402 = vpop.permute.xlu0 %3401
        %3403 = vrot.lane.b32.xlu0 %v3378, 64
        %v3404 = vpop.permute.xlu0 %3403
        %3405 = vrot.lane.b32.xlu0 %v3379, 64
        %v3406 = vpop.permute.xlu0 %3405
        %v3407 = vsel %vm1056, %v3390, %v3392
        %v3408 = vsel %vm1056, %v3392, %v3394
        %v3409 = vsel %vm1056, %v3394, %v3396
        %v3410 = vsel %vm1056, %v3396, %v3398
        %v3411 = vsel %vm1056, %v3398, %v3400
        %v3412 = vsel %vm1056, %v3400, %v3402
        %v3413 = vsel %vm1056, %v3402, %v3404
        %v3414 = vsel %vm1056, %v3404, %v3406
        %3423 = vst [vmem:[#allocation5 + $0x3c0] sm:$0xff] %v3407
        %3424 = vst [vmem:[#allocation5 + $0x3c8] sm:$0xff] %v3408
        %3425 = vst [vmem:[#allocation5 + $0x3d0] sm:$0xff] %v3409
        %3426 = vst [vmem:[#allocation5 + $0x3d8] sm:$0xff] %v3410
        %3427 = vst [vmem:[#allocation5 + $0x3e0] sm:$0xff] %v3411
        %3428 = vst [vmem:[#allocation5 + $0x3e8] sm:$0xff] %v3412
        %3429 = vst [vmem:[#allocation5 + $0x3f0] sm:$0xff] %v3413
        %3430 = vst [vmem:[#allocation5 + $0x3f8] sm:$0xff] %v3414
        %v3431 = vld [vmem:[#allocation4 + $0x8] sm:$0xff]
        %v3432 = vld [vmem:[#allocation4 + $0x10] sm:$0xff]
        %v3433 = vld [vmem:[#allocation4 + $0x18] sm:$0xff]
        %v3434 = vld [vmem:[#allocation4 + $0x20] sm:$0xff]
        %v3435 = vld [vmem:[#allocation4 + $0x28] sm:$0xff]
        %v3436 = vld [vmem:[#allocation4 + $0x30] sm:$0xff]
        %v3437 = vld [vmem:[#allocation4 + $0x38] sm:$0xff]
        %v3438 = vld [vmem:[#allocation4 + $0x40] sm:$0xff]
        %v3439 = vld [vmem:[#allocation4 + $0x48] sm:$0xff]
        %3449 = vrot.lane.b32.xlu0 %v3431, 62
        %v3450 = vpop.permute.xlu0 %3449
        %3451 = vrot.lane.b32.xlu0 %v3432, 62
        %v3452 = vpop.permute.xlu0 %3451
        %3453 = vrot.lane.b32.xlu0 %v3433, 62
        %v3454 = vpop.permute.xlu0 %3453
        %3455 = vrot.lane.b32.xlu0 %v3434, 62
        %v3456 = vpop.permute.xlu0 %3455
        %3457 = vrot.lane.b32.xlu0 %v3435, 62
        %v3458 = vpop.permute.xlu0 %3457
        %3459 = vrot.lane.b32.xlu0 %v3436, 62
        %v3460 = vpop.permute.xlu0 %3459
        %3461 = vrot.lane.b32.xlu0 %v3437, 62
        %v3462 = vpop.permute.xlu0 %3461
        %3463 = vrot.lane.b32.xlu0 %v3438, 62
        %v3464 = vpop.permute.xlu0 %3463
        %3465 = vrot.lane.b32.xlu0 %v3439, 62
        %v3466 = vpop.permute.xlu0 %3465
        %v3467 = vsel %vm1178, %v3450, %v3452
        %v3468 = vsel %vm1178, %v3452, %v3454
        %v3469 = vsel %vm1178, %v3454, %v3456
        %v3470 = vsel %vm1178, %v3456, %v3458
        %v3471 = vsel %vm1178, %v3458, %v3460
        %v3472 = vsel %vm1178, %v3460, %v3462
        %v3473 = vsel %vm1178, %v3462, %v3464
        %v3474 = vsel %vm1178, %v3464, %v3466
        %3483 = vst [vmem:[#allocation5 + $0x400] sm:$0xff] %v3467
        %3484 = vst [vmem:[#allocation5 + $0x408] sm:$0xff] %v3468
        %3485 = vst [vmem:[#allocation5 + $0x410] sm:$0xff] %v3469
        %3486 = vst [vmem:[#allocation5 + $0x418] sm:$0xff] %v3470
        %3487 = vst [vmem:[#allocation5 + $0x420] sm:$0xff] %v3471
        %3488 = vst [vmem:[#allocation5 + $0x428] sm:$0xff] %v3472
        %3489 = vst [vmem:[#allocation5 + $0x430] sm:$0xff] %v3473
        %3490 = vst [vmem:[#allocation5 + $0x438] sm:$0xff] %v3474
        %v3491 = vld [vmem:[#allocation4 + $0x8] sm:$0xff]
        %v3492 = vld [vmem:[#allocation4 + $0x10] sm:$0xff]
        %v3493 = vld [vmem:[#allocation4 + $0x18] sm:$0xff]
        %v3494 = vld [vmem:[#allocation4 + $0x20] sm:$0xff]
        %v3495 = vld [vmem:[#allocation4 + $0x28] sm:$0xff]
        %v3496 = vld [vmem:[#allocation4 + $0x30] sm:$0xff]
        %v3497 = vld [vmem:[#allocation4 + $0x38] sm:$0xff]
        %v3498 = vld [vmem:[#allocation4 + $0x40] sm:$0xff]
        %v3499 = vld [vmem:[#allocation4 + $0x48] sm:$0xff]
        %3509 = vrot.lane.b32.xlu0 %v3491, 60
        %v3510 = vpop.permute.xlu0 %3509
        %3511 = vrot.lane.b32.xlu0 %v3492, 60
        %v3512 = vpop.permute.xlu0 %3511
        %3513 = vrot.lane.b32.xlu0 %v3493, 60
        %v3514 = vpop.permute.xlu0 %3513
        %3515 = vrot.lane.b32.xlu0 %v3494, 60
        %v3516 = vpop.permute.xlu0 %3515
        %3517 = vrot.lane.b32.xlu0 %v3495, 60
        %v3518 = vpop.permute.xlu0 %3517
        %3519 = vrot.lane.b32.xlu0 %v3496, 60
        %v3520 = vpop.permute.xlu0 %3519
        %3521 = vrot.lane.b32.xlu0 %v3497, 60
        %v3522 = vpop.permute.xlu0 %3521
        %3523 = vrot.lane.b32.xlu0 %v3498, 60
        %v3524 = vpop.permute.xlu0 %3523
        %3525 = vrot.lane.b32.xlu0 %v3499, 60
        %v3526 = vpop.permute.xlu0 %3525
        %v3527 = vsel %vm1300, %v3510, %v3512
        %v3528 = vsel %vm1300, %v3512, %v3514
        %v3529 = vsel %vm1300, %v3514, %v3516
        %v3530 = vsel %vm1300, %v3516, %v3518
        %v3531 = vsel %vm1300, %v3518, %v3520
        %v3532 = vsel %vm1300, %v3520, %v3522
        %v3533 = vsel %vm1300, %v3522, %v3524
        %v3534 = vsel %vm1300, %v3524, %v3526
        %3543 = vst [vmem:[#allocation5 + $0x440] sm:$0xff] %v3527
        %3544 = vst [vmem:[#allocation5 + $0x448] sm:$0xff] %v3528
        %3545 = vst [vmem:[#allocation5 + $0x450] sm:$0xff] %v3529
        %3546 = vst [vmem:[#allocation5 + $0x458] sm:$0xff] %v3530
        %3547 = vst [vmem:[#allocation5 + $0x460] sm:$0xff] %v3531
        %3548 = vst [vmem:[#allocation5 + $0x468] sm:$0xff] %v3532
        %3549 = vst [vmem:[#allocation5 + $0x470] sm:$0xff] %v3533
        %3550 = vst [vmem:[#allocation5 + $0x478] sm:$0xff] %v3534
        %v3551 = vld [vmem:[#allocation4 + $0x8] sm:$0xff]
        %v3552 = vld [vmem:[#allocation4 + $0x10] sm:$0xff]
        %v3553 = vld [vmem:[#allocation4 + $0x18] sm:$0xff]
        %v3554 = vld [vmem:[#allocation4 + $0x20] sm:$0xff]
        %v3555 = vld [vmem:[#allocation4 + $0x28] sm:$0xff]
        %v3556 = vld [vmem:[#allocation4 + $0x30] sm:$0xff]
        %v3557 = vld [vmem:[#allocation4 + $0x38] sm:$0xff]
        %v3558 = vld [vmem:[#allocation4 + $0x40] sm:$0xff]
        %v3559 = vld [vmem:[#allocation4 + $0x48] sm:$0xff]
        %3569 = vrot.lane.b32.xlu0 %v3551, 58
        %v3570 = vpop.permute.xlu0 %3569
        %3571 = vrot.lane.b32.xlu0 %v3552, 58
        %v3572 = vpop.permute.xlu0 %3571
        %3573 = vrot.lane.b32.xlu0 %v3553, 58
        %v3574 = vpop.permute.xlu0 %3573
        %3575 = vrot.lane.b32.xlu0 %v3554, 58
        %v3576 = vpop.permute.xlu0 %3575
        %3577 = vrot.lane.b32.xlu0 %v3555, 58
        %v3578 = vpop.permute.xlu0 %3577
        %3579 = vrot.lane.b32.xlu0 %v3556, 58
        %v3580 = vpop.permute.xlu0 %3579
        %3581 = vrot.lane.b32.xlu0 %v3557, 58
        %v3582 = vpop.permute.xlu0 %3581
        %3583 = vrot.lane.b32.xlu0 %v3558, 58
        %v3584 = vpop.permute.xlu0 %3583
        %3585 = vrot.lane.b32.xlu0 %v3559, 58
        %v3586 = vpop.permute.xlu0 %3585
        %v3587 = vsel %vm3029, %v3570, %v3572
        %v3588 = vsel %vm3029, %v3572, %v3574
        %v3589 = vsel %vm3029, %v3574, %v3576
        %v3590 = vsel %vm3029, %v3576, %v3578
        %v3591 = vsel %vm3029, %v3578, %v3580
        %v3592 = vsel %vm3029, %v3580, %v3582
        %v3593 = vsel %vm3029, %v3582, %v3584
        %v3594 = vsel %vm3029, %v3584, %v3586
        %3603 = vst [vmem:[#allocation5 + $0x480] sm:$0xff] %v3587
        %3604 = vst [vmem:[#allocation5 + $0x488] sm:$0xff] %v3588
        %3605 = vst [vmem:[#allocation5 + $0x490] sm:$0xff] %v3589
        %3606 = vst [vmem:[#allocation5 + $0x498] sm:$0xff] %v3590
        %3607 = vst [vmem:[#allocation5 + $0x4a0] sm:$0xff] %v3591
        %3608 = vst [vmem:[#allocation5 + $0x4a8] sm:$0xff] %v3592
        %3609 = vst [vmem:[#allocation5 + $0x4b0] sm:$0xff] %v3593
        %3610 = vst [vmem:[#allocation5 + $0x4b8] sm:$0xff] %v3594
        %v3611 = vld [vmem:[#allocation4 + $0x8] sm:$0xff]
        %v3612 = vld [vmem:[#allocation4 + $0x10] sm:$0xff]
        %v3613 = vld [vmem:[#allocation4 + $0x18] sm:$0xff]
        %v3614 = vld [vmem:[#allocation4 + $0x20] sm:$0xff]
        %v3615 = vld [vmem:[#allocation4 + $0x28] sm:$0xff]
        %v3616 = vld [vmem:[#allocation4 + $0x30] sm:$0xff]
        %v3617 = vld [vmem:[#allocation4 + $0x38] sm:$0xff]
        %v3618 = vld [vmem:[#allocation4 + $0x40] sm:$0xff]
        %v3619 = vld [vmem:[#allocation4 + $0x48] sm:$0xff]
        %3629 = vrot.lane.b32.xlu0 %v3611, 56
        %v3630 = vpop.permute.xlu0 %3629
        %3631 = vrot.lane.b32.xlu0 %v3612, 56
        %v3632 = vpop.permute.xlu0 %3631
        %3633 = vrot.lane.b32.xlu0 %v3613, 56
        %v3634 = vpop.permute.xlu0 %3633
        %3635 = vrot.lane.b32.xlu0 %v3614, 56
        %v3636 = vpop.permute.xlu0 %3635
        %3637 = vrot.lane.b32.xlu0 %v3615, 56
        %v3638 = vpop.permute.xlu0 %3637
        %3639 = vrot.lane.b32.xlu0 %v3616, 56
        %v3640 = vpop.permute.xlu0 %3639
        %3641 = vrot.lane.b32.xlu0 %v3617, 56
        %v3642 = vpop.permute.xlu0 %3641
        %3643 = vrot.lane.b32.xlu0 %v3618, 56
        %v3644 = vpop.permute.xlu0 %3643
        %3645 = vrot.lane.b32.xlu0 %v3619, 56
        %v3646 = vpop.permute.xlu0 %3645
        %v3647 = vsel %vm3090, %v3630, %v3632
        %v3648 = vsel %vm3090, %v3632, %v3634
        %v3649 = vsel %vm3090, %v3634, %v3636
        %v3650 = vsel %vm3090, %v3636, %v3638
        %v3651 = vsel %vm3090, %v3638, %v3640
        %v3652 = vsel %vm3090, %v3640, %v3642
        %v3653 = vsel %vm3090, %v3642, %v3644
        %v3654 = vsel %vm3090, %v3644, %v3646
        %3663 = vst [vmem:[#allocation5 + $0x4c0] sm:$0xff] %v3647
        %3664 = vst [vmem:[#allocation5 + $0x4c8] sm:$0xff] %v3648
        %3665 = vst [vmem:[#allocation5 + $0x4d0] sm:$0xff] %v3649
        %3666 = vst [vmem:[#allocation5 + $0x4d8] sm:$0xff] %v3650
        %3667 = vst [vmem:[#allocation5 + $0x4e0] sm:$0xff] %v3651
        %3668 = vst [vmem:[#allocation5 + $0x4e8] sm:$0xff] %v3652
        %3669 = vst [vmem:[#allocation5 + $0x4f0] sm:$0xff] %v3653
        %3670 = vst [vmem:[#allocation5 + $0x4f8] sm:$0xff] %v3654
        %v3671 = vld [vmem:[#allocation4 + $0x10] sm:$0xff]
        %v3672 = vld [vmem:[#allocation4 + $0x18] sm:$0xff]
        %v3673 = vld [vmem:[#allocation4 + $0x20] sm:$0xff]
        %v3674 = vld [vmem:[#allocation4 + $0x28] sm:$0xff]
        %v3675 = vld [vmem:[#allocation4 + $0x30] sm:$0xff]
        %v3676 = vld [vmem:[#allocation4 + $0x38] sm:$0xff]
        %v3677 = vld [vmem:[#allocation4 + $0x40] sm:$0xff]
        %v3678 = vld [vmem:[#allocation4 + $0x48] sm:$0xff]
        %3679 = vst [vmem:[#allocation5 + $0x500] sm:$0xff] %v3671
        %3680 = vst [vmem:[#allocation5 + $0x508] sm:$0xff] %v3672
        %3681 = vst [vmem:[#allocation5 + $0x510] sm:$0xff] %v3673
        %3682 = vst [vmem:[#allocation5 + $0x518] sm:$0xff] %v3674
        %3683 = vst [vmem:[#allocation5 + $0x520] sm:$0xff] %v3675
        %3684 = vst [vmem:[#allocation5 + $0x528] sm:$0xff] %v3676
        %3685 = vst [vmem:[#allocation5 + $0x530] sm:$0xff] %v3677
        %3686 = vst [vmem:[#allocation5 + $0x538] sm:$0xff] %v3678
        %v3687 = vld [vmem:[#allocation4 + $0x10] sm:$0xff]
        %v3688 = vld [vmem:[#allocation4 + $0x18] sm:$0xff]
        %v3689 = vld [vmem:[#allocation4 + $0x20] sm:$0xff]
        %v3690 = vld [vmem:[#allocation4 + $0x28] sm:$0xff]
        %v3691 = vld [vmem:[#allocation4 + $0x30] sm:$0xff]
        %v3692 = vld [vmem:[#allocation4 + $0x38] sm:$0xff]
        %v3693 = vld [vmem:[#allocation4 + $0x40] sm:$0xff]
        %v3694 = vld [vmem:[#allocation4 + $0x48] sm:$0xff]
        %v3695 = vld [vmem:[#allocation4 + $0x50] sm:$0xff]
        %3705 = vrot.lane.b32.xlu0 %v3687, 126
        %v3706 = vpop.permute.xlu0 %3705
        %3707 = vrot.lane.b32.xlu0 %v3688, 126
        %v3708 = vpop.permute.xlu0 %3707
        %3709 = vrot.lane.b32.xlu0 %v3689, 126
        %v3710 = vpop.permute.xlu0 %3709
        %3711 = vrot.lane.b32.xlu0 %v3690, 126
        %v3712 = vpop.permute.xlu0 %3711
        %3713 = vrot.lane.b32.xlu0 %v3691, 126
        %v3714 = vpop.permute.xlu0 %3713
        %3715 = vrot.lane.b32.xlu0 %v3692, 126
        %v3716 = vpop.permute.xlu0 %3715
        %3717 = vrot.lane.b32.xlu0 %v3693, 126
        %v3718 = vpop.permute.xlu0 %3717
        %3719 = vrot.lane.b32.xlu0 %v3694, 126
        %v3720 = vpop.permute.xlu0 %3719
        %3721 = vrot.lane.b32.xlu0 %v3695, 126
        %v3722 = vpop.permute.xlu0 %3721
        %v3723 = vsel %vm568, %v3706, %v3708
        %v3724 = vsel %vm568, %v3708, %v3710
        %v3725 = vsel %vm568, %v3710, %v3712
        %v3726 = vsel %vm568, %v3712, %v3714
        %v3727 = vsel %vm568, %v3714, %v3716
        %v3728 = vsel %vm568, %v3716, %v3718
        %v3729 = vsel %vm568, %v3718, %v3720
        %v3730 = vsel %vm568, %v3720, %v3722
        %3739 = vst [vmem:[#allocation5 + $0x540] sm:$0xff] %v3723
        %3740 = vst [vmem:[#allocation5 + $0x548] sm:$0xff] %v3724
        %3741 = vst [vmem:[#allocation5 + $0x550] sm:$0xff] %v3725
        %3742 = vst [vmem:[#allocation5 + $0x558] sm:$0xff] %v3726
        %3743 = vst [vmem:[#allocation5 + $0x560] sm:$0xff] %v3727
        %3744 = vst [vmem:[#allocation5 + $0x568] sm:$0xff] %v3728
        %3745 = vst [vmem:[#allocation5 + $0x570] sm:$0xff] %v3729
        %3746 = vst [vmem:[#allocation5 + $0x578] sm:$0xff] %v3730
        %v3747 = vld [vmem:[#allocation4 + $0x10] sm:$0xff]
        %v3748 = vld [vmem:[#allocation4 + $0x18] sm:$0xff]
        %v3749 = vld [vmem:[#allocation4 + $0x20] sm:$0xff]
        %v3750 = vld [vmem:[#allocation4 + $0x28] sm:$0xff]
        %v3751 = vld [vmem:[#allocation4 + $0x30] sm:$0xff]
        %v3752 = vld [vmem:[#allocation4 + $0x38] sm:$0xff]
        %v3753 = vld [vmem:[#allocation4 + $0x40] sm:$0xff]
        %v3754 = vld [vmem:[#allocation4 + $0x48] sm:$0xff]
        %v3755 = vld [vmem:[#allocation4 + $0x50] sm:$0xff]
        %3765 = vrot.lane.b32.xlu0 %v3747, 124
        %v3766 = vpop.permute.xlu0 %3765
        %3767 = vrot.lane.b32.xlu0 %v3748, 124
        %v3768 = vpop.permute.xlu0 %3767
        %3769 = vrot.lane.b32.xlu0 %v3749, 124
        %v3770 = vpop.permute.xlu0 %3769
        %3771 = vrot.lane.b32.xlu0 %v3750, 124
        %v3772 = vpop.permute.xlu0 %3771
        %3773 = vrot.lane.b32.xlu0 %v3751, 124
        %v3774 = vpop.permute.xlu0 %3773
        %3775 = vrot.lane.b32.xlu0 %v3752, 124
        %v3776 = vpop.permute.xlu0 %3775
        %3777 = vrot.lane.b32.xlu0 %v3753, 124
        %v3778 = vpop.permute.xlu0 %3777
        %3779 = vrot.lane.b32.xlu0 %v3754, 124
        %v3780 = vpop.permute.xlu0 %3779
        %3781 = vrot.lane.b32.xlu0 %v3755, 124
        %v3782 = vpop.permute.xlu0 %3781
        %v3783 = vsel %vm690, %v3766, %v3768
        %v3784 = vsel %vm690, %v3768, %v3770
        %v3785 = vsel %vm690, %v3770, %v3772
        %v3786 = vsel %vm690, %v3772, %v3774
        %v3787 = vsel %vm690, %v3774, %v3776
        %v3788 = vsel %vm690, %v3776, %v3778
        %v3789 = vsel %vm690, %v3778, %v3780
        %v3790 = vsel %vm690, %v3780, %v3782
        %3799 = vst [vmem:[#allocation5 + $0x580] sm:$0xff] %v3783
        %3800 = vst [vmem:[#allocation5 + $0x588] sm:$0xff] %v3784
        %3801 = vst [vmem:[#allocation5 + $0x590] sm:$0xff] %v3785
        %3802 = vst [vmem:[#allocation5 + $0x598] sm:$0xff] %v3786
        %3803 = vst [vmem:[#allocation5 + $0x5a0] sm:$0xff] %v3787
        %3804 = vst [vmem:[#allocation5 + $0x5a8] sm:$0xff] %v3788
        %3805 = vst [vmem:[#allocation5 + $0x5b0] sm:$0xff] %v3789
        %3806 = vst [vmem:[#allocation5 + $0x5b8] sm:$0xff] %v3790
        %v3807 = vld [vmem:[#allocation4 + $0x10] sm:$0xff]
        %v3808 = vld [vmem:[#allocation4 + $0x18] sm:$0xff]
        %v3809 = vld [vmem:[#allocation4 + $0x20] sm:$0xff]
        %v3810 = vld [vmem:[#allocation4 + $0x28] sm:$0xff]
        %v3811 = vld [vmem:[#allocation4 + $0x30] sm:$0xff]
        %v3812 = vld [vmem:[#allocation4 + $0x38] sm:$0xff]
        %v3813 = vld [vmem:[#allocation4 + $0x40] sm:$0xff]
        %v3814 = vld [vmem:[#allocation4 + $0x48] sm:$0xff]
        %v3815 = vld [vmem:[#allocation4 + $0x50] sm:$0xff]
        %3825 = vrot.lane.b32.xlu0 %v3807, 122
        %v3826 = vpop.permute.xlu0 %3825
        %3827 = vrot.lane.b32.xlu0 %v3808, 122
        %v3828 = vpop.permute.xlu0 %3827
        %3829 = vrot.lane.b32.xlu0 %v3809, 122
        %v3830 = vpop.permute.xlu0 %3829
        %3831 = vrot.lane.b32.xlu0 %v3810, 122
        %v3832 = vpop.permute.xlu0 %3831
        %3833 = vrot.lane.b32.xlu0 %v3811, 122
        %v3834 = vpop.permute.xlu0 %3833
        %3835 = vrot.lane.b32.xlu0 %v3812, 122
        %v3836 = vpop.permute.xlu0 %3835
        %3837 = vrot.lane.b32.xlu0 %v3813, 122
        %v3838 = vpop.permute.xlu0 %3837
        %3839 = vrot.lane.b32.xlu0 %v3814, 122
        %v3840 = vpop.permute.xlu0 %3839
        %3841 = vrot.lane.b32.xlu0 %v3815, 122
        %v3842 = vpop.permute.xlu0 %3841
        %v3843 = vsel %vm2727, %v3826, %v3828
        %v3844 = vsel %vm2727, %v3828, %v3830
        %v3845 = vsel %vm2727, %v3830, %v3832
        %v3846 = vsel %vm2727, %v3832, %v3834
        %v3847 = vsel %vm2727, %v3834, %v3836
        %v3848 = vsel %vm2727, %v3836, %v3838
        %v3849 = vsel %vm2727, %v3838, %v3840
        %v3850 = vsel %vm2727, %v3840, %v3842
        %3859 = vst [vmem:[#allocation5 + $0x5c0] sm:$0xff] %v3843
        %3860 = vst [vmem:[#allocation5 + $0x5c8] sm:$0xff] %v3844
        %3861 = vst [vmem:[#allocation5 + $0x5d0] sm:$0xff] %v3845
        %3862 = vst [vmem:[#allocation5 + $0x5d8] sm:$0xff] %v3846
        %3863 = vst [vmem:[#allocation5 + $0x5e0] sm:$0xff] %v3847
        %3864 = vst [vmem:[#allocation5 + $0x5e8] sm:$0xff] %v3848
        %3865 = vst [vmem:[#allocation5 + $0x5f0] sm:$0xff] %v3849
        %3866 = vst [vmem:[#allocation5 + $0x5f8] sm:$0xff] %v3850
        %v3867 = vld [vmem:[#allocation4 + $0x10] sm:$0xff]
        %v3868 = vld [vmem:[#allocation4 + $0x18] sm:$0xff]
        %v3869 = vld [vmem:[#allocation4 + $0x20] sm:$0xff]
        %v3870 = vld [vmem:[#allocation4 + $0x28] sm:$0xff]
        %v3871 = vld [vmem:[#allocation4 + $0x30] sm:$0xff]
        %v3872 = vld [vmem:[#allocation4 + $0x38] sm:$0xff]
        %v3873 = vld [vmem:[#allocation4 + $0x40] sm:$0xff]
        %v3874 = vld [vmem:[#allocation4 + $0x48] sm:$0xff]
        %v3875 = vld [vmem:[#allocation4 + $0x50] sm:$0xff]
        %3885 = vrot.lane.b32.xlu0 %v3867, 120
        %v3886 = vpop.permute.xlu0 %3885
        %3887 = vrot.lane.b32.xlu0 %v3868, 120
        %v3888 = vpop.permute.xlu0 %3887
        %3889 = vrot.lane.b32.xlu0 %v3869, 120
        %v3890 = vpop.permute.xlu0 %3889
        %3891 = vrot.lane.b32.xlu0 %v3870, 120
        %v3892 = vpop.permute.xlu0 %3891
        %3893 = vrot.lane.b32.xlu0 %v3871, 120
        %v3894 = vpop.permute.xlu0 %3893
        %3895 = vrot.lane.b32.xlu0 %v3872, 120
        %v3896 = vpop.permute.xlu0 %3895
        %3897 = vrot.lane.b32.xlu0 %v3873, 120
        %v3898 = vpop.permute.xlu0 %3897
        %3899 = vrot.lane.b32.xlu0 %v3874, 120
        %v3900 = vpop.permute.xlu0 %3899
        %3901 = vrot.lane.b32.xlu0 %v3875, 120
        %v3902 = vpop.permute.xlu0 %3901
        %v3903 = vsel %vm2788, %v3886, %v3888
        %v3904 = vsel %vm2788, %v3888, %v3890
        %v3905 = vsel %vm2788, %v3890, %v3892
        %v3906 = vsel %vm2788, %v3892, %v3894
        %v3907 = vsel %vm2788, %v3894, %v3896
        %v3908 = vsel %vm2788, %v3896, %v3898
        %v3909 = vsel %vm2788, %v3898, %v3900
        %v3910 = vsel %vm2788, %v3900, %v3902
        %3919 = vst [vmem:[#allocation5 + $0x600] sm:$0xff] %v3903
        %3920 = vst [vmem:[#allocation5 + $0x608] sm:$0xff] %v3904
        %3921 = vst [vmem:[#allocation5 + $0x610] sm:$0xff] %v3905
        %3922 = vst [vmem:[#allocation5 + $0x618] sm:$0xff] %v3906
        %3923 = vst [vmem:[#allocation5 + $0x620] sm:$0xff] %v3907
        %3924 = vst [vmem:[#allocation5 + $0x628] sm:$0xff] %v3908
        %3925 = vst [vmem:[#allocation5 + $0x630] sm:$0xff] %v3909
        %3926 = vst [vmem:[#allocation5 + $0x638] sm:$0xff] %v3910
        %v3927 = vld [vmem:[%s3] sm:$0xff]
        %v3928 = vld [vmem:[%s3 + $0x8] sm:$0xff]
        %v3929 = vld [vmem:[%s3 + $0x10] sm:$0xff]
        %v3930 = vld [vmem:[%s3 + $0x18] sm:$0xff]
        %v3931 = vld [vmem:[#allocation5] sm:$0xff]
        %v3932 = vld [vmem:[#allocation5 + $0x8] sm:$0xff]
        %v3933 = vld [vmem:[#allocation5 + $0x10] sm:$0xff]
        %v3934 = vld [vmem:[#allocation5 + $0x18] sm:$0xff]
        %v3935 = vld [vmem:[#allocation5 + $0x20] sm:$0xff]
        %v3936 = vld [vmem:[#allocation5 + $0x28] sm:$0xff]
        %v3937 = vld [vmem:[#allocation5 + $0x30] sm:$0xff]
        %v3938 = vld [vmem:[#allocation5 + $0x38] sm:$0xff]
        %v3939 = vld [vmem:[#allocation5 + $0x40] sm:$0xff]
        %v3940 = vld [vmem:[#allocation5 + $0x48] sm:$0xff]
        %v3941 = vld [vmem:[#allocation5 + $0x50] sm:$0xff]
        %v3942 = vld [vmem:[#allocation5 + $0x58] sm:$0xff]
        %v3943 = vld [vmem:[#allocation5 + $0x60] sm:$0xff]
        %v3944 = vld [vmem:[#allocation5 + $0x68] sm:$0xff]
        %v3945 = vld [vmem:[#allocation5 + $0x70] sm:$0xff]
        %v3946 = vld [vmem:[#allocation5 + $0x78] sm:$0xff]
        %v3947 = vld [vmem:[#allocation5 + $0x80] sm:$0xff]
        %v3948 = vld [vmem:[#allocation5 + $0x88] sm:$0xff]
        %v3949 = vld [vmem:[#allocation5 + $0x90] sm:$0xff]
        %v3950 = vld [vmem:[#allocation5 + $0x98] sm:$0xff]
        %v3951 = vld [vmem:[#allocation5 + $0xa0] sm:$0xff]
        %v3952 = vld [vmem:[#allocation5 + $0xa8] sm:$0xff]
        %v3953 = vld [vmem:[#allocation5 + $0xb0] sm:$0xff]
        %v3954 = vld [vmem:[#allocation5 + $0xb8] sm:$0xff]
        %v3955 = vld [vmem:[#allocation5 + $0xc0] sm:$0xff]
        %v3956 = vld [vmem:[#allocation5 + $0xc8] sm:$0xff]
        %v3957 = vld [vmem:[#allocation5 + $0xd0] sm:$0xff]
        %v3958 = vld [vmem:[#allocation5 + $0xd8] sm:$0xff]
        %v3959 = vld [vmem:[#allocation5 + $0xe0] sm:$0xff]
        %v3960 = vld [vmem:[#allocation5 + $0xe8] sm:$0xff]
        %v3961 = vld [vmem:[#allocation5 + $0xf0] sm:$0xff]
        %v3962 = vld [vmem:[#allocation5 + $0xf8] sm:$0xff]
        %v3963 = vld [vmem:[#allocation5 + $0x100] sm:$0xff]
        %v3964 = vld [vmem:[#allocation5 + $0x108] sm:$0xff]
        %v3965 = vld [vmem:[#allocation5 + $0x110] sm:$0xff]
        %v3966 = vld [vmem:[#allocation5 + $0x118] sm:$0xff]
        %v3967 = vld [vmem:[#allocation5 + $0x120] sm:$0xff]
        %v3968 = vld [vmem:[#allocation5 + $0x128] sm:$0xff]
        %v3969 = vld [vmem:[#allocation5 + $0x130] sm:$0xff]
        %v3970 = vld [vmem:[#allocation5 + $0x138] sm:$0xff]
        %v3971 = vld [vmem:[#allocation5 + $0x140] sm:$0xff]
        %v3972 = vld [vmem:[#allocation5 + $0x148] sm:$0xff]
        %v3973 = vld [vmem:[#allocation5 + $0x150] sm:$0xff]
        %v3974 = vld [vmem:[#allocation5 + $0x158] sm:$0xff]
        %v3975 = vld [vmem:[#allocation5 + $0x160] sm:$0xff]
        %v3976 = vld [vmem:[#allocation5 + $0x168] sm:$0xff]
        %v3977 = vld [vmem:[#allocation5 + $0x170] sm:$0xff]
        %v3978 = vld [vmem:[#allocation5 + $0x178] sm:$0xff]
        %v3979 = vld [vmem:[#allocation5 + $0x180] sm:$0xff]
        %v3980 = vld [vmem:[#allocation5 + $0x188] sm:$0xff]
        %v3981 = vld [vmem:[#allocation5 + $0x190] sm:$0xff]
        %v3982 = vld [vmem:[#allocation5 + $0x198] sm:$0xff]
        %v3983 = vld [vmem:[#allocation5 + $0x1a0] sm:$0xff]
        %v3984 = vld [vmem:[#allocation5 + $0x1a8] sm:$0xff]
        %v3985 = vld [vmem:[#allocation5 + $0x1b0] sm:$0xff]
        %v3986 = vld [vmem:[#allocation5 + $0x1b8] sm:$0xff]
        %v3987 = vld [vmem:[#allocation5 + $0x1c0] sm:$0xff]
        %v3988 = vld [vmem:[#allocation5 + $0x1c8] sm:$0xff]
        %v3989 = vld [vmem:[#allocation5 + $0x1d0] sm:$0xff]
        %v3990 = vld [vmem:[#allocation5 + $0x1d8] sm:$0xff]
        %v3991 = vld [vmem:[#allocation5 + $0x1e0] sm:$0xff]
        %v3992 = vld [vmem:[#allocation5 + $0x1e8] sm:$0xff]
        %v3993 = vld [vmem:[#allocation5 + $0x1f0] sm:$0xff]
        %v3994 = vld [vmem:[#allocation5 + $0x1f8] sm:$0xff]
        %v3995 = vld [vmem:[#allocation5 + $0x200] sm:$0xff]
        %v3996 = vld [vmem:[#allocation5 + $0x208] sm:$0xff]
        %v3997 = vld [vmem:[#allocation5 + $0x210] sm:$0xff]
        %v3998 = vld [vmem:[#allocation5 + $0x218] sm:$0xff]
        %v3999 = vld [vmem:[#allocation5 + $0x220] sm:$0xff]
        %v4000 = vld [vmem:[#allocation5 + $0x228] sm:$0xff]
        %v4001 = vld [vmem:[#allocation5 + $0x230] sm:$0xff]
        %v4002 = vld [vmem:[#allocation5 + $0x238] sm:$0xff]
        %v4003 = vld [vmem:[#allocation5 + $0x240] sm:$0xff]
        %v4004 = vld [vmem:[#allocation5 + $0x248] sm:$0xff]
        %v4005 = vld [vmem:[#allocation5 + $0x250] sm:$0xff]
        %v4006 = vld [vmem:[#allocation5 + $0x258] sm:$0xff]
        %v4007 = vld [vmem:[#allocation5 + $0x260] sm:$0xff]
        %v4008 = vld [vmem:[#allocation5 + $0x268] sm:$0xff]
        %v4009 = vld [vmem:[#allocation5 + $0x270] sm:$0xff]
        %v4010 = vld [vmem:[#allocation5 + $0x278] sm:$0xff]
        %v4011 = vld [vmem:[#allocation5 + $0x280] sm:$0xff]
        %v4012 = vld [vmem:[#allocation5 + $0x288] sm:$0xff]
        %v4013 = vld [vmem:[#allocation5 + $0x290] sm:$0xff]
        %v4014 = vld [vmem:[#allocation5 + $0x298] sm:$0xff]
        %v4015 = vld [vmem:[#allocation5 + $0x2a0] sm:$0xff]
        %v4016 = vld [vmem:[#allocation5 + $0x2a8] sm:$0xff]
        %v4017 = vld [vmem:[#allocation5 + $0x2b0] sm:$0xff]
        %v4018 = vld [vmem:[#allocation5 + $0x2b8] sm:$0xff]
        %v4019 = vld [vmem:[#allocation5 + $0x2c0] sm:$0xff]
        %v4020 = vld [vmem:[#allocation5 + $0x2c8] sm:$0xff]
        %v4021 = vld [vmem:[#allocation5 + $0x2d0] sm:$0xff]
        %v4022 = vld [vmem:[#allocation5 + $0x2d8] sm:$0xff]
        %v4023 = vld [vmem:[#allocation5 + $0x2e0] sm:$0xff]
        %v4024 = vld [vmem:[#allocation5 + $0x2e8] sm:$0xff]
        %v4025 = vld [vmem:[#allocation5 + $0x2f0] sm:$0xff]
        %v4026 = vld [vmem:[#allocation5 + $0x2f8] sm:$0xff]
        %v4027 = vld [vmem:[#allocation5 + $0x300] sm:$0xff]
        %v4028 = vld [vmem:[#allocation5 + $0x308] sm:$0xff]
        %v4029 = vld [vmem:[#allocation5 + $0x310] sm:$0xff]
        %v4030 = vld [vmem:[#allocation5 + $0x318] sm:$0xff]
        %v4031 = vld [vmem:[#allocation5 + $0x320] sm:$0xff]
        %v4032 = vld [vmem:[#allocation5 + $0x328] sm:$0xff]
        %v4033 = vld [vmem:[#allocation5 + $0x330] sm:$0xff]
        %v4034 = vld [vmem:[#allocation5 + $0x338] sm:$0xff]
        %v4035 = vld [vmem:[#allocation5 + $0x340] sm:$0xff]
        %v4036 = vld [vmem:[#allocation5 + $0x348] sm:$0xff]
        %v4037 = vld [vmem:[#allocation5 + $0x350] sm:$0xff]
        %v4038 = vld [vmem:[#allocation5 + $0x358] sm:$0xff]
        %v4039 = vld [vmem:[#allocation5 + $0x360] sm:$0xff]
        %v4040 = vld [vmem:[#allocation5 + $0x368] sm:$0xff]
        %v4041 = vld [vmem:[#allocation5 + $0x370] sm:$0xff]
        %v4042 = vld [vmem:[#allocation5 + $0x378] sm:$0xff]
        %v4043 = vld [vmem:[#allocation5 + $0x380] sm:$0xff]
        %v4044 = vld [vmem:[#allocation5 + $0x388] sm:$0xff]
        %v4045 = vld [vmem:[#allocation5 + $0x390] sm:$0xff]
        %v4046 = vld [vmem:[#allocation5 + $0x398] sm:$0xff]
        %v4047 = vld [vmem:[#allocation5 + $0x3a0] sm:$0xff]
        %v4048 = vld [vmem:[#allocation5 + $0x3a8] sm:$0xff]
        %v4049 = vld [vmem:[#allocation5 + $0x3b0] sm:$0xff]
        %v4050 = vld [vmem:[#allocation5 + $0x3b8] sm:$0xff]
        %v4051 = vld [vmem:[#allocation5 + $0x3c0] sm:$0xff]
        %v4052 = vld [vmem:[#allocation5 + $0x3c8] sm:$0xff]
        %v4053 = vld [vmem:[#allocation5 + $0x3d0] sm:$0xff]
        %v4054 = vld [vmem:[#allocation5 + $0x3d8] sm:$0xff]
        %v4055 = vld [vmem:[#allocation5 + $0x3e0] sm:$0xff]
        %v4056 = vld [vmem:[#allocation5 + $0x3e8] sm:$0xff]
        %v4057 = vld [vmem:[#allocation5 + $0x3f0] sm:$0xff]
        %v4058 = vld [vmem:[#allocation5 + $0x3f8] sm:$0xff]
        %v4059 = vld [vmem:[#allocation5 + $0x400] sm:$0xff]
        %v4060 = vld [vmem:[#allocation5 + $0x408] sm:$0xff]
        %v4061 = vld [vmem:[#allocation5 + $0x410] sm:$0xff]
        %v4062 = vld [vmem:[#allocation5 + $0x418] sm:$0xff]
        %v4063 = vld [vmem:[#allocation5 + $0x420] sm:$0xff]
        %v4064 = vld [vmem:[#allocation5 + $0x428] sm:$0xff]
        %v4065 = vld [vmem:[#allocation5 + $0x430] sm:$0xff]
        %v4066 = vld [vmem:[#allocation5 + $0x438] sm:$0xff]
        %v4067 = vld [vmem:[#allocation5 + $0x440] sm:$0xff]
        %v4068 = vld [vmem:[#allocation5 + $0x448] sm:$0xff]
        %v4069 = vld [vmem:[#allocation5 + $0x450] sm:$0xff]
        %v4070 = vld [vmem:[#allocation5 + $0x458] sm:$0xff]
        %v4071 = vld [vmem:[#allocation5 + $0x460] sm:$0xff]
        %v4072 = vld [vmem:[#allocation5 + $0x468] sm:$0xff]
        %v4073 = vld [vmem:[#allocation5 + $0x470] sm:$0xff]
        %v4074 = vld [vmem:[#allocation5 + $0x478] sm:$0xff]
        %v4075 = vld [vmem:[#allocation5 + $0x480] sm:$0xff]
        %v4076 = vld [vmem:[#allocation5 + $0x488] sm:$0xff]
        %v4077 = vld [vmem:[#allocation5 + $0x490] sm:$0xff]
        %v4078 = vld [vmem:[#allocation5 + $0x498] sm:$0xff]
        %v4079 = vld [vmem:[#allocation5 + $0x4a0] sm:$0xff]
        %v4080 = vld [vmem:[#allocation5 + $0x4a8] sm:$0xff]
        %v4081 = vld [vmem:[#allocation5 + $0x4b0] sm:$0xff]
        %v4082 = vld [vmem:[#allocation5 + $0x4b8] sm:$0xff]
        %v4083 = vld [vmem:[#allocation5 + $0x4c0] sm:$0xff]
        %v4084 = vld [vmem:[#allocation5 + $0x4c8] sm:$0xff]
        %v4085 = vld [vmem:[#allocation5 + $0x4d0] sm:$0xff]
        %v4086 = vld [vmem:[#allocation5 + $0x4d8] sm:$0xff]
        %v4087 = vld [vmem:[#allocation5 + $0x4e0] sm:$0xff]
        %v4088 = vld [vmem:[#allocation5 + $0x4e8] sm:$0xff]
        %v4089 = vld [vmem:[#allocation5 + $0x4f0] sm:$0xff]
        %v4090 = vld [vmem:[#allocation5 + $0x4f8] sm:$0xff]
        %v4091 = vld [vmem:[#allocation5 + $0x500] sm:$0xff]
        %v4092 = vld [vmem:[#allocation5 + $0x508] sm:$0xff]
        %v4093 = vld [vmem:[#allocation5 + $0x510] sm:$0xff]
        %v4094 = vld [vmem:[#allocation5 + $0x518] sm:$0xff]
        %v4095 = vld [vmem:[#allocation5 + $0x520] sm:$0xff]
        %v4096 = vld [vmem:[#allocation5 + $0x528] sm:$0xff]
        %v4097 = vld [vmem:[#allocation5 + $0x530] sm:$0xff]
        %v4098 = vld [vmem:[#allocation5 + $0x538] sm:$0xff]
        %v4099 = vld [vmem:[#allocation5 + $0x540] sm:$0xff]
        %v4100 = vld [vmem:[#allocation5 + $0x548] sm:$0xff]
        %v4101 = vld [vmem:[#allocation5 + $0x550] sm:$0xff]
        %v4102 = vld [vmem:[#allocation5 + $0x558] sm:$0xff]
        %v4103 = vld [vmem:[#allocation5 + $0x560] sm:$0xff]
        %v4104 = vld [vmem:[#allocation5 + $0x568] sm:$0xff]
        %v4105 = vld [vmem:[#allocation5 + $0x570] sm:$0xff]
        %v4106 = vld [vmem:[#allocation5 + $0x578] sm:$0xff]
        %v4107 = vld [vmem:[#allocation5 + $0x580] sm:$0xff]
        %v4108 = vld [vmem:[#allocation5 + $0x588] sm:$0xff]
        %v4109 = vld [vmem:[#allocation5 + $0x590] sm:$0xff]
        %v4110 = vld [vmem:[#allocation5 + $0x598] sm:$0xff]
        %v4111 = vld [vmem:[#allocation5 + $0x5a0] sm:$0xff]
        %v4112 = vld [vmem:[#allocation5 + $0x5a8] sm:$0xff]
        %v4113 = vld [vmem:[#allocation5 + $0x5b0] sm:$0xff]
        %v4114 = vld [vmem:[#allocation5 + $0x5b8] sm:$0xff]
        %v4115 = vld [vmem:[#allocation5 + $0x5c0] sm:$0xff]
        %v4116 = vld [vmem:[#allocation5 + $0x5c8] sm:$0xff]
        %v4117 = vld [vmem:[#allocation5 + $0x5d0] sm:$0xff]
        %v4118 = vld [vmem:[#allocation5 + $0x5d8] sm:$0xff]
        %v4119 = vld [vmem:[#allocation5 + $0x5e0] sm:$0xff]
        %v4120 = vld [vmem:[#allocation5 + $0x5e8] sm:$0xff]
        %v4121 = vld [vmem:[#allocation5 + $0x5f0] sm:$0xff]
        %v4122 = vld [vmem:[#allocation5 + $0x5f8] sm:$0xff]
        %v4123 = vld [vmem:[#allocation5 + $0x600] sm:$0xff]
        %v4124 = vld [vmem:[#allocation5 + $0x608] sm:$0xff]
        %v4125 = vld [vmem:[#allocation5 + $0x610] sm:$0xff]
        %v4126 = vld [vmem:[#allocation5 + $0x618] sm:$0xff]
        %v4127 = vld [vmem:[#allocation5 + $0x620] sm:$0xff]
        %v4128 = vld [vmem:[#allocation5 + $0x628] sm:$0xff]
        %v4129 = vld [vmem:[#allocation5 + $0x630] sm:$0xff]
        %v4130 = vld [vmem:[#allocation5 + $0x638] sm:$0xff]
        %v4131 = vld [vmem:[%s4] sm:$0xff]
        %v4132 = vld [vmem:[%s4 + $0x8] sm:$0xff]
        %4134 = vset.pattern.permute.xlu0 0
        %4135 = vperm.xlu0 %4134, %v4131
        %v4136 = vpop.permute.xlu0 %4135
        %4139 = vset.pattern.permute.xlu0 0
        %4140 = vperm.xlu0 %4139, %v4132
        %v4141 = vpop.permute.xlu0 %4140
        %v4144 = vsel %vm2094, %v3928, 0
        %v4147 = vsel %vm2094, %v3930, 0
        %4149 = vmatpush.msra.mxu0 %v4051
        %4150 = vmatpush.msra.mxu0 %v4043
        %4151 = vmatpush.msra.mxu0 %v4035
        %4152 = vmatpush.msra.mxu0 %v4027
        %4153 = vmatpush.msra.mxu0 %v4019
        %4154 = vmatpush.msra.mxu0 %v4011
        %4155 = vmatpush.msra.mxu0 %v4003
        %4156 = vmatpush.msra.mxu0 %v3995
        %4157 = vmatpush.msra.mxu0 %v3987
        %4158 = vmatpush.msra.mxu0 %v3979
        %4159 = vmatpush.msra.mxu0 %v3971
        %4160 = vmatpush.msra.mxu0 %v3963
        %4161 = vmatpush.msra.mxu0 %v3955
        %4162 = vmatpush.msra.mxu0 %v3947
        %4163 = vmatpush.msra.mxu0 %v3939
        %4164 = vmatpush.msra.mxu0 %v3931
        %4165 = vmatmul.f32.gmra.mxu0 %v3927
        %v4166 = vpop.f32.mrf.mxu0
        %v4167 = vadd.f32 %v4136, %v4166
        %4168 = vmatmul.f32.gmra.mxu0 %v3929
        %v4169 = vpop.f32.mrf.mxu0
        %v4170 = vadd.f32 %v4141, %v4169
        %4171 = vdwg.mxu0
        %4172 = vmatpush.msra.mxu0 0.0
        %4173 = vmatpush.msra.mxu0 0.0
        %4174 = vmatpush.msra.mxu0 0.0
        %4175 = vmatpush.msra.mxu0 0.0
        %4176 = vmatpush.msra.mxu0 0.0
        %4177 = vmatpush.msra.mxu0 0.0
        %4178 = vmatpush.msra.mxu0 0.0
        %4179 = vmatpush.msra.mxu0 %v4123
        %4180 = vmatpush.msra.mxu0 %v4115
        %4181 = vmatpush.msra.mxu0 %v4107
        %4182 = vmatpush.msra.mxu0 %v4099
        %4183 = vmatpush.msra.mxu0 %v4091
        %4184 = vmatpush.msra.mxu0 %v4083
        %4185 = vmatpush.msra.mxu0 %v4075
        %4186 = vmatpush.msra.mxu0 %v4067
        %4187 = vmatpush.msra.mxu0 %v4059
        %4188 = vmatmul.f32.gmra.mxu0 %v4144
        %v4189 = vpop.f32.mrf.mxu0
        %v4190 = vadd.f32 %v4167, %v4189
        %4191 = vmatmul.f32.gmra.mxu0 %v4147
        %v4192 = vpop.f32.mrf.mxu0
        %v4193 = vadd.f32 %v4170, %v4192
        %4194 = vdwg.mxu0
        %4195 = vmatpush.msra.mxu0 %v4052
        %4196 = vmatpush.msra.mxu0 %v4044
        %4197 = vmatpush.msra.mxu0 %v4036
        %4198 = vmatpush.msra.mxu0 %v4028
        %4199 = vmatpush.msra.mxu0 %v4020
        %4200 = vmatpush.msra.mxu0 %v4012
        %4201 = vmatpush.msra.mxu0 %v4004
        %4202 = vmatpush.msra.mxu0 %v3996
        %4203 = vmatpush.msra.mxu0 %v3988
        %4204 = vmatpush.msra.mxu0 %v3980
        %4205 = vmatpush.msra.mxu0 %v3972
        %4206 = vmatpush.msra.mxu0 %v3964
        %4207 = vmatpush.msra.mxu0 %v3956
        %4208 = vmatpush.msra.mxu0 %v3948
        %4209 = vmatpush.msra.mxu0 %v3940
        %4210 = vmatpush.msra.mxu0 %v3932
        %4211 = vmatmul.f32.gmra.mxu0 %v3927
        %v4212 = vpop.f32.mrf.mxu0
        %v4213 = vadd.f32 %v4136, %v4212
        %4214 = vmatmul.f32.gmra.mxu0 %v3929
        %v4215 = vpop.f32.mrf.mxu0
        %v4216 = vadd.f32 %v4141, %v4215
        %4217 = vdwg.mxu0
        %4218 = vmatpush.msra.mxu0 0.0
        %4219 = vmatpush.msra.mxu0 0.0
        %4220 = vmatpush.msra.mxu0 0.0
        %4221 = vmatpush.msra.mxu0 0.0
        %4222 = vmatpush.msra.mxu0 0.0
        %4223 = vmatpush.msra.mxu0 0.0
        %4224 = vmatpush.msra.mxu0 0.0
        %4225 = vmatpush.msra.mxu0 %v4124
        %4226 = vmatpush.msra.mxu0 %v4116
        %4227 = vmatpush.msra.mxu0 %v4108
        %4228 = vmatpush.msra.mxu0 %v4100
        %4229 = vmatpush.msra.mxu0 %v4092
        %4230 = vmatpush.msra.mxu0 %v4084
        %4231 = vmatpush.msra.mxu0 %v4076
        %4232 = vmatpush.msra.mxu0 %v4068
        %4233 = vmatpush.msra.mxu0 %v4060
        %4234 = vmatmul.f32.gmra.mxu0 %v4144
        %v4235 = vpop.f32.mrf.mxu0
        %v4236 = vadd.f32 %v4213, %v4235
        %4237 = vmatmul.f32.gmra.mxu0 %v4147
        %v4238 = vpop.f32.mrf.mxu0
        %v4239 = vadd.f32 %v4216, %v4238
        %4240 = vdwg.mxu0
        %4241 = vmatpush.msra.mxu0 %v4053
        %4242 = vmatpush.msra.mxu0 %v4045
        %4243 = vmatpush.msra.mxu0 %v4037
        %4244 = vmatpush.msra.mxu0 %v4029
        %4245 = vmatpush.msra.mxu0 %v4021
        %4246 = vmatpush.msra.mxu0 %v4013
        %4247 = vmatpush.msra.mxu0 %v4005
        %4248 = vmatpush.msra.mxu0 %v3997
        %4249 = vmatpush.msra.mxu0 %v3989
        %4250 = vmatpush.msra.mxu0 %v3981
        %4251 = vmatpush.msra.mxu0 %v3973
        %4252 = vmatpush.msra.mxu0 %v3965
        %4253 = vmatpush.msra.mxu0 %v3957
        %4254 = vmatpush.msra.mxu0 %v3949
        %4255 = vmatpush.msra.mxu0 %v3941
        %4256 = vmatpush.msra.mxu0 %v3933
        %4257 = vmatmul.f32.gmra.mxu0 %v3927
        %v4258 = vpop.f32.mrf.mxu0
        %v4259 = vadd.f32 %v4136, %v4258
        %4260 = vmatmul.f32.gmra.mxu0 %v3929
        %v4261 = vpop.f32.mrf.mxu0
        %v4262 = vadd.f32 %v4141, %v4261
        %4263 = vdwg.mxu0
        %4264 = vmatpush.msra.mxu0 0.0
        %4265 = vmatpush.msra.mxu0 0.0
        %4266 = vmatpush.msra.mxu0 0.0
        %4267 = vmatpush.msra.mxu0 0.0
        %4268 = vmatpush.msra.mxu0 0.0
        %4269 = vmatpush.msra.mxu0 0.0
        %4270 = vmatpush.msra.mxu0 0.0
        %4271 = vmatpush.msra.mxu0 %v4125
        %4272 = vmatpush.msra.mxu0 %v4117
        %4273 = vmatpush.msra.mxu0 %v4109
        %4274 = vmatpush.msra.mxu0 %v4101
        %4275 = vmatpush.msra.mxu0 %v4093
        %4276 = vmatpush.msra.mxu0 %v4085
        %4277 = vmatpush.msra.mxu0 %v4077
        %4278 = vmatpush.msra.mxu0 %v4069
        %4279 = vmatpush.msra.mxu0 %v4061
        %4280 = vmatmul.f32.gmra.mxu0 %v4144
        %v4281 = vpop.f32.mrf.mxu0
        %v4282 = vadd.f32 %v4259, %v4281
        %4283 = vmatmul.f32.gmra.mxu0 %v4147
        %v4284 = vpop.f32.mrf.mxu0
        %v4285 = vadd.f32 %v4262, %v4284
        %4286 = vdwg.mxu0
        %4287 = vmatpush.msra.mxu0 %v4054
        %4288 = vmatpush.msra.mxu0 %v4046
        %4289 = vmatpush.msra.mxu0 %v4038
        %4290 = vmatpush.msra.mxu0 %v4030
        %4291 = vmatpush.msra.mxu0 %v4022
        %4292 = vmatpush.msra.mxu0 %v4014
        %4293 = vmatpush.msra.mxu0 %v4006
        %4294 = vmatpush.msra.mxu0 %v3998
        %4295 = vmatpush.msra.mxu0 %v3990
        %4296 = vmatpush.msra.mxu0 %v3982
        %4297 = vmatpush.msra.mxu0 %v3974
        %4298 = vmatpush.msra.mxu0 %v3966
        %4299 = vmatpush.msra.mxu0 %v3958
        %4300 = vmatpush.msra.mxu0 %v3950
        %4301 = vmatpush.msra.mxu0 %v3942
        %4302 = vmatpush.msra.mxu0 %v3934
        %4303 = vmatmul.f32.gmra.mxu0 %v3927
        %v4304 = vpop.f32.mrf.mxu0
        %v4305 = vadd.f32 %v4136, %v4304
        %4306 = vmatmul.f32.gmra.mxu0 %v3929
        %v4307 = vpop.f32.mrf.mxu0
        %v4308 = vadd.f32 %v4141, %v4307
        %4309 = vdwg.mxu0
        %4310 = vmatpush.msra.mxu0 0.0
        %4311 = vmatpush.msra.mxu0 0.0
        %4312 = vmatpush.msra.mxu0 0.0
        %4313 = vmatpush.msra.mxu0 0.0
        %4314 = vmatpush.msra.mxu0 0.0
        %4315 = vmatpush.msra.mxu0 0.0
        %4316 = vmatpush.msra.mxu0 0.0
        %4317 = vmatpush.msra.mxu0 %v4126
        %4318 = vmatpush.msra.mxu0 %v4118
        %4319 = vmatpush.msra.mxu0 %v4110
        %4320 = vmatpush.msra.mxu0 %v4102
        %4321 = vmatpush.msra.mxu0 %v4094
        %4322 = vmatpush.msra.mxu0 %v4086
        %4323 = vmatpush.msra.mxu0 %v4078
        %4324 = vmatpush.msra.mxu0 %v4070
        %4325 = vmatpush.msra.mxu0 %v4062
        %4326 = vmatmul.f32.gmra.mxu0 %v4144
        %v4327 = vpop.f32.mrf.mxu0
        %v4328 = vadd.f32 %v4305, %v4327
        %4329 = vmatmul.f32.gmra.mxu0 %v4147
        %v4330 = vpop.f32.mrf.mxu0
        %v4331 = vadd.f32 %v4308, %v4330
        %4332 = vdwg.mxu0
        %4333 = vmatpush.msra.mxu0 %v4055
        %4334 = vmatpush.msra.mxu0 %v4047
        %4335 = vmatpush.msra.mxu0 %v4039
        %4336 = vmatpush.msra.mxu0 %v4031
        %4337 = vmatpush.msra.mxu0 %v4023
        %4338 = vmatpush.msra.mxu0 %v4015
        %4339 = vmatpush.msra.mxu0 %v4007
        %4340 = vmatpush.msra.mxu0 %v3999
        %4341 = vmatpush.msra.mxu0 %v3991
        %4342 = vmatpush.msra.mxu0 %v3983
        %4343 = vmatpush.msra.mxu0 %v3975
        %4344 = vmatpush.msra.mxu0 %v3967
        %4345 = vmatpush.msra.mxu0 %v3959
        %4346 = vmatpush.msra.mxu0 %v3951
        %4347 = vmatpush.msra.mxu0 %v3943
        %4348 = vmatpush.msra.mxu0 %v3935
        %4349 = vmatmul.f32.gmra.mxu0 %v3927
        %v4350 = vpop.f32.mrf.mxu0
        %v4351 = vadd.f32 %v4136, %v4350
        %4352 = vmatmul.f32.gmra.mxu0 %v3929
        %v4353 = vpop.f32.mrf.mxu0
        %v4354 = vadd.f32 %v4141, %v4353
        %4355 = vdwg.mxu0
        %4356 = vmatpush.msra.mxu0 0.0
        %4357 = vmatpush.msra.mxu0 0.0
        %4358 = vmatpush.msra.mxu0 0.0
        %4359 = vmatpush.msra.mxu0 0.0
        %4360 = vmatpush.msra.mxu0 0.0
        %4361 = vmatpush.msra.mxu0 0.0
        %4362 = vmatpush.msra.mxu0 0.0
        %4363 = vmatpush.msra.mxu0 %v4127
        %4364 = vmatpush.msra.mxu0 %v4119
        %4365 = vmatpush.msra.mxu0 %v4111
        %4366 = vmatpush.msra.mxu0 %v4103
        %4367 = vmatpush.msra.mxu0 %v4095
        %4368 = vmatpush.msra.mxu0 %v4087
        %4369 = vmatpush.msra.mxu0 %v4079
        %4370 = vmatpush.msra.mxu0 %v4071
        %4371 = vmatpush.msra.mxu0 %v4063
        %4372 = vmatmul.f32.gmra.mxu0 %v4144
        %v4373 = vpop.f32.mrf.mxu0
        %v4374 = vadd.f32 %v4351, %v4373
        %4375 = vmatmul.f32.gmra.mxu0 %v4147
        %v4376 = vpop.f32.mrf.mxu0
        %v4377 = vadd.f32 %v4354, %v4376
        %4378 = vdwg.mxu0
        %4379 = vmatpush.msra.mxu0 %v4056
        %4380 = vmatpush.msra.mxu0 %v4048
        %4381 = vmatpush.msra.mxu0 %v4040
        %4382 = vmatpush.msra.mxu0 %v4032
        %4383 = vmatpush.msra.mxu0 %v4024
        %4384 = vmatpush.msra.mxu0 %v4016
        %4385 = vmatpush.msra.mxu0 %v4008
        %4386 = vmatpush.msra.mxu0 %v4000
        %4387 = vmatpush.msra.mxu0 %v3992
        %4388 = vmatpush.msra.mxu0 %v3984
        %4389 = vmatpush.msra.mxu0 %v3976
        %4390 = vmatpush.msra.mxu0 %v3968
        %4391 = vmatpush.msra.mxu0 %v3960
        %4392 = vmatpush.msra.mxu0 %v3952
        %4393 = vmatpush.msra.mxu0 %v3944
        %4394 = vmatpush.msra.mxu0 %v3936
        %4395 = vmatmul.f32.gmra.mxu0 %v3927
        %v4396 = vpop.f32.mrf.mxu0
        %v4397 = vadd.f32 %v4136, %v4396
        %4398 = vmatmul.f32.gmra.mxu0 %v3929
        %v4399 = vpop.f32.mrf.mxu0
        %v4400 = vadd.f32 %v4141, %v4399
        %4401 = vdwg.mxu0
        %4402 = vmatpush.msra.mxu0 0.0
        %4403 = vmatpush.msra.mxu0 0.0
        %4404 = vmatpush.msra.mxu0 0.0
        %4405 = vmatpush.msra.mxu0 0.0
        %4406 = vmatpush.msra.mxu0 0.0
        %4407 = vmatpush.msra.mxu0 0.0
        %4408 = vmatpush.msra.mxu0 0.0
        %4409 = vmatpush.msra.mxu0 %v4128
        %4410 = vmatpush.msra.mxu0 %v4120
        %4411 = vmatpush.msra.mxu0 %v4112
        %4412 = vmatpush.msra.mxu0 %v4104
        %4413 = vmatpush.msra.mxu0 %v4096
        %4414 = vmatpush.msra.mxu0 %v4088
        %4415 = vmatpush.msra.mxu0 %v4080
        %4416 = vmatpush.msra.mxu0 %v4072
        %4417 = vmatpush.msra.mxu0 %v4064
        %4418 = vmatmul.f32.gmra.mxu0 %v4144
        %v4419 = vpop.f32.mrf.mxu0
        %v4420 = vadd.f32 %v4397, %v4419
        %4421 = vmatmul.f32.gmra.mxu0 %v4147
        %v4422 = vpop.f32.mrf.mxu0
        %v4423 = vadd.f32 %v4400, %v4422
        %4424 = vdwg.mxu0
        %4425 = vmatpush.msra.mxu0 %v4057
        %4426 = vmatpush.msra.mxu0 %v4049
        %4427 = vmatpush.msra.mxu0 %v4041
        %4428 = vmatpush.msra.mxu0 %v4033
        %4429 = vmatpush.msra.mxu0 %v4025
        %4430 = vmatpush.msra.mxu0 %v4017
        %4431 = vmatpush.msra.mxu0 %v4009
        %4432 = vmatpush.msra.mxu0 %v4001
        %4433 = vmatpush.msra.mxu0 %v3993
        %4434 = vmatpush.msra.mxu0 %v3985
        %4435 = vmatpush.msra.mxu0 %v3977
        %4436 = vmatpush.msra.mxu0 %v3969
        %4437 = vmatpush.msra.mxu0 %v3961
        %4438 = vmatpush.msra.mxu0 %v3953
        %4439 = vmatpush.msra.mxu0 %v3945
        %4440 = vmatpush.msra.mxu0 %v3937
        %4441 = vmatmul.f32.gmra.mxu0 %v3927
        %v4442 = vpop.f32.mrf.mxu0
        %v4443 = vadd.f32 %v4136, %v4442
        %4444 = vmatmul.f32.gmra.mxu0 %v3929
        %v4445 = vpop.f32.mrf.mxu0
        %v4446 = vadd.f32 %v4141, %v4445
        %4447 = vdwg.mxu0
        %4448 = vmatpush.msra.mxu0 0.0
        %4449 = vmatpush.msra.mxu0 0.0
        %4450 = vmatpush.msra.mxu0 0.0
        %4451 = vmatpush.msra.mxu0 0.0
        %4452 = vmatpush.msra.mxu0 0.0
        %4453 = vmatpush.msra.mxu0 0.0
        %4454 = vmatpush.msra.mxu0 0.0
        %4455 = vmatpush.msra.mxu0 %v4129
        %4456 = vmatpush.msra.mxu0 %v4121
        %4457 = vmatpush.msra.mxu0 %v4113
        %4458 = vmatpush.msra.mxu0 %v4105
        %4459 = vmatpush.msra.mxu0 %v4097
        %4460 = vmatpush.msra.mxu0 %v4089
        %4461 = vmatpush.msra.mxu0 %v4081
        %4462 = vmatpush.msra.mxu0 %v4073
        %4463 = vmatpush.msra.mxu0 %v4065
        %4464 = vmatmul.f32.gmra.mxu0 %v4144
        %v4465 = vpop.f32.mrf.mxu0
        %v4466 = vadd.f32 %v4443, %v4465
        %4467 = vmatmul.f32.gmra.mxu0 %v4147
        %v4468 = vpop.f32.mrf.mxu0
        %v4469 = vadd.f32 %v4446, %v4468
        %4470 = vdwg.mxu0
        %4471 = vmatpush.msra.mxu0 %v4058
        %4472 = vmatpush.msra.mxu0 %v4050
        %4473 = vmatpush.msra.mxu0 %v4042
        %4474 = vmatpush.msra.mxu0 %v4034
        %4475 = vmatpush.msra.mxu0 %v4026
        %4476 = vmatpush.msra.mxu0 %v4018
        %4477 = vmatpush.msra.mxu0 %v4010
        %4478 = vmatpush.msra.mxu0 %v4002
        %4479 = vmatpush.msra.mxu0 %v3994
        %4480 = vmatpush.msra.mxu0 %v3986
        %4481 = vmatpush.msra.mxu0 %v3978
        %4482 = vmatpush.msra.mxu0 %v3970
        %4483 = vmatpush.msra.mxu0 %v3962
        %4484 = vmatpush.msra.mxu0 %v3954
        %4485 = vmatpush.msra.mxu0 %v3946
        %4486 = vmatpush.msra.mxu0 %v3938
        %4487 = vmatmul.f32.gmra.mxu0 %v3927
        %v4488 = vpop.f32.mrf.mxu0
        %v4489 = vadd.f32 %v4136, %v4488
        %4490 = vmatmul.f32.gmra.mxu0 %v3929
        %v4491 = vpop.f32.mrf.mxu0
        %v4492 = vadd.f32 %v4141, %v4491
        %4493 = vdwg.mxu0
        %4494 = vmatpush.msra.mxu0 0.0
        %4495 = vmatpush.msra.mxu0 0.0
        %4496 = vmatpush.msra.mxu0 0.0
        %4497 = vmatpush.msra.mxu0 0.0
        %4498 = vmatpush.msra.mxu0 0.0
        %4499 = vmatpush.msra.mxu0 0.0
        %4500 = vmatpush.msra.mxu0 0.0
        %4501 = vmatpush.msra.mxu0 %v4130
        %4502 = vmatpush.msra.mxu0 %v4122
        %4503 = vmatpush.msra.mxu0 %v4114
        %4504 = vmatpush.msra.mxu0 %v4106
        %4505 = vmatpush.msra.mxu0 %v4098
        %4506 = vmatpush.msra.mxu0 %v4090
        %4507 = vmatpush.msra.mxu0 %v4082
        %4508 = vmatpush.msra.mxu0 %v4074
        %4509 = vmatpush.msra.mxu0 %v4066
        %4510 = vmatmul.f32.gmra.mxu0 %v4144
        %v4511 = vpop.f32.mrf.mxu0
        %v4512 = vadd.f32 %v4489, %v4511
        %4513 = vmatmul.f32.gmra.mxu0 %v4147
        %v4514 = vpop.f32.mrf.mxu0
        %v4515 = vadd.f32 %v4492, %v4514
        %4516 = vdwg.mxu0
        %v4517 = vmax.f32 %v4190, 0.0
        %v4518 = vmax.f32 %v4236, 0.0
        %v4519 = vmax.f32 %v4282, 0.0
        %v4520 = vmax.f32 %v4328, 0.0
        %v4521 = vmax.f32 %v4374, 0.0
        %v4522 = vmax.f32 %v4420, 0.0
        %v4523 = vmax.f32 %v4466, 0.0
        %v4524 = vmax.f32 %v4512, 0.0
        %v4525 = vmax.f32 %v4193, 0.0
        %v4526 = vmax.f32 %v4239, 0.0
        %v4527 = vmax.f32 %v4285, 0.0
        %v4528 = vmax.f32 %v4331, 0.0
        %v4529 = vmax.f32 %v4377, 0.0
        %v4530 = vmax.f32 %v4423, 0.0
        %v4531 = vmax.f32 %v4469, 0.0
        %v4532 = vmax.f32 %v4515, 0.0
        %4533 = vst [vmem:[#allocation6] sm:$0xff] %v4517
        %4534 = vst [vmem:[#allocation6 + $0x8] sm:$0xff] %v4518
        %4535 = vst [vmem:[#allocation6 + $0x10] sm:$0xff] %v4519
        %4536 = vst [vmem:[#allocation6 + $0x18] sm:$0xff] %v4520
        %4537 = vst [vmem:[#allocation6 + $0x20] sm:$0xff] %v4521
        %4538 = vst [vmem:[#allocation6 + $0x28] sm:$0xff] %v4522
        %4539 = vst [vmem:[#allocation6 + $0x30] sm:$0xff] %v4523
        %4540 = vst [vmem:[#allocation6 + $0x38] sm:$0xff] %v4524
        %4541 = vst [vmem:[#allocation6 + $0x58] sm:$0xff] %v4525
        %4542 = vst [vmem:[#allocation6 + $0x60] sm:$0xff] %v4526
        %4543 = vst [vmem:[#allocation6 + $0x68] sm:$0xff] %v4527
        %4544 = vst [vmem:[#allocation6 + $0x70] sm:$0xff] %v4528
        %4545 = vst [vmem:[#allocation6 + $0x78] sm:$0xff] %v4529
        %4546 = vst [vmem:[#allocation6 + $0x80] sm:$0xff] %v4530
        %4547 = vst [vmem:[#allocation6 + $0x88] sm:$0xff] %v4531
        %4548 = vst [vmem:[#allocation6 + $0x90] sm:$0xff] %v4532
        %v4549 = vld [vmem:[#allocation6] sm:$0xff]
        %v4550 = vld [vmem:[#allocation6 + $0x8] sm:$0xff]
        %v4551 = vld [vmem:[#allocation6 + $0x10] sm:$0xff]
        %v4552 = vld [vmem:[#allocation6 + $0x18] sm:$0xff]
        %v4553 = vld [vmem:[#allocation6 + $0x20] sm:$0xff]
        %v4554 = vld [vmem:[#allocation6 + $0x28] sm:$0xff]
        %v4555 = vld [vmem:[#allocation6 + $0x30] sm:$0xff]
        %v4556 = vld [vmem:[#allocation6 + $0x38] sm:$0xff]
        %v4557 = vld [vmem:[#allocation6 + $0x58] sm:$0xff]
        %v4558 = vld [vmem:[#allocation6 + $0x60] sm:$0xff]
        %v4559 = vld [vmem:[#allocation6 + $0x68] sm:$0xff]
        %v4560 = vld [vmem:[#allocation6 + $0x70] sm:$0xff]
        %v4561 = vld [vmem:[#allocation6 + $0x78] sm:$0xff]
        %v4562 = vld [vmem:[#allocation6 + $0x80] sm:$0xff]
        %v4563 = vld [vmem:[#allocation6 + $0x88] sm:$0xff]
        %v4564 = vld [vmem:[#allocation6 + $0x90] sm:$0xff]
        %v4565 = vld [vmem:[#allocation6 + $0x40] sm:$0xff]
        %v4566 = vld [vmem:[#allocation6 + $0x98] sm:$0xff]
        %4585 = vrot.lane.b32.xlu0 %v4549, 126
        %v4586 = vpop.permute.xlu0 %4585
        %4587 = vrot.lane.b32.xlu0 %v4550, 126
        %v4588 = vpop.permute.xlu0 %4587
        %4589 = vrot.lane.b32.xlu0 %v4551, 126
        %v4590 = vpop.permute.xlu0 %4589
        %4591 = vrot.lane.b32.xlu0 %v4552, 126
        %v4592 = vpop.permute.xlu0 %4591
        %4593 = vrot.lane.b32.xlu0 %v4553, 126
        %v4594 = vpop.permute.xlu0 %4593
        %4595 = vrot.lane.b32.xlu0 %v4554, 126
        %v4596 = vpop.permute.xlu0 %4595
        %4597 = vrot.lane.b32.xlu0 %v4555, 126
        %v4598 = vpop.permute.xlu0 %4597
        %4599 = vrot.lane.b32.xlu0 %v4556, 126
        %v4600 = vpop.permute.xlu0 %4599
        %4601 = vrot.lane.b32.xlu0 %v4565, 126
        %v4602 = vpop.permute.xlu0 %4601
        %4603 = vrot.lane.b32.xlu0 %v4557, 126
        %v4604 = vpop.permute.xlu0 %4603
        %4605 = vrot.lane.b32.xlu0 %v4558, 126
        %v4606 = vpop.permute.xlu0 %4605
        %4607 = vrot.lane.b32.xlu0 %v4559, 126
        %v4608 = vpop.permute.xlu0 %4607
        %4609 = vrot.lane.b32.xlu0 %v4560, 126
        %v4610 = vpop.permute.xlu0 %4609
        %4611 = vrot.lane.b32.xlu0 %v4561, 126
        %v4612 = vpop.permute.xlu0 %4611
        %4613 = vrot.lane.b32.xlu0 %v4562, 126
        %v4614 = vpop.permute.xlu0 %4613
        %4615 = vrot.lane.b32.xlu0 %v4563, 126
        %v4616 = vpop.permute.xlu0 %4615
        %4617 = vrot.lane.b32.xlu0 %v4564, 126
        %v4618 = vpop.permute.xlu0 %4617
        %4619 = vrot.lane.b32.xlu0 %v4566, 126
        %v4620 = vpop.permute.xlu0 %4619
        %v4621 = vsel %vm568, %v4586, %v4588
        %v4622 = vsel %vm568, %v4588, %v4590
        %v4623 = vsel %vm568, %v4590, %v4592
        %v4624 = vsel %vm568, %v4592, %v4594
        %v4625 = vsel %vm568, %v4594, %v4596
        %v4626 = vsel %vm568, %v4596, %v4598
        %v4627 = vsel %vm568, %v4598, %v4600
        %v4628 = vsel %vm568, %v4600, %v4602
        %v4629 = vsel %vm568, %v4604, %v4606
        %v4630 = vsel %vm568, %v4606, %v4608
        %v4631 = vsel %vm568, %v4608, %v4610
        %v4632 = vsel %vm568, %v4610, %v4612
        %v4633 = vsel %vm568, %v4612, %v4614
        %v4634 = vsel %vm568, %v4614, %v4616
        %v4635 = vsel %vm568, %v4616, %v4618
        %v4636 = vsel %vm568, %v4618, %v4620
        %v4653 = vmax.f32 %v4549, %v4621
        %v4654 = vmax.f32 %v4550, %v4622
        %v4655 = vmax.f32 %v4551, %v4623
        %v4656 = vmax.f32 %v4552, %v4624
        %v4657 = vmax.f32 %v4553, %v4625
        %v4658 = vmax.f32 %v4554, %v4626
        %v4659 = vmax.f32 %v4555, %v4627
        %v4660 = vmax.f32 %v4556, %v4628
        %v4661 = vmax.f32 %v4557, %v4629
        %v4662 = vmax.f32 %v4558, %v4630
        %v4663 = vmax.f32 %v4559, %v4631
        %v4664 = vmax.f32 %v4560, %v4632
        %v4665 = vmax.f32 %v4561, %v4633
        %v4666 = vmax.f32 %v4562, %v4634
        %v4667 = vmax.f32 %v4563, %v4635
        %v4668 = vmax.f32 %v4564, %v4636
        %v4671 = vmax.f32 %v4565, %v4602
        %v4672 = vmax.f32 %v4566, %v4620
        %4691 = vrot.lane.b32.xlu0 %v4653, 64
        %v4692 = vpop.permute.xlu0 %4691
        %4693 = vrot.lane.b32.xlu0 %v4654, 64
        %v4694 = vpop.permute.xlu0 %4693
        %4695 = vrot.lane.b32.xlu0 %v4655, 64
        %v4696 = vpop.permute.xlu0 %4695
        %4697 = vrot.lane.b32.xlu0 %v4656, 64
        %v4698 = vpop.permute.xlu0 %4697
        %4699 = vrot.lane.b32.xlu0 %v4657, 64
        %v4700 = vpop.permute.xlu0 %4699
        %4701 = vrot.lane.b32.xlu0 %v4658, 64
        %v4702 = vpop.permute.xlu0 %4701
        %4703 = vrot.lane.b32.xlu0 %v4659, 64
        %v4704 = vpop.permute.xlu0 %4703
        %4705 = vrot.lane.b32.xlu0 %v4660, 64
        %v4706 = vpop.permute.xlu0 %4705
        %4707 = vrot.lane.b32.xlu0 %v4671, 64
        %v4708 = vpop.permute.xlu0 %4707
        %4709 = vrot.lane.b32.xlu0 %v4661, 64
        %v4710 = vpop.permute.xlu0 %4709
        %4711 = vrot.lane.b32.xlu0 %v4662, 64
        %v4712 = vpop.permute.xlu0 %4711
        %4713 = vrot.lane.b32.xlu0 %v4663, 64
        %v4714 = vpop.permute.xlu0 %4713
        %4715 = vrot.lane.b32.xlu0 %v4664, 64
        %v4716 = vpop.permute.xlu0 %4715
        %4717 = vrot.lane.b32.xlu0 %v4665, 64
        %v4718 = vpop.permute.xlu0 %4717
        %4719 = vrot.lane.b32.xlu0 %v4666, 64
        %v4720 = vpop.permute.xlu0 %4719
        %4721 = vrot.lane.b32.xlu0 %v4667, 64
        %v4722 = vpop.permute.xlu0 %4721
        %4723 = vrot.lane.b32.xlu0 %v4668, 64
        %v4724 = vpop.permute.xlu0 %4723
        %4725 = vrot.lane.b32.xlu0 %v4672, 64
        %v4726 = vpop.permute.xlu0 %4725
        %v4727 = vsel %vm1056, %v4692, %v4694
        %v4728 = vsel %vm1056, %v4694, %v4696
        %v4729 = vsel %vm1056, %v4696, %v4698
        %v4730 = vsel %vm1056, %v4698, %v4700
        %v4731 = vsel %vm1056, %v4700, %v4702
        %v4732 = vsel %vm1056, %v4702, %v4704
        %v4733 = vsel %vm1056, %v4704, %v4706
        %v4734 = vsel %vm1056, %v4706, %v4708
        %v4735 = vsel %vm1056, %v4710, %v4712
        %v4736 = vsel %vm1056, %v4712, %v4714
        %v4737 = vsel %vm1056, %v4714, %v4716
        %v4738 = vsel %vm1056, %v4716, %v4718
        %v4739 = vsel %vm1056, %v4718, %v4720
        %v4740 = vsel %vm1056, %v4720, %v4722
        %v4741 = vsel %vm1056, %v4722, %v4724
        %v4742 = vsel %vm1056, %v4724, %v4726
        %v4759 = vmax.f32 %v4653, %v4727
        %v4760 = vmax.f32 %v4654, %v4728
        %v4761 = vmax.f32 %v4655, %v4729
        %v4762 = vmax.f32 %v4656, %v4730
        %v4763 = vmax.f32 %v4657, %v4731
        %v4764 = vmax.f32 %v4658, %v4732
        %v4765 = vmax.f32 %v4659, %v4733
        %v4766 = vmax.f32 %v4660, %v4734
        %v4767 = vmax.f32 %v4661, %v4735
        %v4768 = vmax.f32 %v4662, %v4736
        %v4769 = vmax.f32 %v4663, %v4737
        %v4770 = vmax.f32 %v4664, %v4738
        %v4771 = vmax.f32 %v4665, %v4739
        %v4772 = vmax.f32 %v4666, %v4740
        %v4773 = vmax.f32 %v4667, %v4741
        %v4774 = vmax.f32 %v4668, %v4742
        %v4775 = vld [vmem:[%s5] sm:$0xff]
        %v4776 = vld [vmem:[%s5 + $0x8] sm:$0xff]
        %v4777 = vld [vmem:[%s5 + $0x10] sm:$0xff]
        %v4778 = vld [vmem:[%s5 + $0x18] sm:$0xff]
        %v4779 = vld [vmem:[%s5 + $0x20] sm:$0xff]
        %v4780 = vld [vmem:[%s5 + $0x28] sm:$0xff]
        %v4781 = vld [vmem:[%s5 + $0x30] sm:$0xff]
        %v4782 = vld [vmem:[%s5 + $0x38] sm:$0xff]
        %v4783 = vld [vmem:[%s5 + $0x40] sm:$0xff]
        %v4784 = vld [vmem:[%s5 + $0x48] sm:$0xff]
        %v4785 = vld [vmem:[%s5 + $0x50] sm:$0xff]
        %v4786 = vld [vmem:[%s5 + $0x58] sm:$0xff]
        %v4787 = vld [vmem:[%s5 + $0x60] sm:$0xff]
        %v4788 = vld [vmem:[%s5 + $0x68] sm:$0xff]
        %v4789 = vld [vmem:[%s5 + $0x70] sm:$0xff]
        %v4790 = vld [vmem:[%s5 + $0x78] sm:$0xff]
        %v4791 = vld [vmem:[%s5 + $0x80] sm:$0xff]
        %v4792 = vld [vmem:[%s5 + $0x88] sm:$0xff]
        %v4793 = vld [vmem:[%s5 + $0x90] sm:$0xff]
        %v4794 = vld [vmem:[%s5 + $0x98] sm:$0xff]
        %v4795 = vld [vmem:[%s5 + $0xa0] sm:$0xff]
        %v4796 = vld [vmem:[%s5 + $0xa8] sm:$0xff]
        %v4797 = vld [vmem:[%s5 + $0xb0] sm:$0xff]
        %v4798 = vld [vmem:[%s5 + $0xb8] sm:$0xff]
        %v4799 = vld [vmem:[%s5 + $0xc0] sm:$0xff]
        %v4800 = vld [vmem:[%s5 + $0xc8] sm:$0xff]
        %v4801 = vld [vmem:[%s5 + $0xd0] sm:$0xff]
        %v4802 = vld [vmem:[%s5 + $0xd8] sm:$0xff]
        %v4803 = vld [vmem:[%s5 + $0xe0] sm:$0xff]
        %v4804 = vld [vmem:[%s5 + $0xe8] sm:$0xff]
        %v4805 = vld [vmem:[%s5 + $0xf0] sm:$0xff]
        %v4806 = vld [vmem:[%s5 + $0xf8] sm:$0xff]
        %v4807 = vld [vmem:[%s5 + $0x100] sm:$0xff]
        %v4808 = vld [vmem:[%s5 + $0x108] sm:$0xff]
        %v4809 = vld [vmem:[%s5 + $0x110] sm:$0xff]
        %v4810 = vld [vmem:[%s5 + $0x118] sm:$0xff]
        %v4811 = vld [vmem:[%s5 + $0x120] sm:$0xff]
        %v4812 = vld [vmem:[%s5 + $0x128] sm:$0xff]
        %v4813 = vld [vmem:[%s5 + $0x130] sm:$0xff]
        %v4814 = vld [vmem:[%s5 + $0x138] sm:$0xff]
        %v4815 = vld [vmem:[%s5 + $0x140] sm:$0xff]
        %v4816 = vld [vmem:[%s5 + $0x148] sm:$0xff]
        %v4817 = vld [vmem:[%s5 + $0x150] sm:$0xff]
        %v4818 = vld [vmem:[%s5 + $0x158] sm:$0xff]
        %v4819 = vld [vmem:[%s5 + $0x160] sm:$0xff]
        %v4820 = vld [vmem:[%s5 + $0x168] sm:$0xff]
        %v4821 = vld [vmem:[%s5 + $0x170] sm:$0xff]
        %v4822 = vld [vmem:[%s5 + $0x178] sm:$0xff]
        %v4823 = vld [vmem:[%s5 + $0x180] sm:$0xff]
        %v4824 = vld [vmem:[%s5 + $0x188] sm:$0xff]
        %v4825 = vld [vmem:[%s5 + $0x190] sm:$0xff]
        %v4826 = vld [vmem:[%s5 + $0x198] sm:$0xff]
        %v4827 = vld [vmem:[%s5 + $0x1a0] sm:$0xff]
        %v4828 = vld [vmem:[%s5 + $0x1a8] sm:$0xff]
        %v4829 = vld [vmem:[%s5 + $0x1b0] sm:$0xff]
        %v4830 = vld [vmem:[%s5 + $0x1b8] sm:$0xff]
        %v4831 = vld [vmem:[%s5 + $0x1c0] sm:$0xff]
        %v4832 = vld [vmem:[%s5 + $0x1c8] sm:$0xff]
        %v4833 = vld [vmem:[%s5 + $0x1d0] sm:$0xff]
        %v4834 = vld [vmem:[%s5 + $0x1d8] sm:$0xff]
        %v4835 = vld [vmem:[%s5 + $0x1e0] sm:$0xff]
        %v4836 = vld [vmem:[%s5 + $0x1e8] sm:$0xff]
        %v4837 = vld [vmem:[%s5 + $0x1f0] sm:$0xff]
        %v4838 = vld [vmem:[%s5 + $0x1f8] sm:$0xff]
        %v4839 = vld [vmem:[%s5 + $0x200] sm:$0xff]
        %v4840 = vld [vmem:[%s5 + $0x208] sm:$0xff]
        %v4841 = vld [vmem:[%s5 + $0x210] sm:$0xff]
        %v4842 = vld [vmem:[%s5 + $0x218] sm:$0xff]
        %v4843 = vld [vmem:[%s5 + $0x220] sm:$0xff]
        %v4844 = vld [vmem:[%s5 + $0x228] sm:$0xff]
        %v4845 = vld [vmem:[%s5 + $0x230] sm:$0xff]
        %v4846 = vld [vmem:[%s5 + $0x238] sm:$0xff]
        %v4847 = vld [vmem:[%s5 + $0x240] sm:$0xff]
        %v4848 = vld [vmem:[%s5 + $0x248] sm:$0xff]
        %v4849 = vld [vmem:[%s5 + $0x250] sm:$0xff]
        %v4850 = vld [vmem:[%s5 + $0x258] sm:$0xff]
        %v4851 = vld [vmem:[%s5 + $0x260] sm:$0xff]
        %v4852 = vld [vmem:[%s5 + $0x268] sm:$0xff]
        %v4853 = vld [vmem:[%s5 + $0x270] sm:$0xff]
        %v4854 = vld [vmem:[%s5 + $0x278] sm:$0xff]
        %v4855 = vld [vmem:[%s5 + $0x280] sm:$0xff]
        %v4856 = vld [vmem:[%s5 + $0x288] sm:$0xff]
        %v4857 = vld [vmem:[%s5 + $0x290] sm:$0xff]
        %v4858 = vld [vmem:[%s5 + $0x298] sm:$0xff]
        %v4859 = vld [vmem:[%s5 + $0x2a0] sm:$0xff]
        %v4860 = vld [vmem:[%s5 + $0x2a8] sm:$0xff]
        %v4861 = vld [vmem:[%s5 + $0x2b0] sm:$0xff]
        %v4862 = vld [vmem:[%s5 + $0x2b8] sm:$0xff]
        %v4863 = vld [vmem:[%s5 + $0x2c0] sm:$0xff]
        %v4864 = vld [vmem:[%s5 + $0x2c8] sm:$0xff]
        %v4865 = vld [vmem:[%s5 + $0x2d0] sm:$0xff]
        %v4866 = vld [vmem:[%s5 + $0x2d8] sm:$0xff]
        %v4867 = vld [vmem:[%s5 + $0x2e0] sm:$0xff]
        %v4868 = vld [vmem:[%s5 + $0x2e8] sm:$0xff]
        %v4869 = vld [vmem:[%s5 + $0x2f0] sm:$0xff]
        %v4870 = vld [vmem:[%s5 + $0x2f8] sm:$0xff]
        %v4871 = vld [vmem:[%s5 + $0x300] sm:$0xff]
        %v4872 = vld [vmem:[%s5 + $0x308] sm:$0xff]
        %v4873 = vld [vmem:[%s5 + $0x310] sm:$0xff]
        %v4874 = vld [vmem:[%s5 + $0x318] sm:$0xff]
        %v4875 = vld [vmem:[%s5 + $0x320] sm:$0xff]
        %v4876 = vld [vmem:[%s5 + $0x328] sm:$0xff]
        %v4877 = vld [vmem:[%s5 + $0x330] sm:$0xff]
        %v4878 = vld [vmem:[%s5 + $0x338] sm:$0xff]
        %v4879 = vld [vmem:[%s5 + $0x340] sm:$0xff]
        %v4880 = vld [vmem:[%s5 + $0x348] sm:$0xff]
        %v4881 = vld [vmem:[%s5 + $0x350] sm:$0xff]
        %v4882 = vld [vmem:[%s5 + $0x358] sm:$0xff]
        %v4883 = vld [vmem:[%s5 + $0x360] sm:$0xff]
        %v4884 = vld [vmem:[%s5 + $0x368] sm:$0xff]
        %v4885 = vld [vmem:[%s5 + $0x370] sm:$0xff]
        %v4886 = vld [vmem:[%s5 + $0x378] sm:$0xff]
        %v4887 = vld [vmem:[%s5 + $0x380] sm:$0xff]
        %v4888 = vld [vmem:[%s5 + $0x388] sm:$0xff]
        %v4889 = vld [vmem:[%s5 + $0x390] sm:$0xff]
        %v4890 = vld [vmem:[%s5 + $0x398] sm:$0xff]
        %v4891 = vld [vmem:[%s5 + $0x3a0] sm:$0xff]
        %v4892 = vld [vmem:[%s5 + $0x3a8] sm:$0xff]
        %v4893 = vld [vmem:[%s5 + $0x3b0] sm:$0xff]
        %v4894 = vld [vmem:[%s5 + $0x3b8] sm:$0xff]
        %v4895 = vld [vmem:[%s5 + $0x3c0] sm:$0xff]
        %v4896 = vld [vmem:[%s5 + $0x3c8] sm:$0xff]
        %v4897 = vld [vmem:[%s5 + $0x3d0] sm:$0xff]
        %v4898 = vld [vmem:[%s5 + $0x3d8] sm:$0xff]
        %v4899 = vld [vmem:[%s5 + $0x3e0] sm:$0xff]
        %v4900 = vld [vmem:[%s5 + $0x3e8] sm:$0xff]
        %v4901 = vld [vmem:[%s5 + $0x3f0] sm:$0xff]
        %v4902 = vld [vmem:[%s5 + $0x3f8] sm:$0xff]
        %4903 = vmatpush.msra.mxu0 %v4790
        %4904 = vmatpush.msra.mxu0 %v4789
        %4905 = vmatpush.msra.mxu0 %v4788
        %4906 = vmatpush.msra.mxu0 %v4787
        %4907 = vmatpush.msra.mxu0 %v4786
        %4908 = vmatpush.msra.mxu0 %v4785
        %4909 = vmatpush.msra.mxu0 %v4784
        %4910 = vmatpush.msra.mxu0 %v4783
        %4911 = vmatpush.msra.mxu0 %v4782
        %4912 = vmatpush.msra.mxu0 %v4781
        %4913 = vmatpush.msra.mxu0 %v4780
        %4914 = vmatpush.msra.mxu0 %v4779
        %4915 = vmatpush.msra.mxu0 %v4778
        %4916 = vmatpush.msra.mxu0 %v4777
        %4917 = vmatpush.msra.mxu0 %v4776
        %4918 = vmatpush.msra.mxu0 %v4775
        %4919 = vmatmul.f32.gmra.mxu0 %v4759
        %v4920 = vpop.f32.mrf.mxu0
        %v4921 = vadd.f32 0.0, %v4920
        %4922 = vmatmul.f32.gmra.mxu0 %v4767
        %v4923 = vpop.f32.mrf.mxu0
        %v4924 = vadd.f32 0.0, %v4923
        %4925 = vdwg.mxu0
        %4926 = vmatpush.msra.mxu0 %v4806
        %4927 = vmatpush.msra.mxu0 %v4805
        %4928 = vmatpush.msra.mxu0 %v4804
        %4929 = vmatpush.msra.mxu0 %v4803
        %4930 = vmatpush.msra.mxu0 %v4802
        %4931 = vmatpush.msra.mxu0 %v4801
        %4932 = vmatpush.msra.mxu0 %v4800
        %4933 = vmatpush.msra.mxu0 %v4799
        %4934 = vmatpush.msra.mxu0 %v4798
        %4935 = vmatpush.msra.mxu0 %v4797
        %4936 = vmatpush.msra.mxu0 %v4796
        %4937 = vmatpush.msra.mxu0 %v4795
        %4938 = vmatpush.msra.mxu0 %v4794
        %4939 = vmatpush.msra.mxu0 %v4793
        %4940 = vmatpush.msra.mxu0 %v4792
        %4941 = vmatpush.msra.mxu0 %v4791
        %4942 = vmatmul.f32.gmra.mxu0 %v4760
        %v4943 = vpop.f32.mrf.mxu0
        %v4944 = vadd.f32 %v4921, %v4943
        %4945 = vmatmul.f32.gmra.mxu0 %v4768
        %v4946 = vpop.f32.mrf.mxu0
        %v4947 = vadd.f32 %v4924, %v4946
        %4948 = vdwg.mxu0
        %4949 = vmatpush.msra.mxu0 %v4822
        %4950 = vmatpush.msra.mxu0 %v4821
        %4951 = vmatpush.msra.mxu0 %v4820
        %4952 = vmatpush.msra.mxu0 %v4819
        %4953 = vmatpush.msra.mxu0 %v4818
        %4954 = vmatpush.msra.mxu0 %v4817
        %4955 = vmatpush.msra.mxu0 %v4816
        %4956 = vmatpush.msra.mxu0 %v4815
        %4957 = vmatpush.msra.mxu0 %v4814
        %4958 = vmatpush.msra.mxu0 %v4813
        %4959 = vmatpush.msra.mxu0 %v4812
        %4960 = vmatpush.msra.mxu0 %v4811
        %4961 = vmatpush.msra.mxu0 %v4810
        %4962 = vmatpush.msra.mxu0 %v4809
        %4963 = vmatpush.msra.mxu0 %v4808
        %4964 = vmatpush.msra.mxu0 %v4807
        %4965 = vmatmul.f32.gmra.mxu0 %v4761
        %v4966 = vpop.f32.mrf.mxu0
        %v4967 = vadd.f32 %v4944, %v4966
        %4968 = vmatmul.f32.gmra.mxu0 %v4769
        %v4969 = vpop.f32.mrf.mxu0
        %v4970 = vadd.f32 %v4947, %v4969
        %4971 = vdwg.mxu0
        %4972 = vmatpush.msra.mxu0 %v4838
        %4973 = vmatpush.msra.mxu0 %v4837
        %4974 = vmatpush.msra.mxu0 %v4836
        %4975 = vmatpush.msra.mxu0 %v4835
        %4976 = vmatpush.msra.mxu0 %v4834
        %4977 = vmatpush.msra.mxu0 %v4833
        %4978 = vmatpush.msra.mxu0 %v4832
        %4979 = vmatpush.msra.mxu0 %v4831
        %4980 = vmatpush.msra.mxu0 %v4830
        %4981 = vmatpush.msra.mxu0 %v4829
        %4982 = vmatpush.msra.mxu0 %v4828
        %4983 = vmatpush.msra.mxu0 %v4827
        %4984 = vmatpush.msra.mxu0 %v4826
        %4985 = vmatpush.msra.mxu0 %v4825
        %4986 = vmatpush.msra.mxu0 %v4824
        %4987 = vmatpush.msra.mxu0 %v4823
        %4988 = vmatmul.f32.gmra.mxu0 %v4762
        %v4989 = vpop.f32.mrf.mxu0
        %v4990 = vadd.f32 %v4967, %v4989
        %4991 = vmatmul.f32.gmra.mxu0 %v4770
        %v4992 = vpop.f32.mrf.mxu0
        %v4993 = vadd.f32 %v4970, %v4992
        %4994 = vdwg.mxu0
        %4995 = vmatpush.msra.mxu0 %v4854
        %4996 = vmatpush.msra.mxu0 %v4853
        %4997 = vmatpush.msra.mxu0 %v4852
        %4998 = vmatpush.msra.mxu0 %v4851
        %4999 = vmatpush.msra.mxu0 %v4850
        %5000 = vmatpush.msra.mxu0 %v4849
        %5001 = vmatpush.msra.mxu0 %v4848
        %5002 = vmatpush.msra.mxu0 %v4847
        %5003 = vmatpush.msra.mxu0 %v4846
        %5004 = vmatpush.msra.mxu0 %v4845
        %5005 = vmatpush.msra.mxu0 %v4844
        %5006 = vmatpush.msra.mxu0 %v4843
        %5007 = vmatpush.msra.mxu0 %v4842
        %5008 = vmatpush.msra.mxu0 %v4841
        %5009 = vmatpush.msra.mxu0 %v4840
        %5010 = vmatpush.msra.mxu0 %v4839
        %5011 = vmatmul.f32.gmra.mxu0 %v4763
        %v5012 = vpop.f32.mrf.mxu0
        %v5013 = vadd.f32 %v4990, %v5012
        %5014 = vmatmul.f32.gmra.mxu0 %v4771
        %v5015 = vpop.f32.mrf.mxu0
        %v5016 = vadd.f32 %v4993, %v5015
        %5017 = vdwg.mxu0
        %5018 = vmatpush.msra.mxu0 %v4870
        %5019 = vmatpush.msra.mxu0 %v4869
        %5020 = vmatpush.msra.mxu0 %v4868
        %5021 = vmatpush.msra.mxu0 %v4867
        %5022 = vmatpush.msra.mxu0 %v4866
        %5023 = vmatpush.msra.mxu0 %v4865
        %5024 = vmatpush.msra.mxu0 %v4864
        %5025 = vmatpush.msra.mxu0 %v4863
        %5026 = vmatpush.msra.mxu0 %v4862
        %5027 = vmatpush.msra.mxu0 %v4861
        %5028 = vmatpush.msra.mxu0 %v4860
        %5029 = vmatpush.msra.mxu0 %v4859
        %5030 = vmatpush.msra.mxu0 %v4858
        %5031 = vmatpush.msra.mxu0 %v4857
        %5032 = vmatpush.msra.mxu0 %v4856
        %5033 = vmatpush.msra.mxu0 %v4855
        %5034 = vmatmul.f32.gmra.mxu0 %v4764
        %v5035 = vpop.f32.mrf.mxu0
        %v5036 = vadd.f32 %v5013, %v5035
        %5037 = vmatmul.f32.gmra.mxu0 %v4772
        %v5038 = vpop.f32.mrf.mxu0
        %v5039 = vadd.f32 %v5016, %v5038
        %5040 = vdwg.mxu0
        %5041 = vmatpush.msra.mxu0 %v4886
        %5042 = vmatpush.msra.mxu0 %v4885
        %5043 = vmatpush.msra.mxu0 %v4884
        %5044 = vmatpush.msra.mxu0 %v4883
        %5045 = vmatpush.msra.mxu0 %v4882
        %5046 = vmatpush.msra.mxu0 %v4881
        %5047 = vmatpush.msra.mxu0 %v4880
        %5048 = vmatpush.msra.mxu0 %v4879
        %5049 = vmatpush.msra.mxu0 %v4878
        %5050 = vmatpush.msra.mxu0 %v4877
        %5051 = vmatpush.msra.mxu0 %v4876
        %5052 = vmatpush.msra.mxu0 %v4875
        %5053 = vmatpush.msra.mxu0 %v4874
        %5054 = vmatpush.msra.mxu0 %v4873
        %5055 = vmatpush.msra.mxu0 %v4872
        %5056 = vmatpush.msra.mxu0 %v4871
        %5057 = vmatmul.f32.gmra.mxu0 %v4765
        %v5058 = vpop.f32.mrf.mxu0
        %v5059 = vadd.f32 %v5036, %v5058
        %5060 = vmatmul.f32.gmra.mxu0 %v4773
        %v5061 = vpop.f32.mrf.mxu0
        %v5062 = vadd.f32 %v5039, %v5061
        %5063 = vdwg.mxu0
        %5064 = vmatpush.msra.mxu0 %v4902
        %5065 = vmatpush.msra.mxu0 %v4901
        %5066 = vmatpush.msra.mxu0 %v4900
        %5067 = vmatpush.msra.mxu0 %v4899
        %5068 = vmatpush.msra.mxu0 %v4898
        %5069 = vmatpush.msra.mxu0 %v4897
        %5070 = vmatpush.msra.mxu0 %v4896
        %5071 = vmatpush.msra.mxu0 %v4895
        %5072 = vmatpush.msra.mxu0 %v4894
        %5073 = vmatpush.msra.mxu0 %v4893
        %5074 = vmatpush.msra.mxu0 %v4892
        %5075 = vmatpush.msra.mxu0 %v4891
        %5076 = vmatpush.msra.mxu0 %v4890
        %5077 = vmatpush.msra.mxu0 %v4889
        %5078 = vmatpush.msra.mxu0 %v4888
        %5079 = vmatpush.msra.mxu0 %v4887
        %5080 = vmatmul.f32.gmra.mxu0 %v4766
        %v5081 = vpop.f32.mrf.mxu0
        %v5082 = vadd.f32 %v5059, %v5081
        %5083 = vmatmul.f32.gmra.mxu0 %v4774
        %v5084 = vpop.f32.mrf.mxu0
        %v5085 = vadd.f32 %v5062, %v5084
        %5086 = vdwg.mxu0
        %v5087 = vlaneseq
        %vm5088 = vcmp.ge.s32.totalorder %v5087, 0
        %vm5089 = vcmp.lt.s32.totalorder %v5087, 25
        %vm5090 = vmand %vm5088, %vm5089
        %5091 = vst.msk [vmem:[#allocation7] sm:$0x1] %vm5090, %v5082
        %5093 = vst [vmem:[#allocation1] sm:$0xff] %v5082
        %s5094 = scalar_lea.vmem [#allocation1], 1
        %v5095 = vld [vmem:[%s5094] ss:$9 sm:$0xff]
        %5096 = vrot.lane.b32.xlu0 %v5095, 25
        %v5097 = vpop.permute.xlu0 %5096
        %vm5099 = vcmp.ge.s32.totalorder %v5087, 25
        %vm5100 = vcmp.lt.s32.totalorder %v5087, 50
        %vm5101 = vmand %vm5099, %vm5100
        %5102 = vst.msk [vmem:[#allocation7] sm:$0x1] %vm5101, %v5097
        %5103 = vst [vmem:[#allocation1] sm:$0xff] %v5082
        %s5104 = scalar_lea.vmem [#allocation1], 2
        %v5105 = vld [vmem:[%s5104] ss:$9 sm:$0xff]
        %5106 = vrot.lane.b32.xlu0 %v5105, 50
        %v5107 = vpop.permute.xlu0 %5106
        %vm5109 = vcmp.ge.s32.totalorder %v5087, 50
        %vm5110 = vcmp.lt.s32.totalorder %v5087, 75
        %vm5111 = vmand %vm5109, %vm5110
        %5112 = vst.msk [vmem:[#allocation7] sm:$0x1] %vm5111, %v5107
        %5113 = vst [vmem:[#allocation1] sm:$0xff] %v5082
        %s5114 = scalar_lea.vmem [#allocation1], 3
        %v5115 = vld [vmem:[%s5114] ss:$9 sm:$0xff]
        %5116 = vrot.lane.b32.xlu0 %v5115, 75
        %v5117 = vpop.permute.xlu0 %5116
        %vm5119 = vcmp.ge.s32.totalorder %v5087, 75
        %vm5120 = vcmp.lt.s32.totalorder %v5087, 100
        %vm5121 = vmand %vm5119, %vm5120
        %5122 = vst.msk [vmem:[#allocation7] sm:$0x1] %vm5121, %v5117
        %5123 = vst [vmem:[#allocation1] sm:$0xff] %v5082
        %s5124 = scalar_lea.vmem [#allocation1], 4
        %v5125 = vld [vmem:[%s5124] ss:$9 sm:$0xff]
        %5126 = vrot.lane.b32.xlu0 %v5125, 100
        %v5127 = vpop.permute.xlu0 %5126
        %vm5129 = vcmp.ge.s32.totalorder %v5087, 100
        %vm5130 = vcmp.lt.s32.totalorder %v5087, 125
        %vm5131 = vmand %vm5129, %vm5130
        %5132 = vst.msk [vmem:[#allocation7] sm:$0x1] %vm5131, %v5127
        %5133 = vst [vmem:[#allocation1] sm:$0xff] %v5082
        %s5134 = scalar_lea.vmem [#allocation1], 5
        %v5135 = vld [vmem:[%s5134] ss:$9 sm:$0xff]
        %5136 = vrot.lane.b32.xlu0 %v5135, 125
        %v5137 = vpop.permute.xlu0 %5136
        %v5138 = vrot.slane %v5137, 7
        %v5139 = vsel %vm629, %v5138, %v5137
        %vm5141 = vcmp.ge.s32.totalorder %v5087, 125
        %vm5142 = vcmp.lt.s32.totalorder %v5087, 150
        %vm5143 = vmand %vm5141, %vm5142
        %5144 = vst.msk [vmem:[#allocation7] sm:$0x3] %vm5143, %v5139
        %5145 = vst [vmem:[#allocation1] sm:$0xff] %v5082
        %s5146 = scalar_lea.vmem [#allocation1], 6
        %v5147 = vld [vmem:[%s5146] ss:$9 sm:$0xff]
        %5148 = vrot.lane.b32.xlu0 %v5147, 22
        %v5149 = vpop.permute.xlu0 %5148
        %vm5151 = vcmp.ge.s32.totalorder %v5087, 22
        %vm5152 = vcmp.lt.s32.totalorder %v5087, 47
        %vm5153 = vmand %vm5151, %vm5152
        %5154 = vst.msk [vmem:[#allocation7 + $0x1] sm:$0x1] %vm5153, %v5149
        %5155 = vst [vmem:[#allocation1] sm:$0xff] %v5082
        %s5156 = scalar_lea.vmem [#allocation1], 7
        %v5157 = vld [vmem:[%s5156] ss:$9 sm:$0xff]
        %5158 = vrot.lane.b32.xlu0 %v5157, 47
        %v5159 = vpop.permute.xlu0 %5158
        %vm5161 = vcmp.ge.s32.totalorder %v5087, 47
        %vm5162 = vcmp.lt.s32.totalorder %v5087, 72
        %vm5163 = vmand %vm5161, %vm5162
        %5164 = vst.msk [vmem:[#allocation7 + $0x1] sm:$0x1] %vm5163, %v5159
        %5166 = vrot.lane.b32.xlu0 %v5085, 72
        %v5167 = vpop.permute.xlu0 %5166
        %vm5169 = vcmp.ge.s32.totalorder %v5087, 72
        %vm5170 = vcmp.lt.s32.totalorder %v5087, 97
        %vm5171 = vmand %vm5169, %vm5170
        %5172 = vst.msk [vmem:[#allocation7 + $0x1] sm:$0x1] %vm5171, %v5167
        %5173 = vst [vmem:[#allocation1] sm:$0xff] %v5085
        %s5174 = scalar_lea.vmem [#allocation1], 1
        %v5175 = vld [vmem:[%s5174] ss:$9 sm:$0xff]
        %5176 = vrot.lane.b32.xlu0 %v5175, 97
        %v5177 = vpop.permute.xlu0 %5176
        %vm5179 = vcmp.ge.s32.totalorder %v5087, 97
        %vm5180 = vcmp.lt.s32.totalorder %v5087, 122
        %vm5181 = vmand %vm5179, %vm5180
        %5182 = vst.msk [vmem:[#allocation7 + $0x1] sm:$0x1] %vm5181, %v5177
        %5183 = vst [vmem:[#allocation1] sm:$0xff] %v5085
        %s5184 = scalar_lea.vmem [#allocation1], 2
        %v5185 = vld [vmem:[%s5184] ss:$9 sm:$0xff]
        %5186 = vrot.lane.b32.xlu0 %v5185, 122
        %v5187 = vpop.permute.xlu0 %5186
        %v5188 = vrot.slane %v5187, 7
        %v5189 = vsel %vm2727, %v5188, %v5187
        %vm5191 = vcmp.ge.s32.totalorder %v5087, 122
        %vm5192 = vcmp.lt.s32.totalorder %v5087, 147
        %vm5193 = vmand %vm5191, %vm5192
        %5194 = vst.msk [vmem:[#allocation7 + $0x1] sm:$0x3] %vm5193, %v5189
        %5195 = vst [vmem:[#allocation1] sm:$0xff] %v5085
        %s5196 = scalar_lea.vmem [#allocation1], 3
        %v5197 = vld [vmem:[%s5196] ss:$9 sm:$0xff]
        %5198 = vrot.lane.b32.xlu0 %v5197, 19
        %v5199 = vpop.permute.xlu0 %5198
        %vm5201 = vcmp.ge.s32.totalorder %v5087, 19
        %vm5202 = vcmp.lt.s32.totalorder %v5087, 44
        %vm5203 = vmand %vm5201, %vm5202
        %5204 = vst.msk [vmem:[#allocation7 + $0x2] sm:$0x1] %vm5203, %v5199
        %5205 = vst [vmem:[#allocation1] sm:$0xff] %v5085
        %s5206 = scalar_lea.vmem [#allocation1], 4
        %v5207 = vld [vmem:[%s5206] ss:$9 sm:$0xff]
        %5208 = vrot.lane.b32.xlu0 %v5207, 44
        %v5209 = vpop.permute.xlu0 %5208
        %vm5211 = vcmp.ge.s32.totalorder %v5087, 44
        %vm5212 = vcmp.lt.s32.totalorder %v5087, 69
        %vm5213 = vmand %vm5211, %vm5212
        %5214 = vst.msk [vmem:[#allocation7 + $0x2] sm:$0x1] %vm5213, %v5209
        %5215 = vst [vmem:[#allocation1] sm:$0xff] %v5085
        %s5216 = scalar_lea.vmem [#allocation1], 5
        %v5217 = vld [vmem:[%s5216] ss:$9 sm:$0xff]
        %5218 = vrot.lane.b32.xlu0 %v5217, 69
        %v5219 = vpop.permute.xlu0 %5218
        %vm5221 = vcmp.ge.s32.totalorder %v5087, 69
        %vm5222 = vcmp.lt.s32.totalorder %v5087, 94
        %vm5223 = vmand %vm5221, %vm5222
        %5224 = vst.msk [vmem:[#allocation7 + $0x2] sm:$0x1] %vm5223, %v5219
        %5225 = vst [vmem:[#allocation1] sm:$0xff] %v5085
        %s5226 = scalar_lea.vmem [#allocation1], 6
        %v5227 = vld [vmem:[%s5226] ss:$9 sm:$0xff]
        %5228 = vrot.lane.b32.xlu0 %v5227, 94
        %v5229 = vpop.permute.xlu0 %5228
        %vm5231 = vcmp.ge.s32.totalorder %v5087, 94
        %vm5232 = vcmp.lt.s32.totalorder %v5087, 119
        %vm5233 = vmand %vm5231, %vm5232
        %5234 = vst.msk [vmem:[#allocation7 + $0x2] sm:$0x1] %vm5233, %v5229
        %5235 = vst [vmem:[#allocation1] sm:$0xff] %v5085
        %s5236 = scalar_lea.vmem [#allocation1], 7
        %v5237 = vld [vmem:[%s5236] ss:$9 sm:$0xff]
        %5238 = vrot.lane.b32.xlu0 %v5237, 119
        %v5239 = vpop.permute.xlu0 %5238
        %v5240 = vrot.slane %v5239, 7
        %vm5241 = vcmask 973824
        %v5242 = vsel %vm5241, %v5240, %v5239
        %vm5244 = vcmp.ge.s32.totalorder %v5087, 119
        %vm5245 = vcmp.lt.s32.totalorder %v5087, 144
        %vm5246 = vmand %vm5244, %vm5245
        %5247 = vst.msk [vmem:[#allocation7 + $0x2] sm:$0x3] %vm5246, %v5242
        %v5248 = vld [vmem:[#allocation7] sm:$0xf]
        %v5249 = vld [vmem:[%s6] sm:$0xff]
        %v5250 = vld [vmem:[%s6 + $0x8] sm:$0xff]
        %v5251 = vld [vmem:[%s6 + $0x10] sm:$0xff]
        %v5252 = vld [vmem:[%s6 + $0x18] sm:$0xff]
        %v5253 = vld [vmem:[%s6 + $0x20] sm:$0xff]
        %v5254 = vld [vmem:[%s6 + $0x28] sm:$0xff]
        %v5255 = vld [vmem:[%s6 + $0x30] sm:$0xff]
        %v5256 = vld [vmem:[%s6 + $0x38] sm:$0xff]
        %v5257 = vld [vmem:[%s6 + $0x40] sm:$0xff]
        %v5258 = vld [vmem:[%s6 + $0x48] sm:$0xff]
        %v5259 = vld [vmem:[%s6 + $0x50] sm:$0xff]
        %v5260 = vld [vmem:[%s6 + $0x58] sm:$0xff]
        %v5261 = vld [vmem:[%s6 + $0x60] sm:$0xff]
        %v5262 = vld [vmem:[%s6 + $0x68] sm:$0xff]
        %v5263 = vld [vmem:[%s6 + $0x70] sm:$0xff]
        %v5264 = vld [vmem:[%s6 + $0x78] sm:$0xff]
        %v5265 = vld [vmem:[%s6 + $0x80] sm:$0xff]
        %v5266 = vld [vmem:[%s6 + $0x88] sm:$0xff]
        %v5267 = vld [vmem:[%s6 + $0x90] sm:$0xff]
        %v5268 = vld [vmem:[%s6 + $0x98] sm:$0xff]
        %v5269 = vld [vmem:[%s6 + $0xa0] sm:$0xff]
        %v5270 = vld [vmem:[%s6 + $0xa8] sm:$0xff]
        %v5271 = vld [vmem:[%s6 + $0xb0] sm:$0xff]
        %v5272 = vld [vmem:[%s6 + $0xb8] sm:$0xff]
        %v5273 = vld [vmem:[%s6 + $0xc0] sm:$0xff]
        %v5274 = vld [vmem:[%s6 + $0xc8] sm:$0xff]
        %v5275 = vld [vmem:[%s6 + $0xd0] sm:$0xff]
        %v5276 = vld [vmem:[%s6 + $0xd8] sm:$0xff]
        %v5277 = vld [vmem:[%s6 + $0xe0] sm:$0xff]
        %v5278 = vld [vmem:[%s6 + $0xe8] sm:$0xff]
        %v5279 = vld [vmem:[%s6 + $0xf0] sm:$0xff]
        %v5280 = vld [vmem:[%s6 + $0xf8] sm:$0xff]
        %v5281 = vld [vmem:[%s6 + $0x100] sm:$0xff]
        %v5282 = vld [vmem:[%s6 + $0x108] sm:$0xff]
        %v5283 = vld [vmem:[%s6 + $0x110] sm:$0xff]
        %v5284 = vld [vmem:[%s6 + $0x118] sm:$0xff]
        %v5285 = vld [vmem:[%s6 + $0x120] sm:$0xff]
        %v5286 = vld [vmem:[%s6 + $0x128] sm:$0xff]
        %v5287 = vld [vmem:[%s6 + $0x130] sm:$0xff]
        %v5288 = vld [vmem:[%s6 + $0x138] sm:$0xff]
        %v5289 = vld [vmem:[%s6 + $0x140] sm:$0xff]
        %v5290 = vld [vmem:[%s6 + $0x148] sm:$0xff]
        %v5291 = vld [vmem:[%s6 + $0x150] sm:$0xff]
        %v5292 = vld [vmem:[%s6 + $0x158] sm:$0xff]
        %v5293 = vld [vmem:[%s6 + $0x160] sm:$0xff]
        %v5294 = vld [vmem:[%s6 + $0x168] sm:$0xff]
        %v5295 = vld [vmem:[%s6 + $0x170] sm:$0xff]
        %v5296 = vld [vmem:[%s6 + $0x178] sm:$0xff]
        %v5297 = vld [vmem:[%s6 + $0x180] sm:$0xff]
        %v5298 = vld [vmem:[%s6 + $0x188] sm:$0xff]
        %v5299 = vld [vmem:[%s7] sm:$0x1]
        %v5301 = vperm.slane %v5248, 0
        %v5302 = vperm.slane %v5248, 1
        %v5303 = vperm.slane %v5248, 2
        %v5304 = vperm.slane %v5248, 3
        %vm5308 = vcmask 130048
        %v5309 = vsel %vm5308, %v5304, 0
        %5311 = vmatpush.msra.mxu0 %v5264
        %5312 = vmatpush.msra.mxu0 %v5263
        %5313 = vmatpush.msra.mxu0 %v5262
        %5314 = vmatpush.msra.mxu0 %v5261
        %5315 = vmatpush.msra.mxu0 %v5260
        %5316 = vmatpush.msra.mxu0 %v5259
        %5317 = vmatpush.msra.mxu0 %v5258
        %5318 = vmatpush.msra.mxu0 %v5257
        %5319 = vmatpush.msra.mxu0 %v5256
        %5320 = vmatpush.msra.mxu0 %v5255
        %5321 = vmatpush.msra.mxu0 %v5254
        %5322 = vmatpush.msra.mxu0 %v5253
        %5323 = vmatpush.msra.mxu0 %v5252
        %5324 = vmatpush.msra.mxu0 %v5251
        %5325 = vmatpush.msra.mxu0 %v5250
        %5326 = vmatpush.msra.mxu0 %v5249
        %5327 = vmatmul.f32.gmra.mxu0 %v5301
        %v5328 = vpop.f32.mrf.mxu0
        %v5329 = vadd.f32 %v5299, %v5328
        %5330 = vdwg.mxu0
        %5331 = vmatpush.msra.mxu0 %v5280
        %5332 = vmatpush.msra.mxu0 %v5279
        %5333 = vmatpush.msra.mxu0 %v5278
        %5334 = vmatpush.msra.mxu0 %v5277
        %5335 = vmatpush.msra.mxu0 %v5276
        %5336 = vmatpush.msra.mxu0 %v5275
        %5337 = vmatpush.msra.mxu0 %v5274
        %5338 = vmatpush.msra.mxu0 %v5273
        %5339 = vmatpush.msra.mxu0 %v5272
        %5340 = vmatpush.msra.mxu0 %v5271
        %5341 = vmatpush.msra.mxu0 %v5270
        %5342 = vmatpush.msra.mxu0 %v5269
        %5343 = vmatpush.msra.mxu0 %v5268
        %5344 = vmatpush.msra.mxu0 %v5267
        %5345 = vmatpush.msra.mxu0 %v5266
        %5346 = vmatpush.msra.mxu0 %v5265
        %5347 = vmatmul.f32.gmra.mxu0 %v5302
        %v5348 = vpop.f32.mrf.mxu0
        %v5349 = vadd.f32 %v5329, %v5348
        %5350 = vdwg.mxu0
        %5351 = vmatpush.msra.mxu0 %v5296
        %5352 = vmatpush.msra.mxu0 %v5295
        %5353 = vmatpush.msra.mxu0 %v5294
        %5354 = vmatpush.msra.mxu0 %v5293
        %5355 = vmatpush.msra.mxu0 %v5292
        %5356 = vmatpush.msra.mxu0 %v5291
        %5357 = vmatpush.msra.mxu0 %v5290
        %5358 = vmatpush.msra.mxu0 %v5289
        %5359 = vmatpush.msra.mxu0 %v5288
        %5360 = vmatpush.msra.mxu0 %v5287
        %5361 = vmatpush.msra.mxu0 %v5286
        %5362 = vmatpush.msra.mxu0 %v5285
        %5363 = vmatpush.msra.mxu0 %v5284
        %5364 = vmatpush.msra.mxu0 %v5283
        %5365 = vmatpush.msra.mxu0 %v5282
        %5366 = vmatpush.msra.mxu0 %v5281
        %5367 = vmatmul.f32.gmra.mxu0 %v5303
        %v5368 = vpop.f32.mrf.mxu0
        %v5369 = vadd.f32 %v5349, %v5368
        %5370 = vdwg.mxu0
        %5371 = vmatpush.msra.mxu0 0.0
        %5372 = vmatpush.msra.mxu0 0.0
        %5373 = vmatpush.msra.mxu0 0.0
        %5374 = vmatpush.msra.mxu0 0.0
        %5375 = vmatpush.msra.mxu0 0.0
        %5376 = vmatpush.msra.mxu0 0.0
        %5377 = vmatpush.msra.mxu0 0.0
        %5378 = vmatpush.msra.mxu0 0.0
        %5379 = vmatpush.msra.mxu0 0.0
        %5380 = vmatpush.msra.mxu0 0.0
        %5381 = vmatpush.msra.mxu0 0.0
        %5382 = vmatpush.msra.mxu0 0.0
        %5383 = vmatpush.msra.mxu0 0.0
        %5384 = vmatpush.msra.mxu0 0.0
        %5385 = vmatpush.msra.mxu0 %v5298
        %5386 = vmatpush.msra.mxu0 %v5297
        %5387 = vmatmul.f32.gmra.mxu0 %v5309
        %v5388 = vpop.f32.mrf.mxu0
        %v5389 = vadd.f32 %v5369, %v5388
        %5390 = vdwg.mxu0
        %v5391 = vmax.f32 %v5389, 0.0
        %v5392 = vld [vmem:[%s8] sm:$0xff]
        %v5393 = vld [vmem:[%s8 + $0x8] sm:$0xff]
        %v5394 = vld [vmem:[%s8 + $0x10] sm:$0xff]
        %v5395 = vld [vmem:[%s8 + $0x18] sm:$0xff]
        %v5396 = vld [vmem:[%s8 + $0x20] sm:$0xff]
        %v5397 = vld [vmem:[%s8 + $0x28] sm:$0xff]
        %v5398 = vld [vmem:[%s8 + $0x30] sm:$0xff]
        %v5399 = vld [vmem:[%s8 + $0x38] sm:$0xff]
        %v5400 = vld [vmem:[%s8 + $0x40] sm:$0xff]
        %v5401 = vld [vmem:[%s8 + $0x48] sm:$0xff]
        %v5402 = vld [vmem:[%s8 + $0x50] sm:$0xff]
        %v5403 = vld [vmem:[%s8 + $0x58] sm:$0xff]
        %v5404 = vld [vmem:[%s8 + $0x60] sm:$0xff]
        %v5405 = vld [vmem:[%s8 + $0x68] sm:$0xff]
        %v5406 = vld [vmem:[%s8 + $0x70] sm:$0xff]
        %v5407 = vld [vmem:[%s9] sm:$0x1]
        %v5409 = vsel %vm2788, %v5391, 0
        %5411 = vmatpush.msra.mxu0 0.0
        %5412 = vmatpush.msra.mxu0 %v5406
        %5413 = vmatpush.msra.mxu0 %v5405
        %5414 = vmatpush.msra.mxu0 %v5404
        %5415 = vmatpush.msra.mxu0 %v5403
        %5416 = vmatpush.msra.mxu0 %v5402
        %5417 = vmatpush.msra.mxu0 %v5401
        %5418 = vmatpush.msra.mxu0 %v5400
        %5419 = vmatpush.msra.mxu0 %v5399
        %5420 = vmatpush.msra.mxu0 %v5398
        %5421 = vmatpush.msra.mxu0 %v5397
        %5422 = vmatpush.msra.mxu0 %v5396
        %5423 = vmatpush.msra.mxu0 %v5395
        %5424 = vmatpush.msra.mxu0 %v5394
        %5425 = vmatpush.msra.mxu0 %v5393
        %5426 = vmatpush.msra.mxu0 %v5392
        %5427 = vmatmul.f32.gmra.mxu0 %v5409
        %v5428 = vpop.f32.mrf.mxu0
        %v5429 = vadd.f32 %v5407, %v5428
        %5430 = vdwg.mxu0
        %v5431 = vmax.f32 %v5429, 0.0
        %v5432 = vld [vmem:[%s10] sm:$0xff]
        %v5433 = vld [vmem:[%s10 + $0x8] sm:$0xff]
        %v5434 = vld [vmem:[%s10 + $0x10] sm:$0xff]
        %v5435 = vld [vmem:[%s10 + $0x18] sm:$0xff]
        %v5436 = vld [vmem:[%s10 + $0x20] sm:$0xff]
        %v5437 = vld [vmem:[%s10 + $0x28] sm:$0xff]
        %v5438 = vld [vmem:[%s10 + $0x30] sm:$0xff]
        %v5439 = vld [vmem:[%s10 + $0x38] sm:$0xff]
        %v5440 = vld [vmem:[%s10 + $0x40] sm:$0xff]
        %v5441 = vld [vmem:[%s10 + $0x48] sm:$0xff]
        %v5442 = vld [vmem:[%s10 + $0x50] sm:$0xf]
        %v5443 = vld [vmem:[%s11] sm:$0x1]
        %vm5444 = vcmask 687104
        %v5446 = vsel %vm5444, %v5431, 0
        %vm5448 = vcmask 1043456
        %v5450 = vsel %vm5448, %v5442, 0
        %5452 = vmatpush.msra.mxu0 0.0
        %5453 = vmatpush.msra.mxu0 0.0
        %5454 = vmatpush.msra.mxu0 0.0
        %5455 = vmatpush.msra.mxu0 0.0
        %5456 = vmatpush.msra.mxu0 0.0
        %5457 = vmatpush.msra.mxu0 %v5450
        %5458 = vmatpush.msra.mxu0 %v5441
        %5459 = vmatpush.msra.mxu0 %v5440
        %5460 = vmatpush.msra.mxu0 %v5439
        %5461 = vmatpush.msra.mxu0 %v5438
        %5462 = vmatpush.msra.mxu0 %v5437
        %5463 = vmatpush.msra.mxu0 %v5436
        %5464 = vmatpush.msra.mxu0 %v5435
        %5465 = vmatpush.msra.mxu0 %v5434
        %5466 = vmatpush.msra.mxu0 %v5433
        %5467 = vmatpush.msra.mxu0 %v5432
        %5468 = vmatmul.f32.gmra.mxu0 %v5446
        %v5469 = vpop.f32.mrf.mxu0
        %v5470 = vadd.f32 %v5443, %v5469
        %5471 = vdwg.mxu0
        %vm5472 = vcmask 73728
        %5473 = vst.msk [vmem:[%s405] sm:$0x1] %vm5472, %v5470
        %s5474 = sand.u32 %s291, 1
        %s5475 = scalar_lea.sflag [#allocation9], %s5474
        %s5476 = sand.u32 %s291, 1
        %s5477 = scalar_lea.vmem [#allocation8], %s5476
        // Predicated region
        $region69: #{lenet5_forward.1} parent=67 // pred_check
          %p5478 = pneg %p301
        $region70: #{lenet5_forward.1} parent=67 // pred_check_branch
          %5480 = sbr.rel (%p5478) target = $region72
        $region71: #{lenet5_forward.1} parent=67 // pred_region
          %5482 = vsyncadd %s5475, 0
          %s5483 = scalar_lea.hbm %s12, %s26
          %s5485 = sshll.u32 %s5477, 4
          %s5486 = int_to_ptr.vmem [resolvable:$true] %s5485
          %s5487 = sshll.u32 %s5483, 4
          %s5488 = int_to_ptr.hbm [resolvable:$true] %s5487
          %5490 = dma.vmem_to_hbm [thread:$0]  %s5486, 16, %s5488, %s5475
        $region72: #{lenet5_forward.1} parent=67 // pred_fallthru
          _
      $region68: #{lenet5_forward.1} parent=5 // pred_fallthru
        _
      %p5491 = scmp.le.s32.totalorder 2, %s21
      // Predicated region
      $region73: #{lenet5_forward.1} parent=5 // pred_check
        %p5492 = pneg %p5491
      $region74: #{lenet5_forward.1} parent=5 // pred_check_branch
        %5494 = sbr.rel (%p5492) target = $region76
      $region75: #{lenet5_forward.1} parent=5 // pred_region
        %s5495 = ssub.s32 %s21, 2
        // Predicated region
        $region77: #{lenet5_forward.1} parent=75 // pred_check
          %p5496 = pneg %p307
        $region78: #{lenet5_forward.1} parent=75 // pred_check_branch
          %5498 = sbr.rel (%p5496) target = $region80
        $region79: #{lenet5_forward.1} parent=75 // pred_region
          %s5499 = sand.u32 %s292, 1
          %s5500 = scalar_lea.sflag [#allocation9], %s5499
          %s5501 = sand.u32 %s292, 1
          %s5502 = scalar_lea.vmem [#allocation8], %s5501
          %5504 = dma.done %s5500, 16
        $region80: #{lenet5_forward.1} parent=75 // pred_fallthru
          _
      $region76: #{lenet5_forward.1} parent=5 // pred_fallthru
        _
    $region6: #{lenet5_forward.1} parent=1 // loop_footer
      %s25 = sadd.s32 1, %s21
    $region7: #{lenet5_forward.1} parent=1 // loop_footer_branch
      %20 = sbr.rel target = $region3
    $region8: #{lenet5_forward.1} parent=1 // loop_exit
      _
    %5505 = vsyncpa [#allocation9], 1
    %s5506 = scalar_lea.sflag [#allocation9], 1
    %5507 = vsyncpa %s5506, 1

</llo_original>
